<compile_context>
chip_gen: v6e
topology: v6e:2x2x1
jax: 0.10.0
libtpu: 0.0.40
codegen_flags: <defaults>
</compile_context>

<pallas_src>
import functools
import math

import numpy as np
import jax
import jax.numpy as jnp
from jax import lax
from jax.experimental import pallas as pl
from jax.experimental.pallas import tpu as pltpu

_EPS = 1e-5
_ROW_TILE = 1024  # row tile for the HBM-bound channel-matmul passes (512-2048)


def _round_up(x, m):
    return (x + m - 1) // m * m


def _pick_vmem_limit():
    """Scoped-VMEM limit: <= 3/4 of physical VMEM, capped at 96 MiB."""
    try:
        cap = int(getattr(pltpu.get_tpu_info(), "vmem_capacity_bytes", 0) or 0)
    except Exception:
        cap = 0
    if cap <= 0:
        return 48 * 1024 * 1024          # conservative fallback (v7x-safe)
    return int(min(cap * 3 // 4, 96 * 1024 * 1024))


# ---------------------------------------------------------------------------
# Pass 1: per-channel sum / sum-of-squares of the input (BatchNorm #1 stats).
# grid = (num_par, rows_per_par); axis 0 is megacore-parallel with per-core
# partial sums, axis 1 is the sequential accumulation axis.  Padded rows are
# zero and therefore contribute nothing.
# ---------------------------------------------------------------------------
def _channel_stats_kernel(x_ref, sum_ref, sq_ref):
    i = pl.program_id(1)
    x = x_ref[...]
    psum = jnp.sum(x, axis=0, keepdims=True)
    psq = jnp.sum(x * x, axis=0, keepdims=True)

    @pl.when(i == 0)
    def _():
        sum_ref[0] = psum
        sq_ref[0] = psq

    @pl.when(i > 0)
    def _():
        sum_ref[0] += psum
        sq_ref[0] += psq


# ---------------------------------------------------------------------------
# Pass 2: fused BN1(scale/shift) + ReLU + 1x1 conv (bf16 MXU matmul with f32
# accumulation), while also accumulating BN2 statistics of the conv output.
# ---------------------------------------------------------------------------
def _bn_relu_conv1x1_kernel(rows_per_par, tm, m_valid, need_mask,
                            x_ref, s1_ref, h1_ref, w1_ref,
                            y1_ref, sum_ref, sq_ref):
    p = pl.program_id(0)
    i = pl.program_id(1)

    # BN1 folded into per-channel scale/shift, fused with ReLU (VPU).
    a = jnp.maximum(x_ref[...] * s1_ref[...] + h1_ref[...], 0.0)
    if need_mask:
        # Zero rows past the true M so they contribute neither to y1 nor to
        # the BN2 statistics (ragged last tile).
        row0 = (p * rows_per_par + i) * tm
        rows = lax.broadcasted_iota(jnp.int32, a.shape, 0) + row0
        a = jnp.where(rows < m_valid, a, 0.0)

    # 1x1 conv == channel matmul on the MXU: bf16 operands, f32 accumulate.
    y1 = jnp.dot(a.astype(jnp.bfloat16), w1_ref[...],
                 preferred_element_type=jnp.float32)
    y1_ref[...] = y1.astype(y1_ref.dtype)

    psum = jnp.sum(y1, axis=0, keepdims=True)
    psq = jnp.sum(y1 * y1, axis=0, keepdims=True)

    @pl.when(i == 0)
    def _():
        sum_ref[0] = psum
        sq_ref[0] = psq

    @pl.when(i > 0)
    def _():
        sum_ref[0] += psum
        sq_ref[0] += psq


# ---------------------------------------------------------------------------
# Pass 3: fused BN2(scale/shift) + ReLU + 3x3 conv (pad=1), one image per grid
# step.  dy-split im2col: 3 accumulated matmuls of K = 3*Cmid with a
# double-buffered bf16 col scratch.
# ---------------------------------------------------------------------------
def _bn_relu_conv3x3_kernel(H, W, y1_ref, s2_ref, h2_ref, w2_ref, o_ref,
                            pad_ref, col_ref):
    Cmid = y1_ref.shape[1]
    Cout = w2_ref.shape[1]

    # BN2 folded into per-channel scale/shift, fused with ReLU (VPU).
    a = jnp.maximum(
        y1_ref[...].astype(jnp.float32) * s2_ref[...] + h2_ref[...], 0.0)

    # Zero only the 1-wide halo (the conv zero-padding); the interior is fully
    # overwritten every grid step, keeping this axis megacore-safe.
    pad_ref[0:1, :, :] = jnp.zeros((1, W + 2, Cmid), jnp.float32)
    pad_ref[H + 1:H + 2, :, :] = jnp.zeros((1, W + 2, Cmid), jnp.float32)
    pad_ref[:, 0:1, :] = jnp.zeros((H + 2, 1, Cmid), jnp.float32)
    pad_ref[:, W + 1:W + 2, :] = jnp.zeros((H + 2, 1, Cmid), jnp.float32)
    pad_ref[1:H + 1, 1:W + 1, :] = a.reshape(H, W, Cmid)

    # dy-split im2col: col scratch is (H*W, 3*Cmid) bf16 and double-buffered so
    # the gather for dy+1 (store/XLU slots) can overlap the dy matmul (MXU).
    acc = jnp.zeros((H * W, Cout), jnp.float32)
    for dy in range(3):
        slot = dy % 2
        for dx in range(3):
            col_ref[slot, :, dx * Cmid:(dx + 1) * Cmid] = (
                pad_ref[dy:dy + H, dx:dx + W, :]
                .reshape(H * W, Cmid).astype(jnp.bfloat16))
        acc = acc + jnp.dot(col_ref[slot],
                            w2_ref[dy * 3 * Cmid:(dy + 1) * 3 * Cmid, :],
                            preferred_element_type=jnp.float32)

    o_ref[...] = acc.astype(o_ref.dtype)


def _bn_scale_shift(part_sum, part_sq, count, gamma, beta):
    """Fold batch statistics into a per-channel scale/shift (biased variance)."""
    s = jnp.sum(part_sum, axis=(0, 1))
    sq = jnp.sum(part_sq, axis=(0, 1))
    mean = s / count
    # TODO(synk): E[x^2]-E[x]^2 in f32 can cancel for very large, far-from-zero
    # activations; acceptable for BN-style inputs, clamped at zero below.
    var = jnp.maximum(sq / count - mean * mean, 0.0)
    scale = gamma * lax.rsqrt(var + _EPS)
    shift = beta - mean * scale
    return scale[None, :], shift[None, :]


def dense_layer_forward(x_nchw, params):
    """Forward of _DenseLayer. Input (N, Cin, H, W) -> output (N, Cin+Cout, H, W)."""
    N, Cin, H, W = x_nchw.shape
    Cmid = params["w1"].shape[1]
    Cout = params["w2"].shape[1]
    M = N * H * W
    assert (H * W) % 8 == 0, "per-image row block must be sublane aligned"

    x2d = jnp.transpose(x_nchw, (0, 2, 3, 1)).astype(jnp.float32).reshape(M, Cin)

    # ---- row tiling for the HBM-bound passes 1/2 ---------------------------
    if M <= _ROW_TILE:
        tm = _round_up(M, 8)
        grid_rows = 1
    else:
        tm = _ROW_TILE
        grid_rows = pl.cdiv(M, tm)
    M_pad = grid_rows * tm
    need_mask = M_pad != M
    if need_mask:
        x2d = jnp.pad(x2d, ((0, M_pad - M), (0, 0)))

    # Megacore: split the sequential row loop across 2 TensorCores (v7x) with
    # per-core partial-sum outputs when the row grid allows it.
    num_par = 2 if (grid_rows >= 2 and grid_rows % 2 == 0) else 1
    rows_per_par = grid_rows // num_par

    vmem_limit = _pick_vmem_limit()
    cparams_12 = pltpu.CompilerParams(
        dimension_semantics=("parallel", "arbitrary"),
        vmem_limit_bytes=vmem_limit)

    w1_bf16 = params["w1"].astype(jnp.bfloat16)
    w2_bf16 = params["w2"].astype(jnp.bfloat16)

    # ---- pass 1: BN1 batch statistics of x ---------------------------------
    sum_x, sq_x = pl.pallas_call(
        _channel_stats_kernel,
        out_shape=(jax.ShapeDtypeStruct((num_par, 1, Cin), jnp.float32),
                   jax.ShapeDtypeStruct((num_par, 1, Cin), jnp.float32)),
        grid=(num_par, rows_per_par),
        in_specs=[pl.BlockSpec((tm, Cin),
                               lambda p, i: (p * rows_per_par + i, 0))],
        out_specs=(pl.BlockSpec((1, 1, Cin), lambda p, i: (p, 0, 0)),
                   pl.BlockSpec((1, 1, Cin), lambda p, i: (p, 0, 0))),
        compiler_params=cparams_12,
    )(x2d)
    s1, h1 = _bn_scale_shift(sum_x, sq_x, M, params["g1"], params["b1"])

    # ---- pass 2: BN1 + ReLU + 1x1 conv (bf16 MXU), fused BN2 statistics ----
    y1_2d, sum_y1, sq_y1 = pl.pallas_call(
        functools.partial(_bn_relu_conv1x1_kernel,
                          rows_per_par, tm, M, need_mask),
        out_shape=(jax.ShapeDtypeStruct((M_pad, Cmid), jnp.bfloat16),
                   jax.ShapeDtypeStruct((num_par, 1, Cmid), jnp.float32),
                   jax.ShapeDtypeStruct((num_par, 1, Cmid), jnp.float32)),
        grid=(num_par, rows_per_par),
        in_specs=[pl.BlockSpec((tm, Cin),
                               lambda p, i: (p * rows_per_par + i, 0)),
                  pl.BlockSpec((1, Cin), lambda p, i: (0, 0)),
                  pl.BlockSpec((1, Cin), lambda p, i: (0, 0)),
                  pl.BlockSpec((Cin, Cmid), lambda p, i: (0, 0))],
        out_specs=(pl.BlockSpec((tm, Cmid),
                                lambda p, i: (p * rows_per_par + i, 0)),
                   pl.BlockSpec((1, 1, Cmid), lambda p, i: (p, 0, 0)),
                   pl.BlockSpec((1, 1, Cmid), lambda p, i: (p, 0, 0))),
        compiler_params=cparams_12,
    )(x2d, s1, h1, w1_bf16)
    s2, h2 = _bn_scale_shift(sum_y1, sq_y1, M, params["g2"], params["b2"])

    # ---- pass 3: BN2 + ReLU + 3x3 conv, one image per grid step ------------
    y2_2d = pl.pallas_call(
        functools.partial(_bn_relu_conv3x3_kernel, H, W),
        out_shape=jax.ShapeDtypeStruct((M, Cout), jnp.float32),
        grid=(N,),
        in_specs=[pl.BlockSpec((H * W, Cmid), lambda n: (n, 0)),
                  pl.BlockSpec((1, Cmid), lambda n: (0, 0)),
                  pl.BlockSpec((1, Cmid), lambda n: (0, 0)),
                  pl.BlockSpec((9 * Cmid, Cout), lambda n: (0, 0))],
        out_specs=pl.BlockSpec((H * W, Cout), lambda n: (n, 0)),
        scratch_shapes=[pltpu.VMEM((H + 2, W + 2, Cmid), jnp.float32),
                        pltpu.VMEM((2, H * W, 3 * Cmid), jnp.bfloat16)],
        compiler_params=pltpu.CompilerParams(
            dimension_semantics=("parallel",), vmem_limit_bytes=vmem_limit),
    )(y1_2d, s2, h2, w2_bf16)

    y_nchw = jnp.transpose(y2_2d.reshape(N, H, W, Cout), (0, 3, 1, 2))
    # torch.cat([x, y], dim=1)
    return jnp.concatenate([x_nchw, y_nchw], axis=1)


def _make_params(key, num_input_features, growth_rate, bn_size):
    Cin = num_input_features
    Cmid = bn_size * growth_rate
    Cout = growth_rate
    ks = jax.random.split(key, 6)
    w1 = jax.random.normal(ks[0], (Cin, Cmid), jnp.float32) / math.sqrt(Cin)
    w2_hwio = jax.random.normal(ks[1], (3, 3, Cmid, Cout), jnp.float32) / math.sqrt(9 * Cmid)
    params = {
        "w1": w1,                               # 1x1 conv weight, (Cin, Cmid)
        "g1": jax.random.normal(ks[2], (Cin,), jnp.float32) * 0.1 + 1.0,
        "b1": jax.random.normal(ks[3], (Cin,), jnp.float32) * 0.1,
        "w2": w2_hwio.reshape(9 * Cmid, Cout),  # 3x3 conv weight, im2col layout
        "g2": jax.random.normal(ks[4], (Cmid,), jnp.float32) * 0.1 + 1.0,
        "b2": jax.random.normal(ks[5], (Cmid,), jnp.float32) * 0.1,
    }
    return params, w2_hwio


def reference_forward(x_nchw, params, w2_hwio):
    """Pure-JAX f32 reference mirroring PyTorch training-mode _DenseLayer forward."""
    x = jnp.transpose(x_nchw, (0, 2, 3, 1))
    m1 = x.mean(axis=(0, 1, 2)); v1 = x.var(axis=(0, 1, 2))
    a1 = jax.nn.relu((x - m1) * lax.rsqrt(v1 + _EPS) * params["g1"] + params["b1"])
    y1 = jnp.einsum("nhwc,cd->nhwd", a1, params["w1"])
    m2 = y1.mean(axis=(0, 1, 2)); v2 = y1.var(axis=(0, 1, 2))
    a2 = jax.nn.relu((y1 - m2) * lax.rsqrt(v2 + _EPS) * params["g2"] + params["b2"])
    y2 = lax.conv_general_dilated(
        a2, w2_hwio, window_strides=(1, 1), padding=((1, 1), (1, 1)),
        dimension_numbers=("NHWC", "HWIO", "NHWC"))
    y = jnp.transpose(y2, (0, 3, 1, 2))
    return jnp.concatenate([x_nchw, y], axis=1)


if __name__ == "__main__":
    key = jax.random.PRNGKey(0)
    k_x, k_p = jax.random.split(key)

    N, Cin, H, W = 2, 8, 16, 16
    growth_rate, bn_size = 8, 4          # Cmid = 32, Cout = 8
    x = jax.random.normal(k_x, (N, Cin, H, W), jnp.float32)   # NCHW, like PyTorch
    params, w2_hwio = _make_params(k_p, Cin, growth_rate, bn_size)

    out = jax.block_until_ready(jax.jit(dense_layer_forward)(x, params))
    ref = jax.block_until_ready(reference_forward(x, params, w2_hwio))

    assert out.shape == (N, Cin + growth_rate, H, W), out.shape
    # bf16 MXU operands (f32 accumulate) vs. an all-f32 reference: tolerance
    # sized for ~0.4% relative bf16 input rounding through two matmuls + BN.
    np.testing.assert_allclose(np.asarray(out), np.asarray(ref),
                               rtol=3e-2, atol=3e-2)

    print("KERNEL_OK")
</pallas_src>

<mosaic_0001>
module attributes {stable_mosaic.version = 11 : i64} {
  func.func @_channel_stats_kernel(%arg0: i32, %arg1: i32, %arg2: memref<512x8xf32, #tpu.memory_space<vmem>>, %arg3: memref<1x1x8xf32, #tpu.memory_space<vmem>>, %arg4: memref<1x1x8xf32, #tpu.memory_space<vmem>>) attributes {dimension_semantics = [#tpu.dimension_semantics<parallel>, #tpu.dimension_semantics<arbitrary>], iteration_bounds = array<i64: 1, 1>, scalar_prefetch = 0 : i64, scratch_operands = 0 : i64, tpu.core_type = #tpu.core_type<tc>, window_params = [{transform_indices = @transform_0, window_bounds = array<i64: 512, 8>}, {transform_indices = @transform_1, window_bounds = array<i64: 1, 1, 8>}, {transform_indices = @transform_2, window_bounds = array<i64: 1, 1, 8>}]} {
    %c0 = arith.constant 0 : index
    %c0_0 = arith.constant 0 : index
    %0 = vector.load %arg2[%c0, %c0_0] : memref<512x8xf32, #tpu.memory_space<vmem>>, vector<512x8xf32>
    %cst = arith.constant dense<0.000000e+00> : vector<8xf32>
    %1 = vector.multi_reduction <add>, %0, %cst [0] : vector<512x8xf32> to vector<8xf32>
    %2 = vector.shape_cast %1 : vector<8xf32> to vector<1x8xf32>
    %3 = arith.mulf %0, %0 : vector<512x8xf32>
    %cst_1 = arith.constant dense<0.000000e+00> : vector<8xf32>
    %4 = vector.multi_reduction <add>, %3, %cst_1 [0] : vector<512x8xf32> to vector<8xf32>
    %5 = vector.shape_cast %4 : vector<8xf32> to vector<1x8xf32>
    %c0_i32 = arith.constant 0 : i32
    %6 = arith.cmpi eq, %arg1, %c0_i32 : i32
    %7 = arith.extui %6 : i1 to i32
    %c0_i32_2 = arith.constant 0 : i32
    %8 = arith.cmpi ne, %7, %c0_i32_2 : i32
    scf.if %8 {
      %c0_5 = arith.constant 0 : index
      %c0_6 = arith.constant 0 : index
      %c0_7 = arith.constant 0 : index
      %12 = vector.load %arg3[%c0_5, %c0_6, %c0_7] : memref<1x1x8xf32, #tpu.memory_space<vmem>>, vector<1x1x8xf32>
      %13 = vector.shape_cast %12 : vector<1x1x8xf32> to vector<1x8xf32>
      %14 = vector.shape_cast %2 : vector<1x8xf32> to vector<1x1x8xf32>
      tpu.vector_store %arg3[%c0_5, %c0_6, %c0_7], %14 {strides = array<i32>} : memref<1x1x8xf32, #tpu.memory_space<vmem>>, vector<1x1x8xf32>,
      %c0_8 = arith.constant 0 : index
      %c0_9 = arith.constant 0 : index
      %c0_10 = arith.constant 0 : index
      %15 = vector.load %arg4[%c0_8, %c0_9, %c0_10] : memref<1x1x8xf32, #tpu.memory_space<vmem>>, vector<1x1x8xf32>
      %16 = vector.shape_cast %15 : vector<1x1x8xf32> to vector<1x8xf32>
      %17 = vector.shape_cast %5 : vector<1x8xf32> to vector<1x1x8xf32>
      tpu.vector_store %arg4[%c0_8, %c0_9, %c0_10], %17 {strides = array<i32>} : memref<1x1x8xf32, #tpu.memory_space<vmem>>, vector<1x1x8xf32>,
    } else {
    }
    %c0_i32_3 = arith.constant 0 : i32
    %9 = arith.cmpi sgt, %arg1, %c0_i32_3 : i32
    %10 = arith.extui %9 : i1 to i32
    %c0_i32_4 = arith.constant 0 : i32
    %11 = arith.cmpi ne, %10, %c0_i32_4 : i32
    scf.if %11 {
      %c0_5 = arith.constant 0 : index
      %c0_6 = arith.constant 0 : index
      %c0_7 = arith.constant 0 : index
      %12 = vector.load %arg3[%c0_5, %c0_6, %c0_7] : memref<1x1x8xf32, #tpu.memory_space<vmem>>, vector<1x1x8xf32>
      %13 = vector.shape_cast %12 : vector<1x1x8xf32> to vector<1x8xf32>
      %14 = arith.addf %13, %2 : vector<1x8xf32>
      %c0_8 = arith.constant 0 : index
      %c0_9 = arith.constant 0 : index
      %c0_10 = arith.constant 0 : index
      %15 = vector.load %arg3[%c0_8, %c0_9, %c0_10] : memref<1x1x8xf32, #tpu.memory_space<vmem>>, vector<1x1x8xf32>
      %16 = vector.shape_cast %15 : vector<1x1x8xf32> to vector<1x8xf32>
      %17 = vector.shape_cast %14 : vector<1x8xf32> to vector<1x1x8xf32>
      tpu.vector_store %arg3[%c0_8, %c0_9, %c0_10], %17 {strides = array<i32>} : memref<1x1x8xf32, #tpu.memory_space<vmem>>, vector<1x1x8xf32>,
      %c0_11 = arith.constant 0 : index
      %c0_12 = arith.constant 0 : index
      %c0_13 = arith.constant 0 : index
      %18 = vector.load %arg4[%c0_11, %c0_12, %c0_13] : memref<1x1x8xf32, #tpu.memory_space<vmem>>, vector<1x1x8xf32>
      %19 = vector.shape_cast %18 : vector<1x1x8xf32> to vector<1x8xf32>
      %20 = arith.addf %19, %5 : vector<1x8xf32>
      %c0_14 = arith.constant 0 : index
      %c0_15 = arith.constant 0 : index
      %c0_16 = arith.constant 0 : index
      %21 = vector.load %arg4[%c0_14, %c0_15, %c0_16] : memref<1x1x8xf32, #tpu.memory_space<vmem>>, vector<1x1x8xf32>
      %22 = vector.shape_cast %21 : vector<1x1x8xf32> to vector<1x8xf32>
      %23 = vector.shape_cast %20 : vector<1x8xf32> to vector<1x1x8xf32>
      tpu.vector_store %arg4[%c0_14, %c0_15, %c0_16], %23 {strides = array<i32>} : memref<1x1x8xf32, #tpu.memory_space<vmem>>, vector<1x1x8xf32>,
    } else {
    }
    return
  }
  func.func @transform_0(%arg0: i32, %arg1: i32) -> (i32, i32) {
    %c1_i32 = arith.constant 1 : i32
    %0 = arith.muli %arg0, %c1_i32 : i32
    %1 = arith.addi %0, %arg1 : i32
    %c0_i32 = arith.constant 0 : i32
    %c0_i32_0 = arith.constant 0 : i32
    return %1, %c0_i32 : i32, i32
  }
  func.func @transform_1(%arg0: i32, %arg1: i32) -> (i32, i32, i32) {
    %c0_i32 = arith.constant 0 : i32
    %c0_i32_0 = arith.constant 0 : i32
    %c0_i32_1 = arith.constant 0 : i32
    return %arg0, %c0_i32, %c0_i32_0 : i32, i32, i32
  }
  func.func @transform_2(%arg0: i32, %arg1: i32) -> (i32, i32, i32) {
    %c0_i32 = arith.constant 0 : i32
    %c0_i32_0 = arith.constant 0 : i32
    %c0_i32_1 = arith.constant 0 : i32
    return %arg0, %c0_i32, %c0_i32_0 : i32, i32, i32
  }
}

module attributes {stable_mosaic.version = 11 : i64} {
  func.func @_bn_relu_conv3x3_kernel(%arg0: i32, %arg1: memref<256x32xbf16, #tpu.memory_space<vmem>>, %arg2: memref<1x32xf32, #tpu.memory_space<vmem>>, %arg3: memref<1x32xf32, #tpu.memory_space<vmem>>, %arg4: memref<288x8xbf16, #tpu.memory_space<vmem>>, %arg5: memref<256x8xf32, #tpu.memory_space<vmem>>, %arg6: memref<18x18x32xf32, #tpu.memory_space<vmem>>, %arg7: memref<2x256x96xbf16, #tpu.memory_space<vmem>>) attributes {dimension_semantics = [#tpu.dimension_semantics<parallel>], iteration_bounds = array<i64: 2>, scalar_prefetch = 0 : i64, scratch_operands = 2 : i64, tpu.core_type = #tpu.core_type<tc>, window_params = [{transform_indices = @transform_0, window_bounds = array<i64: 256, 32>}, {pipeline_mode = #tpu.pipeline_mode<synchronous>, transform_indices = @transform_1, window_bounds = array<i64: 1, 32>}, {pipeline_mode = #tpu.pipeline_mode<synchronous>, transform_indices = @transform_2, window_bounds = array<i64: 1, 32>}, {pipeline_mode = #tpu.pipeline_mode<synchronous>, transform_indices = @transform_3, window_bounds = array<i64: 288, 8>}, {transform_indices = @transform_4, window_bounds = array<i64: 256, 8>}]} {
    %c0 = arith.constant 0 : index
    %c0_0 = arith.constant 0 : index
    %0 = vector.load %arg1[%c0, %c0_0] : memref<256x32xbf16, #tpu.memory_space<vmem>>, vector<256x32xbf16>
    %1 = arith.extf %0 : vector<256x32xbf16> to vector<256x32xf32>
    %c0_1 = arith.constant 0 : index
    %c0_2 = arith.constant 0 : index
    %2 = vector.load %arg2[%c0_1, %c0_2] : memref<1x32xf32, #tpu.memory_space<vmem>>, vector<1x32xf32>
    %3 = vector.broadcast %2 : vector<1x32xf32> to vector<256x32xf32>
    %4 = arith.mulf %1, %3 : vector<256x32xf32>
    %c0_3 = arith.constant 0 : index
    %c0_4 = arith.constant 0 : index
    %5 = vector.load %arg3[%c0_3, %c0_4] : memref<1x32xf32, #tpu.memory_space<vmem>>, vector<1x32xf32>
    %6 = vector.broadcast %5 : vector<1x32xf32> to vector<256x32xf32>
    %7 = arith.addf %4, %6 : vector<256x32xf32>
    %cst = arith.constant 0.000000e+00 : f32
    %8 = vector.broadcast %cst : f32 to vector<256x32xf32>
    %9 = arith.maximumf %7, %8 : vector<256x32xf32>
    %cst_5 = arith.constant 0.000000e+00 : f32
    %10 = vector.broadcast %cst_5 : f32 to vector<1x18x32xf32>
    %c0_6 = arith.constant 0 : index
    %c0_7 = arith.constant 0 : index
    %c0_8 = arith.constant 0 : index
    %11 = vector.load %arg6[%c0_6, %c0_7, %c0_8] : memref<18x18x32xf32, #tpu.memory_space<vmem>>, vector<1x18x32xf32>
    tpu.vector_store %arg6[%c0_6, %c0_7, %c0_8], %10 {strides = array<i32>} : memref<18x18x32xf32, #tpu.memory_space<vmem>>, vector<1x18x32xf32>,
    %cst_9 = arith.constant 0.000000e+00 : f32
    %12 = vector.broadcast %cst_9 : f32 to vector<1x18x32xf32>
    %c17 = arith.constant 17 : index
    %c0_10 = arith.constant 0 : index
    %c0_11 = arith.constant 0 : index
    %13 = vector.load %arg6[%c17, %c0_10, %c0_11] : memref<18x18x32xf32, #tpu.memory_space<vmem>>, vector<1x18x32xf32>
    tpu.vector_store %arg6[%c17, %c0_10, %c0_11], %12 {strides = array<i32>} : memref<18x18x32xf32, #tpu.memory_space<vmem>>, vector<1x18x32xf32>,
    %cst_12 = arith.constant 0.000000e+00 : f32
    %14 = vector.broadcast %cst_12 : f32 to vector<18x1x32xf32>
    %c0_13 = arith.constant 0 : index
    %c0_14 = arith.constant 0 : index
    %c0_15 = arith.constant 0 : index
    %15 = vector.load %arg6[%c0_13, %c0_14, %c0_15] : memref<18x18x32xf32, #tpu.memory_space<vmem>>, vector<18x1x32xf32>
    tpu.vector_store %arg6[%c0_13, %c0_14, %c0_15], %14 {strides = array<i32>} : memref<18x18x32xf32, #tpu.memory_space<vmem>>, vector<18x1x32xf32>,
    %cst_16 = arith.constant 0.000000e+00 : f32
    %16 = vector.broadcast %cst_16 : f32 to vector<18x1x32xf32>
    %c0_17 = arith.constant 0 : index
    %c17_18 = arith.constant 17 : index
    %c0_19 = arith.constant 0 : index
    %17 = vector.load %arg6[%c0_17, %c17_18, %c0_19] : memref<18x18x32xf32, #tpu.memory_space<vmem>>, vector<18x1x32xf32>
    tpu.vector_store %arg6[%c0_17, %c17_18, %c0_19], %16 {strides = array<i32>} : memref<18x18x32xf32, #tpu.memory_space<vmem>>, vector<18x1x32xf32>,
    %18 = vector.shape_cast %9 : vector<256x32xf32> to vector<16x16x32xf32>
    %c1 = arith.constant 1 : index
    %c1_20 = arith.constant 1 : index
    %c0_21 = arith.constant 0 : index
    %19 = vector.load %arg6[%c1, %c1_20, %c0_21] : memref<18x18x32xf32, #tpu.memory_space<vmem>>, vector<16x16x32xf32>
    tpu.vector_store %arg6[%c1, %c1_20, %c0_21], %18 {strides = array<i32>} : memref<18x18x32xf32, #tpu.memory_space<vmem>>, vector<16x16x32xf32>,
    %cst_22 = arith.constant 0.000000e+00 : f32
    %20 = vector.broadcast %cst_22 : f32 to vector<256x8xf32>
    %c0_23 = arith.constant 0 : index
    %c0_24 = arith.constant 0 : index
    %c0_25 = arith.constant 0 : index
    %21 = vector.load %arg6[%c0_23, %c0_24, %c0_25] : memref<18x18x32xf32, #tpu.memory_space<vmem>>, vector<16x16x32xf32>
    %22 = vector.shape_cast %21 : vector<16x16x32xf32> to vector<256x32xf32>
    %23 = arith.truncf %22 : vector<256x32xf32> to vector<256x32xbf16>
    %c0_26 = arith.constant 0 : index
    %c0_27 = arith.constant 0 : index
    %c0_28 = arith.constant 0 : index
    %24 = vector.load %arg7[%c0_26, %c0_27, %c0_28] : memref<2x256x96xbf16, #tpu.memory_space<vmem>>, vector<1x256x32xbf16>
    %25 = vector.shape_cast %24 : vector<1x256x32xbf16> to vector<256x32xbf16>
    %26 = vector.shape_cast %23 : vector<256x32xbf16> to vector<1x256x32xbf16>
    tpu.vector_store %arg7[%c0_26, %c0_27, %c0_28], %26 {strides = array<i32>} : memref<2x256x96xbf16, #tpu.memory_space<vmem>>, vector<1x256x32xbf16>,
    %c0_29 = arith.constant 0 : index
    %c1_30 = arith.constant 1 : index
    %c0_31 = arith.constant 0 : index
    %27 = vector.load %arg6[%c0_29, %c1_30, %c0_31] : memref<18x18x32xf32, #tpu.memory_space<vmem>>, vector<16x16x32xf32>
    %28 = vector.shape_cast %27 : vector<16x16x32xf32> to vector<256x32xf32>
    %29 = arith.truncf %28 : vector<256x32xf32> to vector<256x32xbf16>
    %c0_32 = arith.constant 0 : index
    %c0_33 = arith.constant 0 : index
    %c32 = arith.constant 32 : index
    %30 = vector.load %arg7[%c0_32, %c0_33, %c32] : memref<2x256x96xbf16, #tpu.memory_space<vmem>>, vector<1x256x32xbf16>
    %31 = vector.shape_cast %30 : vector<1x256x32xbf16> to vector<256x32xbf16>
    %32 = vector.shape_cast %29 : vector<256x32xbf16> to vector<1x256x32xbf16>
    tpu.vector_store %arg7[%c0_32, %c0_33, %c32], %32 {strides = array<i32>} : memref<2x256x96xbf16, #tpu.memory_space<vmem>>, vector<1x256x32xbf16>,
    %c0_34 = arith.constant 0 : index
    %c2 = arith.constant 2 : index
    %c0_35 = arith.constant 0 : index
    %33 = vector.load %arg6[%c0_34, %c2, %c0_35] : memref<18x18x32xf32, #tpu.memory_space<vmem>>, vector<16x16x32xf32>
    %34 = vector.shape_cast %33 : vector<16x16x32xf32> to vector<256x32xf32>
    %35 = arith.truncf %34 : vector<256x32xf32> to vector<256x32xbf16>
    %c0_36 = arith.constant 0 : index
    %c0_37 = arith.constant 0 : index
    %c64 = arith.constant 64 : index
    %36 = vector.load %arg7[%c0_36, %c0_37, %c64] : memref<2x256x96xbf16, #tpu.memory_space<vmem>>, vector<1x256x32xbf16>
    %37 = vector.shape_cast %36 : vector<1x256x32xbf16> to vector<256x32xbf16>
    %38 = vector.shape_cast %35 : vector<256x32xbf16> to vector<1x256x32xbf16>
    tpu.vector_store %arg7[%c0_36, %c0_37, %c64], %38 {strides = array<i32>} : memref<2x256x96xbf16, #tpu.memory_space<vmem>>, vector<1x256x32xbf16>,
    %c0_38 = arith.constant 0 : index
    %c0_39 = arith.constant 0 : index
    %c0_40 = arith.constant 0 : index
    %39 = vector.load %arg7[%c0_38, %c0_39, %c0_40] : memref<2x256x96xbf16, #tpu.memory_space<vmem>>, vector<1x256x96xbf16>
    %40 = vector.shape_cast %39 : vector<1x256x96xbf16> to vector<256x96xbf16>
    %c0_41 = arith.constant 0 : index
    %c0_42 = arith.constant 0 : index
    %41 = vector.load %arg4[%c0_41, %c0_42] : memref<288x8xbf16, #tpu.memory_space<vmem>>, vector<96x8xbf16>
    %cst_43 = arith.constant dense<0.000000e+00> : vector<256x8xf32>
    %42 = tpu.matmul %40, %41, %cst_43 {dimension_numbers = #tpu.dot_dimension_numbers<[1], [0], [0], [1], [0, 0, 1, 1], [], []>} : vector<256x96xbf16>, vector<96x8xbf16>, vector<256x8xf32> -> vector<256x8xf32>
    %43 = arith.addf %20, %42 : vector<256x8xf32>
    %c1_44 = arith.constant 1 : index
    %c0_45 = arith.constant 0 : index
    %c0_46 = arith.constant 0 : index
    %44 = vector.load %arg6[%c1_44, %c0_45, %c0_46] : memref<18x18x32xf32, #tpu.memory_space<vmem>>, vector<16x16x32xf32>
    %45 = vector.shape_cast %44 : vector<16x16x32xf32> to vector<256x32xf32>
    %46 = arith.truncf %45 : vector<256x32xf32> to vector<256x32xbf16>
    %c1_47 = arith.constant 1 : index
    %c0_48 = arith.constant 0 : index
    %c0_49 = arith.constant 0 : index
    %47 = vector.load %arg7[%c1_47, %c0_48, %c0_49] : memref<2x256x96xbf16, #tpu.memory_space<vmem>>, vector<1x256x32xbf16>
    %48 = vector.shape_cast %47 : vector<1x256x32xbf16> to vector<256x32xbf16>
    %49 = vector.shape_cast %46 : vector<256x32xbf16> to vector<1x256x32xbf16>
    tpu.vector_store %arg7[%c1_47, %c0_48, %c0_49], %49 {strides = array<i32>} : memref<2x256x96xbf16, #tpu.memory_space<vmem>>, vector<1x256x32xbf16>,
    %c1_50 = arith.constant 1 : index
    %c1_51 = arith.constant 1 : index
    %c0_52 = arith.constant 0 : index
    %50 = vector.load %arg6[%c1_50, %c1_51, %c0_52] : memref<18x18x32xf32, #tpu.memory_space<vmem>>, vector<16x16x32xf32>
    %51 = vector.shape_cast %50 : vector<16x16x32xf32> to vector<256x32xf32>
    %52 = arith.truncf %51 : vector<256x32xf32> to vector<256x32xbf16>
    %c1_53 = arith.constant 1 : index
    %c0_54 = arith.constant 0 : index
    %c32_55 = arith.constant 32 : index
    %53 = vector.load %arg7[%c1_53, %c0_54, %c32_55] : memref<2x256x96xbf16, #tpu.memory_space<vmem>>, vector<1x256x32xbf16>
    %54 = vector.shape_cast %53 : vector<1x256x32xbf16> to vector<256x32xbf16>
    %55 = vector.shape_cast %52 : vector<256x32xbf16> to vector<1x256x32xbf16>
    tpu.vector_store %arg7[%c1_53, %c0_54, %c32_55], %55 {strides = array<i32>} : memref<2x256x96xbf16, #tpu.memory_space<vmem>>, vector<1x256x32xbf16>,
    %c1_56 = arith.constant 1 : index
    %c2_57 = arith.constant 2 : index
    %c0_58 = arith.constant 0 : index
    %56 = vector.load %arg6[%c1_56, %c2_57, %c0_58] : memref<18x18x32xf32, #tpu.memory_space<vmem>>, vector<16x16x32xf32>
    %57 = vector.shape_cast %56 : vector<16x16x32xf32> to vector<256x32xf32>
    %58 = arith.truncf %57 : vector<256x32xf32> to vector<256x32xbf16>
    %c1_59 = arith.constant 1 : index
    %c0_60 = arith.constant 0 : index
    %c64_61 = arith.constant 64 : index
    %59 = vector.load %arg7[%c1_59, %c0_60, %c64_61] : memref<2x256x96xbf16, #tpu.memory_space<vmem>>, vector<1x256x32xbf16>
    %60 = vector.shape_cast %59 : vector<1x256x32xbf16> to vector<256x32xbf16>
    %61 = vector.shape_cast %58 : vector<256x32xbf16> to vector<1x256x32xbf16>
    tpu.vector_store %arg7[%c1_59, %c0_60, %c64_61], %61 {strides = array<i32>} : memref<2x256x96xbf16, #tpu.memory_space<vmem>>, vector<1x256x32xbf16>,
    %c1_62 = arith.constant 1 : index
    %c0_63 = arith.constant 0 : index
    %c0_64 = arith.constant 0 : index
    %62 = vector.load %arg7[%c1_62, %c0_63, %c0_64] : memref<2x256x96xbf16, #tpu.memory_space<vmem>>, vector<1x256x96xbf16>
    %63 = vector.shape_cast %62 : vector<1x256x96xbf16> to vector<256x96xbf16>
    %c96 = arith.constant 96 : index
    %c0_65 = arith.constant 0 : index
    %64 = vector.load %arg4[%c96, %c0_65] : memref<288x8xbf16, #tpu.memory_space<vmem>>, vector<96x8xbf16>
    %cst_66 = arith.constant dense<0.000000e+00> : vector<256x8xf32>
    %65 = tpu.matmul %63, %64, %cst_66 {dimension_numbers = #tpu.dot_dimension_numbers<[1], [0], [0], [1], [0, 0, 1, 1], [], []>} : vector<256x96xbf16>, vector<96x8xbf16>, vector<256x8xf32> -> vector<256x8xf32>
    %66 = arith.addf %43, %65 : vector<256x8xf32>
    %c2_67 = arith.constant 2 : index
    %c0_68 = arith.constant 0 : index
    %c0_69 = arith.constant 0 : index
    %67 = vector.load %arg6[%c2_67, %c0_68, %c0_69] : memref<18x18x32xf32, #tpu.memory_space<vmem>>, vector<16x16x32xf32>
    %68 = vector.shape_cast %67 : vector<16x16x32xf32> to vector<256x32xf32>
    %69 = arith.truncf %68 : vector<256x32xf32> to vector<256x32xbf16>
    %c0_70 = arith.constant 0 : index
    %c0_71 = arith.constant 0 : index
    %c0_72 = arith.constant 0 : index
    %70 = vector.load %arg7[%c0_70, %c0_71, %c0_72] : memref<2x256x96xbf16, #tpu.memory_space<vmem>>, vector<1x256x32xbf16>
    %71 = vector.shape_cast %70 : vector<1x256x32xbf16> to vector<256x32xbf16>
    %72 = vector.shape_cast %69 : vector<256x32xbf16> to vector<1x256x32xbf16>
    tpu.vector_store %arg7[%c0_70, %c0_71, %c0_72], %72 {strides = array<i32>} : memref<2x256x96xbf16, #tpu.memory_space<vmem>>, vector<1x256x32xbf16>,
    %c2_73 = arith.constant 2 : index
    %c1_74 = arith.constant 1 : index
    %c0_75 = arith.constant 0 : index
    %73 = vector.load %arg6[%c2_73, %c1_74, %c0_75] : memref<18x18x32xf32, #tpu.memory_space<vmem>>, vector<16x16x32xf32>
    %74 = vector.shape_cast %73 : vector<16x16x32xf32> to vector<256x32xf32>
    %75 = arith.truncf %74 : vector<256x32xf32> to vector<256x32xbf16>
    %c0_76 = arith.constant 0 : index
    %c0_77 = arith.constant 0 : index
    %c32_78 = arith.constant 32 : index
    %76 = vector.load %arg7[%c0_76, %c0_77, %c32_78] : memref<2x256x96xbf16, #tpu.memory_space<vmem>>, vector<1x256x32xbf16>
    %77 = vector.shape_cast %76 : vector<1x256x32xbf16> to vector<256x32xbf16>
    %78 = vector.shape_cast %75 : vector<256x32xbf16> to vector<1x256x32xbf16>
    tpu.vector_store %arg7[%c0_76, %c0_77, %c32_78], %78 {strides = array<i32>} : memref<2x256x96xbf16, #tpu.memory_space<vmem>>, vector<1x256x32xbf16>,
    %c2_79 = arith.constant 2 : index
    %c2_80 = arith.constant 2 : index
    %c0_81 = arith.constant 0 : index
    %79 = vector.load %arg6[%c2_79, %c2_80, %c0_81] : memref<18x18x32xf32, #tpu.memory_space<vmem>>, vector<16x16x32xf32>
    %80 = vector.shape_cast %79 : vector<16x16x32xf32> to vector<256x32xf32>
    %81 = arith.truncf %80 : vector<256x32xf32> to vector<256x32xbf16>
    %c0_82 = arith.constant 0 : index
    %c0_83 = arith.constant 0 : index
    %c64_84 = arith.constant 64 : index
    %82 = vector.load %arg7[%c0_82, %c0_83, %c64_84] : memref<2x256x96xbf16, #tpu.memory_space<vmem>>, vector<1x256x32xbf16>
    %83 = vector.shape_cast %82 : vector<1x256x32xbf16> to vector<256x32xbf16>
    %84 = vector.shape_cast %81 : vector<256x32xbf16> to vector<1x256x32xbf16>
    tpu.vector_store %arg7[%c0_82, %c0_83, %c64_84], %84 {strides = array<i32>} : memref<2x256x96xbf16, #tpu.memory_space<vmem>>, vector<1x256x32xbf16>,
    %c0_85 = arith.constant 0 : index
    %c0_86 = arith.constant 0 : index
    %c0_87 = arith.constant 0 : index
    %85 = vector.load %arg7[%c0_85, %c0_86, %c0_87] : memref<2x256x96xbf16, #tpu.memory_space<vmem>>, vector<1x256x96xbf16>
    %86 = vector.shape_cast %85 : vector<1x256x96xbf16> to vector<256x96xbf16>
    %c192 = arith.constant 192 : index
    %c0_88 = arith.constant 0 : index
    %87 = vector.load %arg4[%c192, %c0_88] : memref<288x8xbf16, #tpu.memory_space<vmem>>, vector<96x8xbf16>
    %cst_89 = arith.constant dense<0.000000e+00> : vector<256x8xf32>
    %88 = tpu.matmul %86, %87, %cst_89 {dimension_numbers = #tpu.dot_dimension_numbers<[1], [0], [0], [1], [0, 0, 1, 1], [], []>} : vector<256x96xbf16>, vector<96x8xbf16>, vector<256x8xf32> -> vector<256x8xf32>
    %89 = arith.addf %66, %88 : vector<256x8xf32>
    %c0_90 = arith.constant 0 : index
    %c0_91 = arith.constant 0 : index
    %90 = vector.load %arg5[%c0_90, %c0_91] : memref<256x8xf32, #tpu.memory_space<vmem>>, vector<256x8xf32>
    tpu.vector_store %arg5[%c0_90, %c0_91], %89 {strides = array<i32>} : memref<256x8xf32, #tpu.memory_space<vmem>>, vector<256x8xf32>,
    return
  }
  func.func @transform_0(%arg0: i32) -> (i32, i32) {
    %c0_i32 = arith.constant 0 : i32
    %c0_i32_0 = arith.constant 0 : i32
    return %arg0, %c0_i32 : i32, i32
  }
  func.func @transform_1(%arg0: i32) -> (i32, i32) {
    %c0_i32 = arith.constant 0 : i32
    %c0_i32_0 = arith.constant 0 : i32
    %c0_i32_1 = arith.constant 0 : i32
    return %c0_i32, %c0_i32_0 : i32, i32
  }
  func.func @transform_2(%arg0: i32) -> (i32, i32) {
    %c0_i32 = arith.constant 0 : i32
    %c0_i32_0 = arith.constant 0 : i32
    %c0_i32_1 = arith.constant 0 : i32
    return %c0_i32, %c0_i32_0 : i32, i32
  }
  func.func @transform_3(%arg0: i32) -> (i32, i32) {
    %c0_i32 = arith.constant 0 : i32
    %c0_i32_0 = arith.constant 0 : i32
    %c0_i32_1 = arith.constant 0 : i32
    return %c0_i32, %c0_i32_0 : i32, i32
  }
  func.func @transform_4(%arg0: i32) -> (i32, i32) {
    %c0_i32 = arith.constant 0 : i32
    %c0_i32_0 = arith.constant 0 : i32
    return %arg0, %c0_i32 : i32, i32
  }
}

module attributes {stable_mosaic.version = 11 : i64} {
  func.func @_bn_relu_conv1x1_kernel(%arg0: i32, %arg1: i32, %arg2: memref<512x8xf32, #tpu.memory_space<vmem>>, %arg3: memref<1x8xf32, #tpu.memory_space<vmem>>, %arg4: memref<1x8xf32, #tpu.memory_space<vmem>>, %arg5: memref<8x32xbf16, #tpu.memory_space<vmem>>, %arg6: memref<512x32xbf16, #tpu.memory_space<vmem>>, %arg7: memref<1x1x32xf32, #tpu.memory_space<vmem>>, %arg8: memref<1x1x32xf32, #tpu.memory_space<vmem>>) attributes {dimension_semantics = [#tpu.dimension_semantics<parallel>, #tpu.dimension_semantics<arbitrary>], iteration_bounds = array<i64: 1, 1>, scalar_prefetch = 0 : i64, scratch_operands = 0 : i64, tpu.core_type = #tpu.core_type<tc>, window_params = [{transform_indices = @transform_0, window_bounds = array<i64: 512, 8>}, {pipeline_mode = #tpu.pipeline_mode<synchronous>, transform_indices = @transform_1, window_bounds = array<i64: 1, 8>}, {pipeline_mode = #tpu.pipeline_mode<synchronous>, transform_indices = @transform_2, window_bounds = array<i64: 1, 8>}, {pipeline_mode = #tpu.pipeline_mode<synchronous>, transform_indices = @transform_3, window_bounds = array<i64: 8, 32>}, {transform_indices = @transform_4, window_bounds = array<i64: 512, 32>}, {transform_indices = @transform_5, window_bounds = array<i64: 1, 1, 32>}, {transform_indices = @transform_6, window_bounds = array<i64: 1, 1, 32>}]} {
    %c0 = arith.constant 0 : index
    %c0_0 = arith.constant 0 : index
    %0 = vector.load %arg2[%c0, %c0_0] : memref<512x8xf32, #tpu.memory_space<vmem>>, vector<512x8xf32>
    %c0_1 = arith.constant 0 : index
    %c0_2 = arith.constant 0 : index
    %1 = vector.load %arg3[%c0_1, %c0_2] : memref<1x8xf32, #tpu.memory_space<vmem>>, vector<1x8xf32>
    %2 = vector.broadcast %1 : vector<1x8xf32> to vector<512x8xf32>
    %3 = arith.mulf %0, %2 : vector<512x8xf32>
    %c0_3 = arith.constant 0 : index
    %c0_4 = arith.constant 0 : index
    %4 = vector.load %arg4[%c0_3, %c0_4] : memref<1x8xf32, #tpu.memory_space<vmem>>, vector<1x8xf32>
    %5 = vector.broadcast %4 : vector<1x8xf32> to vector<512x8xf32>
    %6 = arith.addf %3, %5 : vector<512x8xf32>
    %cst = arith.constant 0.000000e+00 : f32
    %7 = vector.broadcast %cst : f32 to vector<512x8xf32>
    %8 = arith.maximumf %6, %7 : vector<512x8xf32>
    %9 = arith.truncf %8 : vector<512x8xf32> to vector<512x8xbf16>
    %c0_5 = arith.constant 0 : index
    %c0_6 = arith.constant 0 : index
    %10 = vector.load %arg5[%c0_5, %c0_6] : memref<8x32xbf16, #tpu.memory_space<vmem>>, vector<8x32xbf16>
    %cst_7 = arith.constant dense<0.000000e+00> : vector<512x32xf32>
    %11 = tpu.matmul %9, %10, %cst_7 {dimension_numbers = #tpu.dot_dimension_numbers<[1], [0], [0], [1], [0, 0, 1, 1], [], []>} : vector<512x8xbf16>, vector<8x32xbf16>, vector<512x32xf32> -> vector<512x32xf32>
    %12 = arith.truncf %11 : vector<512x32xf32> to vector<512x32xbf16>
    %c0_8 = arith.constant 0 : index
    %c0_9 = arith.constant 0 : index
    %13 = vector.load %arg6[%c0_8, %c0_9] : memref<512x32xbf16, #tpu.memory_space<vmem>>, vector<512x32xbf16>
    tpu.vector_store %arg6[%c0_8, %c0_9], %12 {strides = array<i32>} : memref<512x32xbf16, #tpu.memory_space<vmem>>, vector<512x32xbf16>,
    %cst_10 = arith.constant dense<0.000000e+00> : vector<32xf32>
    %14 = vector.multi_reduction <add>, %11, %cst_10 [0] : vector<512x32xf32> to vector<32xf32>
    %15 = vector.shape_cast %14 : vector<32xf32> to vector<1x32xf32>
    %16 = arith.mulf %11, %11 : vector<512x32xf32>
    %cst_11 = arith.constant dense<0.000000e+00> : vector<32xf32>
    %17 = vector.multi_reduction <add>, %16, %cst_11 [0] : vector<512x32xf32> to vector<32xf32>
    %18 = vector.shape_cast %17 : vector<32xf32> to vector<1x32xf32>
    %c0_i32 = arith.constant 0 : i32
    %19 = arith.cmpi eq, %arg1, %c0_i32 : i32
    %20 = arith.extui %19 : i1 to i32
    %c0_i32_12 = arith.constant 0 : i32
    %21 = arith.cmpi ne, %20, %c0_i32_12 : i32
    scf.if %21 {
      %c0_15 = arith.constant 0 : index
      %c0_16 = arith.constant 0 : index
      %c0_17 = arith.constant 0 : index
      %25 = vector.load %arg7[%c0_15, %c0_16, %c0_17] : memref<1x1x32xf32, #tpu.memory_space<vmem>>, vector<1x1x32xf32>
      %26 = vector.shape_cast %25 : vector<1x1x32xf32> to vector<1x32xf32>
      %27 = vector.shape_cast %15 : vector<1x32xf32> to vector<1x1x32xf32>
      tpu.vector_store %arg7[%c0_15, %c0_16, %c0_17], %27 {strides = array<i32>} : memref<1x1x32xf32, #tpu.memory_space<vmem>>, vector<1x1x32xf32>,
      %c0_18 = arith.constant 0 : index
      %c0_19 = arith.constant 0 : index
      %c0_20 = arith.constant 0 : index
      %28 = vector.load %arg8[%c0_18, %c0_19, %c0_20] : memref<1x1x32xf32, #tpu.memory_space<vmem>>, vector<1x1x32xf32>
      %29 = vector.shape_cast %28 : vector<1x1x32xf32> to vector<1x32xf32>
      %30 = vector.shape_cast %18 : vector<1x32xf32> to vector<1x1x32xf32>
      tpu.vector_store %arg8[%c0_18, %c0_19, %c0_20], %30 {strides = array<i32>} : memref<1x1x32xf32, #tpu.memory_space<vmem>>, vector<1x1x32xf32>,
    } else {
    }
    %c0_i32_13 = arith.constant 0 : i32
    %22 = arith.cmpi sgt, %arg1, %c0_i32_13 : i32
    %23 = arith.extui %22 : i1 to i32
    %c0_i32_14 = arith.constant 0 : i32
    %24 = arith.cmpi ne, %23, %c0_i32_14 : i32
    scf.if %24 {
      %c0_15 = arith.constant 0 : index
      %c0_16 = arith.constant 0 : index
      %c0_17 = arith.constant 0 : index
      %25 = vector.load %arg7[%c0_15, %c0_16, %c0_17] : memref<1x1x32xf32, #tpu.memory_space<vmem>>, vector<1x1x32xf32>
      %26 = vector.shape_cast %25 : vector<1x1x32xf32> to vector<1x32xf32>
      %27 = arith.addf %26, %15 : vector<1x32xf32>
      %c0_18 = arith.constant 0 : index
      %c0_19 = arith.constant 0 : index
      %c0_20 = arith.constant 0 : index
      %28 = vector.load %arg7[%c0_18, %c0_19, %c0_20] : memref<1x1x32xf32, #tpu.memory_space<vmem>>, vector<1x1x32xf32>
      %29 = vector.shape_cast %28 : vector<1x1x32xf32> to vector<1x32xf32>
      %30 = vector.shape_cast %27 : vector<1x32xf32> to vector<1x1x32xf32>
      tpu.vector_store %arg7[%c0_18, %c0_19, %c0_20], %30 {strides = array<i32>} : memref<1x1x32xf32, #tpu.memory_space<vmem>>, vector<1x1x32xf32>,
      %c0_21 = arith.constant 0 : index
      %c0_22 = arith.constant 0 : index
      %c0_23 = arith.constant 0 : index
      %31 = vector.load %arg8[%c0_21, %c0_22, %c0_23] : memref<1x1x32xf32, #tpu.memory_space<vmem>>, vector<1x1x32xf32>
      %32 = vector.shape_cast %31 : vector<1x1x32xf32> to vector<1x32xf32>
      %33 = arith.addf %32, %18 : vector<1x32xf32>
      %c0_24 = arith.constant 0 : index
      %c0_25 = arith.constant 0 : index
      %c0_26 = arith.constant 0 : index
      %34 = vector.load %arg8[%c0_24, %c0_25, %c0_26] : memref<1x1x32xf32, #tpu.memory_space<vmem>>, vector<1x1x32xf32>
      %35 = vector.shape_cast %34 : vector<1x1x32xf32> to vector<1x32xf32>
      %36 = vector.shape_cast %33 : vector<1x32xf32> to vector<1x1x32xf32>
      tpu.vector_store %arg8[%c0_24, %c0_25, %c0_26], %36 {strides = array<i32>} : memref<1x1x32xf32, #tpu.memory_space<vmem>>, vector<1x1x32xf32>,
    } else {
    }
    return
  }
  func.func @transform_0(%arg0: i32, %arg1: i32) -> (i32, i32) {
    %c1_i32 = arith.constant 1 : i32
    %0 = arith.muli %arg0, %c1_i32 : i32
    %1 = arith.addi %0, %arg1 : i32
    %c0_i32 = arith.constant 0 : i32
    %c0_i32_0 = arith.constant 0 : i32
    return %1, %c0_i32 : i32, i32
  }
  func.func @transform_1(%arg0: i32, %arg1: i32) -> (i32, i32) {
    %c0_i32 = arith.constant 0 : i32
    %c0_i32_0 = arith.constant 0 : i32
    %c0_i32_1 = arith.constant 0 : i32
    return %c0_i32, %c0_i32_0 : i32, i32
  }
  func.func @transform_2(%arg0: i32, %arg1: i32) -> (i32, i32) {
    %c0_i32 = arith.constant 0 : i32
    %c0_i32_0 = arith.constant 0 : i32
    %c0_i32_1 = arith.constant 0 : i32
    return %c0_i32, %c0_i32_0 : i32, i32
  }
  func.func @transform_3(%arg0: i32, %arg1: i32) -> (i32, i32) {
    %c0_i32 = arith.constant 0 : i32
    %c0_i32_0 = arith.constant 0 : i32
    %c0_i32_1 = arith.constant 0 : i32
    return %c0_i32, %c0_i32_0 : i32, i32
  }
  func.func @transform_4(%arg0: i32, %arg1: i32) -> (i32, i32) {
    %c1_i32 = arith.constant 1 : i32
    %0 = arith.muli %arg0, %c1_i32 : i32
    %1 = arith.addi %0, %arg1 : i32
    %c0_i32 = arith.constant 0 : i32
    %c0_i32_0 = arith.constant 0 : i32
    return %1, %c0_i32 : i32, i32
  }
  func.func @transform_5(%arg0: i32, %arg1: i32) -> (i32, i32, i32) {
    %c0_i32 = arith.constant 0 : i32
    %c0_i32_0 = arith.constant 0 : i32
    %c0_i32_1 = arith.constant 0 : i32
    return %arg0, %c0_i32, %c0_i32_0 : i32, i32, i32
  }
  func.func @transform_6(%arg0: i32, %arg1: i32) -> (i32, i32, i32) {
    %c0_i32 = arith.constant 0 : i32
    %c0_i32_0 = arith.constant 0 : i32
    %c0_i32_1 = arith.constant 0 : i32
    return %arg0, %c0_i32, %c0_i32_0 : i32, i32, i32
  }
}

</mosaic_0001>

<llo_original>
// kernel: dense_layer_forward.3
$region0: #{dense_layer_forward.3}
  #allocation0 [shape = 'u32[]', space=smem, size = 0x4, offset = 0x4, fixed_abs, tag = 'smem constant byte address 0x4 - core index']
  #allocation1 [shape = 'u32[144,128]{1,0:T(1,128)}', space=vmem, size = 0x12000, scoped, tag = 'internal scratch']
  %s0 = inlined_call_operand.vmem [shape: f32[512,8], index: 0, kind: input, shape index: {}]
  %s1 = inlined_call_operand.vmem [shape: f32[1,1,8], index: 1, kind: output, shape index: {0}]
  %s2 = inlined_call_operand.vmem [shape: f32[1,1,8], index: 2, kind: output, shape index: {1}]
  %3 = xla_tuple %s1, %s2
  %s4 = sld [smem:[#allocation0]]
  $region30: #{dense_layer_forward.3} parent=0
    _
  %s6 = ssub.s32 1, %s4
  %s7 = scalar_select 0, %s6, %s4
  // Predicated region
  $region2: #{dense_layer_forward.3} parent=0 // pred_check
    _
  $region3: #{dense_layer_forward.3} parent=0 // pred_check_branch
    %9 = sbr.rel (0) target = $region5
  $region4: #{dense_layer_forward.3} parent=0 // pred_region
    %s10 = sadd.s32 0, 0
    %s11 = smul.u32 64, %s10
    %p12 = scmp.lt.s32.totalorder %s11, 63
    %s13 = scalar_select %p12, %s11, 63
    %s14 = smul.addr %s13, 8
    %s15 = scalar_lea.vmem %s0, %s14
    %s16 = sadd.s32 0, 0
    %s17 = smul.u32 64, %s16
  $region5: #{dense_layer_forward.3} parent=0 // pred_fallthru
    _
  %s18 = sadd.s32 0, 0
  %s19 = smul.u32 64, %s18
  %p20 = scmp.lt.s32.totalorder %s19, 63
  %s21 = scalar_select %p20, %s19, 63
  %s22 = smul.addr %s21, 8
  %s23 = scalar_lea.vmem %s0, %s22
  %s24 = sadd.s32 0, 0
  %s25 = smul.u32 64, %s24
  %p26 = scmp.lt.s32.totalorder %s25, 63
  %s27 = scalar_select %p26, %s25, 63
  %s28 = smul.addr %s27, 8
  %s29 = scalar_lea.vmem %s0, %s28
  %s30 = sadd.s32 0, 0
  %s31 = smul.u32 64, %s30
  %v32 = vld [vmem:[%s29] sm:$0xff]
  %v33 = vld [vmem:[%s29 + $0x8] sm:$0xff]
  %v34 = vld [vmem:[%s29 + $0x10] sm:$0xff]
  %v35 = vld [vmem:[%s29 + $0x18] sm:$0xff]
  %v36 = vld [vmem:[%s29 + $0x20] sm:$0xff]
  %v37 = vld [vmem:[%s29 + $0x28] sm:$0xff]
  %v38 = vld [vmem:[%s29 + $0x30] sm:$0xff]
  %v39 = vld [vmem:[%s29 + $0x38] sm:$0xff]
  %v40 = vld [vmem:[%s29 + $0x40] sm:$0xff]
  %v41 = vld [vmem:[%s29 + $0x48] sm:$0xff]
  %v42 = vld [vmem:[%s29 + $0x50] sm:$0xff]
  %v43 = vld [vmem:[%s29 + $0x58] sm:$0xff]
  %v44 = vld [vmem:[%s29 + $0x60] sm:$0xff]
  %v45 = vld [vmem:[%s29 + $0x68] sm:$0xff]
  %v46 = vld [vmem:[%s29 + $0x70] sm:$0xff]
  %v47 = vld [vmem:[%s29 + $0x78] sm:$0xff]
  %v48 = vld [vmem:[%s29 + $0x80] sm:$0xff]
  %v49 = vld [vmem:[%s29 + $0x88] sm:$0xff]
  %v50 = vld [vmem:[%s29 + $0x90] sm:$0xff]
  %v51 = vld [vmem:[%s29 + $0x98] sm:$0xff]
  %v52 = vld [vmem:[%s29 + $0xa0] sm:$0xff]
  %v53 = vld [vmem:[%s29 + $0xa8] sm:$0xff]
  %v54 = vld [vmem:[%s29 + $0xb0] sm:$0xff]
  %v55 = vld [vmem:[%s29 + $0xb8] sm:$0xff]
  %v56 = vld [vmem:[%s29 + $0xc0] sm:$0xff]
  %v57 = vld [vmem:[%s29 + $0xc8] sm:$0xff]
  %v58 = vld [vmem:[%s29 + $0xd0] sm:$0xff]
  %v59 = vld [vmem:[%s29 + $0xd8] sm:$0xff]
  %v60 = vld [vmem:[%s29 + $0xe0] sm:$0xff]
  %v61 = vld [vmem:[%s29 + $0xe8] sm:$0xff]
  %v62 = vld [vmem:[%s29 + $0xf0] sm:$0xff]
  %v63 = vld [vmem:[%s29 + $0xf8] sm:$0xff]
  %v64 = vld [vmem:[%s29 + $0x100] sm:$0xff]
  %v65 = vld [vmem:[%s29 + $0x108] sm:$0xff]
  %v66 = vld [vmem:[%s29 + $0x110] sm:$0xff]
  %v67 = vld [vmem:[%s29 + $0x118] sm:$0xff]
  %v68 = vld [vmem:[%s29 + $0x120] sm:$0xff]
  %v69 = vld [vmem:[%s29 + $0x128] sm:$0xff]
  %v70 = vld [vmem:[%s29 + $0x130] sm:$0xff]
  %v71 = vld [vmem:[%s29 + $0x138] sm:$0xff]
  %v72 = vld [vmem:[%s29 + $0x140] sm:$0xff]
  %v73 = vld [vmem:[%s29 + $0x148] sm:$0xff]
  %v74 = vld [vmem:[%s29 + $0x150] sm:$0xff]
  %v75 = vld [vmem:[%s29 + $0x158] sm:$0xff]
  %v76 = vld [vmem:[%s29 + $0x160] sm:$0xff]
  %v77 = vld [vmem:[%s29 + $0x168] sm:$0xff]
  %v78 = vld [vmem:[%s29 + $0x170] sm:$0xff]
  %v79 = vld [vmem:[%s29 + $0x178] sm:$0xff]
  %v80 = vld [vmem:[%s29 + $0x180] sm:$0xff]
  %v81 = vld [vmem:[%s29 + $0x188] sm:$0xff]
  %v82 = vld [vmem:[%s29 + $0x190] sm:$0xff]
  %v83 = vld [vmem:[%s29 + $0x198] sm:$0xff]
  %v84 = vld [vmem:[%s29 + $0x1a0] sm:$0xff]
  %v85 = vld [vmem:[%s29 + $0x1a8] sm:$0xff]
  %v86 = vld [vmem:[%s29 + $0x1b0] sm:$0xff]
  %v87 = vld [vmem:[%s29 + $0x1b8] sm:$0xff]
  %v88 = vld [vmem:[%s29 + $0x1c0] sm:$0xff]
  %v89 = vld [vmem:[%s29 + $0x1c8] sm:$0xff]
  %v90 = vld [vmem:[%s29 + $0x1d0] sm:$0xff]
  %v91 = vld [vmem:[%s29 + $0x1d8] sm:$0xff]
  %v92 = vld [vmem:[%s29 + $0x1e0] sm:$0xff]
  %v93 = vld [vmem:[%s29 + $0x1e8] sm:$0xff]
  %v94 = vld [vmem:[%s29 + $0x1f0] sm:$0xff]
  %v95 = vld [vmem:[%s29 + $0x1f8] sm:$0xff]
  %vm96 = vcmask 64512
  %v97 = vsel %vm96, %v32, 0.0
  %v98 = vsel %vm96, %v33, 0.0
  %v99 = vadd.f32 %v97, %v98
  %v100 = vsel %vm96, %v34, 0.0
  %v101 = vadd.f32 %v99, %v100
  %v102 = vsel %vm96, %v35, 0.0
  %v103 = vadd.f32 %v101, %v102
  %v104 = vsel %vm96, %v36, 0.0
  %v105 = vadd.f32 %v103, %v104
  %v106 = vsel %vm96, %v37, 0.0
  %v107 = vadd.f32 %v105, %v106
  %v108 = vsel %vm96, %v38, 0.0
  %v109 = vadd.f32 %v107, %v108
  %v110 = vsel %vm96, %v39, 0.0
  %v111 = vadd.f32 %v109, %v110
  %v112 = vsel %vm96, %v40, 0.0
  %v113 = vadd.f32 %v111, %v112
  %v114 = vsel %vm96, %v41, 0.0
  %v115 = vadd.f32 %v113, %v114
  %v116 = vsel %vm96, %v42, 0.0
  %v117 = vadd.f32 %v115, %v116
  %v118 = vsel %vm96, %v43, 0.0
  %v119 = vadd.f32 %v117, %v118
  %v120 = vsel %vm96, %v44, 0.0
  %v121 = vadd.f32 %v119, %v120
  %v122 = vsel %vm96, %v45, 0.0
  %v123 = vadd.f32 %v121, %v122
  %v124 = vsel %vm96, %v46, 0.0
  %v125 = vadd.f32 %v123, %v124
  %v126 = vsel %vm96, %v47, 0.0
  %v127 = vadd.f32 %v125, %v126
  %v128 = vsel %vm96, %v48, 0.0
  %v129 = vadd.f32 %v127, %v128
  %v130 = vsel %vm96, %v49, 0.0
  %v131 = vadd.f32 %v129, %v130
  %v132 = vsel %vm96, %v50, 0.0
  %v133 = vadd.f32 %v131, %v132
  %v134 = vsel %vm96, %v51, 0.0
  %v135 = vadd.f32 %v133, %v134
  %v136 = vsel %vm96, %v52, 0.0
  %v137 = vadd.f32 %v135, %v136
  %v138 = vsel %vm96, %v53, 0.0
  %v139 = vadd.f32 %v137, %v138
  %v140 = vsel %vm96, %v54, 0.0
  %v141 = vadd.f32 %v139, %v140
  %v142 = vsel %vm96, %v55, 0.0
  %v143 = vadd.f32 %v141, %v142
  %v144 = vsel %vm96, %v56, 0.0
  %v145 = vadd.f32 %v143, %v144
  %v146 = vsel %vm96, %v57, 0.0
  %v147 = vadd.f32 %v145, %v146
  %v148 = vsel %vm96, %v58, 0.0
  %v149 = vadd.f32 %v147, %v148
  %v150 = vsel %vm96, %v59, 0.0
  %v151 = vadd.f32 %v149, %v150
  %v152 = vsel %vm96, %v60, 0.0
  %v153 = vadd.f32 %v151, %v152
  %v154 = vsel %vm96, %v61, 0.0
  %v155 = vadd.f32 %v153, %v154
  %v156 = vsel %vm96, %v62, 0.0
  %v157 = vadd.f32 %v155, %v156
  %v158 = vsel %vm96, %v63, 0.0
  %v159 = vadd.f32 %v157, %v158
  %v160 = vsel %vm96, %v64, 0.0
  %v161 = vadd.f32 %v159, %v160
  %v162 = vsel %vm96, %v65, 0.0
  %v163 = vadd.f32 %v161, %v162
  %v164 = vsel %vm96, %v66, 0.0
  %v165 = vadd.f32 %v163, %v164
  %v166 = vsel %vm96, %v67, 0.0
  %v167 = vadd.f32 %v165, %v166
  %v168 = vsel %vm96, %v68, 0.0
  %v169 = vadd.f32 %v167, %v168
  %v170 = vsel %vm96, %v69, 0.0
  %v171 = vadd.f32 %v169, %v170
  %v172 = vsel %vm96, %v70, 0.0
  %v173 = vadd.f32 %v171, %v172
  %v174 = vsel %vm96, %v71, 0.0
  %v175 = vadd.f32 %v173, %v174
  %v176 = vsel %vm96, %v72, 0.0
  %v177 = vadd.f32 %v175, %v176
  %v178 = vsel %vm96, %v73, 0.0
  %v179 = vadd.f32 %v177, %v178
  %v180 = vsel %vm96, %v74, 0.0
  %v181 = vadd.f32 %v179, %v180
  %v182 = vsel %vm96, %v75, 0.0
  %v183 = vadd.f32 %v181, %v182
  %v184 = vsel %vm96, %v76, 0.0
  %v185 = vadd.f32 %v183, %v184
  %v186 = vsel %vm96, %v77, 0.0
  %v187 = vadd.f32 %v185, %v186
  %v188 = vsel %vm96, %v78, 0.0
  %v189 = vadd.f32 %v187, %v188
  %v190 = vsel %vm96, %v79, 0.0
  %v191 = vadd.f32 %v189, %v190
  %v192 = vsel %vm96, %v80, 0.0
  %v193 = vadd.f32 %v191, %v192
  %v194 = vsel %vm96, %v81, 0.0
  %v195 = vadd.f32 %v193, %v194
  %v196 = vsel %vm96, %v82, 0.0
  %v197 = vadd.f32 %v195, %v196
  %v198 = vsel %vm96, %v83, 0.0
  %v199 = vadd.f32 %v197, %v198
  %v200 = vsel %vm96, %v84, 0.0
  %v201 = vadd.f32 %v199, %v200
  %v202 = vsel %vm96, %v85, 0.0
  %v203 = vadd.f32 %v201, %v202
  %v204 = vsel %vm96, %v86, 0.0
  %v205 = vadd.f32 %v203, %v204
  %v206 = vsel %vm96, %v87, 0.0
  %v207 = vadd.f32 %v205, %v206
  %v208 = vsel %vm96, %v88, 0.0
  %v209 = vadd.f32 %v207, %v208
  %v210 = vsel %vm96, %v89, 0.0
  %v211 = vadd.f32 %v209, %v210
  %v212 = vsel %vm96, %v90, 0.0
  %v213 = vadd.f32 %v211, %v212
  %v214 = vsel %vm96, %v91, 0.0
  %v215 = vadd.f32 %v213, %v214
  %v216 = vsel %vm96, %v92, 0.0
  %v217 = vadd.f32 %v215, %v216
  %v218 = vsel %vm96, %v93, 0.0
  %v219 = vadd.f32 %v217, %v218
  %v220 = vsel %vm96, %v94, 0.0
  %v221 = vadd.f32 %v219, %v220
  %v222 = vsel %vm96, %v95, 0.0
  %v223 = vadd.f32 %v221, %v222
  %v224 = vrot.slane %v223, 4
  %v225 = vadd.f32 %v223, %v224
  %v226 = vrot.slane %v225, 2
  %v227 = vadd.f32 %v225, %v226
  %v228 = vrot.slane %v227, 1
  %v229 = vadd.f32 %v227, %v228
  %v230 = vmul.f32 %v32, %v32
  %v231 = vmul.f32 %v33, %v33
  %v232 = vmul.f32 %v34, %v34
  %v233 = vmul.f32 %v35, %v35
  %v234 = vmul.f32 %v36, %v36
  %v235 = vmul.f32 %v37, %v37
  %v236 = vmul.f32 %v38, %v38
  %v237 = vmul.f32 %v39, %v39
  %v238 = vmul.f32 %v40, %v40
  %v239 = vmul.f32 %v41, %v41
  %v240 = vmul.f32 %v42, %v42
  %v241 = vmul.f32 %v43, %v43
  %v242 = vmul.f32 %v44, %v44
  %v243 = vmul.f32 %v45, %v45
  %v244 = vmul.f32 %v46, %v46
  %v245 = vmul.f32 %v47, %v47
  %v246 = vmul.f32 %v48, %v48
  %v247 = vmul.f32 %v49, %v49
  %v248 = vmul.f32 %v50, %v50
  %v249 = vmul.f32 %v51, %v51
  %v250 = vmul.f32 %v52, %v52
  %v251 = vmul.f32 %v53, %v53
  %v252 = vmul.f32 %v54, %v54
  %v253 = vmul.f32 %v55, %v55
  %v254 = vmul.f32 %v56, %v56
  %v255 = vmul.f32 %v57, %v57
  %v256 = vmul.f32 %v58, %v58
  %v257 = vmul.f32 %v59, %v59
  %v258 = vmul.f32 %v60, %v60
  %v259 = vmul.f32 %v61, %v61
  %v260 = vmul.f32 %v62, %v62
  %v261 = vmul.f32 %v63, %v63
  %v262 = vmul.f32 %v64, %v64
  %v263 = vmul.f32 %v65, %v65
  %v264 = vmul.f32 %v66, %v66
  %v265 = vmul.f32 %v67, %v67
  %v266 = vmul.f32 %v68, %v68
  %v267 = vmul.f32 %v69, %v69
  %v268 = vmul.f32 %v70, %v70
  %v269 = vmul.f32 %v71, %v71
  %v270 = vmul.f32 %v72, %v72
  %v271 = vmul.f32 %v73, %v73
  %v272 = vmul.f32 %v74, %v74
  %v273 = vmul.f32 %v75, %v75
  %v274 = vmul.f32 %v76, %v76
  %v275 = vmul.f32 %v77, %v77
  %v276 = vmul.f32 %v78, %v78
  %v277 = vmul.f32 %v79, %v79
  %v278 = vmul.f32 %v80, %v80
  %v279 = vmul.f32 %v81, %v81
  %v280 = vmul.f32 %v82, %v82
  %v281 = vmul.f32 %v83, %v83
  %v282 = vmul.f32 %v84, %v84
  %v283 = vmul.f32 %v85, %v85
  %v284 = vmul.f32 %v86, %v86
  %v285 = vmul.f32 %v87, %v87
  %v286 = vmul.f32 %v88, %v88
  %v287 = vmul.f32 %v89, %v89
  %v288 = vmul.f32 %v90, %v90
  %v289 = vmul.f32 %v91, %v91
  %v290 = vmul.f32 %v92, %v92
  %v291 = vmul.f32 %v93, %v93
  %v292 = vmul.f32 %v94, %v94
  %v293 = vmul.f32 %v95, %v95
  %v294 = vsel %vm96, %v230, 0.0
  %v295 = vsel %vm96, %v231, 0.0
  %v296 = vadd.f32 %v294, %v295
  %v297 = vsel %vm96, %v232, 0.0
  %v298 = vadd.f32 %v296, %v297
  %v299 = vsel %vm96, %v233, 0.0
  %v300 = vadd.f32 %v298, %v299
  %v301 = vsel %vm96, %v234, 0.0
  %v302 = vadd.f32 %v300, %v301
  %v303 = vsel %vm96, %v235, 0.0
  %v304 = vadd.f32 %v302, %v303
  %v305 = vsel %vm96, %v236, 0.0
  %v306 = vadd.f32 %v304, %v305
  %v307 = vsel %vm96, %v237, 0.0
  %v308 = vadd.f32 %v306, %v307
  %v309 = vsel %vm96, %v238, 0.0
  %v310 = vadd.f32 %v308, %v309
  %v311 = vsel %vm96, %v239, 0.0
  %v312 = vadd.f32 %v310, %v311
  %v313 = vsel %vm96, %v240, 0.0
  %v314 = vadd.f32 %v312, %v313
  %v315 = vsel %vm96, %v241, 0.0
  %v316 = vadd.f32 %v314, %v315
  %v317 = vsel %vm96, %v242, 0.0
  %v318 = vadd.f32 %v316, %v317
  %v319 = vsel %vm96, %v243, 0.0
  %v320 = vadd.f32 %v318, %v319
  %v321 = vsel %vm96, %v244, 0.0
  %v322 = vadd.f32 %v320, %v321
  %v323 = vsel %vm96, %v245, 0.0
  %v324 = vadd.f32 %v322, %v323
  %v325 = vsel %vm96, %v246, 0.0
  %v326 = vadd.f32 %v324, %v325
  %v327 = vsel %vm96, %v247, 0.0
  %v328 = vadd.f32 %v326, %v327
  %v329 = vsel %vm96, %v248, 0.0
  %v330 = vadd.f32 %v328, %v329
  %v331 = vsel %vm96, %v249, 0.0
  %v332 = vadd.f32 %v330, %v331
  %v333 = vsel %vm96, %v250, 0.0
  %v334 = vadd.f32 %v332, %v333
  %v335 = vsel %vm96, %v251, 0.0
  %v336 = vadd.f32 %v334, %v335
  %v337 = vsel %vm96, %v252, 0.0
  %v338 = vadd.f32 %v336, %v337
  %v339 = vsel %vm96, %v253, 0.0
  %v340 = vadd.f32 %v338, %v339
  %v341 = vsel %vm96, %v254, 0.0
  %v342 = vadd.f32 %v340, %v341
  %v343 = vsel %vm96, %v255, 0.0
  %v344 = vadd.f32 %v342, %v343
  %v345 = vsel %vm96, %v256, 0.0
  %v346 = vadd.f32 %v344, %v345
  %v347 = vsel %vm96, %v257, 0.0
  %v348 = vadd.f32 %v346, %v347
  %v349 = vsel %vm96, %v258, 0.0
  %v350 = vadd.f32 %v348, %v349
  %v351 = vsel %vm96, %v259, 0.0
  %v352 = vadd.f32 %v350, %v351
  %v353 = vsel %vm96, %v260, 0.0
  %v354 = vadd.f32 %v352, %v353
  %v355 = vsel %vm96, %v261, 0.0
  %v356 = vadd.f32 %v354, %v355
  %v357 = vsel %vm96, %v262, 0.0
  %v358 = vadd.f32 %v356, %v357
  %v359 = vsel %vm96, %v263, 0.0
  %v360 = vadd.f32 %v358, %v359
  %v361 = vsel %vm96, %v264, 0.0
  %v362 = vadd.f32 %v360, %v361
  %v363 = vsel %vm96, %v265, 0.0
  %v364 = vadd.f32 %v362, %v363
  %v365 = vsel %vm96, %v266, 0.0
  %v366 = vadd.f32 %v364, %v365
  %v367 = vsel %vm96, %v267, 0.0
  %v368 = vadd.f32 %v366, %v367
  %v369 = vsel %vm96, %v268, 0.0
  %v370 = vadd.f32 %v368, %v369
  %v371 = vsel %vm96, %v269, 0.0
  %v372 = vadd.f32 %v370, %v371
  %v373 = vsel %vm96, %v270, 0.0
  %v374 = vadd.f32 %v372, %v373
  %v375 = vsel %vm96, %v271, 0.0
  %v376 = vadd.f32 %v374, %v375
  %v377 = vsel %vm96, %v272, 0.0
  %v378 = vadd.f32 %v376, %v377
  %v379 = vsel %vm96, %v273, 0.0
  %v380 = vadd.f32 %v378, %v379
  %v381 = vsel %vm96, %v274, 0.0
  %v382 = vadd.f32 %v380, %v381
  %v383 = vsel %vm96, %v275, 0.0
  %v384 = vadd.f32 %v382, %v383
  %v385 = vsel %vm96, %v276, 0.0
  %v386 = vadd.f32 %v384, %v385
  %v387 = vsel %vm96, %v277, 0.0
  %v388 = vadd.f32 %v386, %v387
  %v389 = vsel %vm96, %v278, 0.0
  %v390 = vadd.f32 %v388, %v389
  %v391 = vsel %vm96, %v279, 0.0
  %v392 = vadd.f32 %v390, %v391
  %v393 = vsel %vm96, %v280, 0.0
  %v394 = vadd.f32 %v392, %v393
  %v395 = vsel %vm96, %v281, 0.0
  %v396 = vadd.f32 %v394, %v395
  %v397 = vsel %vm96, %v282, 0.0
  %v398 = vadd.f32 %v396, %v397
  %v399 = vsel %vm96, %v283, 0.0
  %v400 = vadd.f32 %v398, %v399
  %v401 = vsel %vm96, %v284, 0.0
  %v402 = vadd.f32 %v400, %v401
  %v403 = vsel %vm96, %v285, 0.0
  %v404 = vadd.f32 %v402, %v403
  %v405 = vsel %vm96, %v286, 0.0
  %v406 = vadd.f32 %v404, %v405
  %v407 = vsel %vm96, %v287, 0.0
  %v408 = vadd.f32 %v406, %v407
  %v409 = vsel %vm96, %v288, 0.0
  %v410 = vadd.f32 %v408, %v409
  %v411 = vsel %vm96, %v289, 0.0
  %v412 = vadd.f32 %v410, %v411
  %v413 = vsel %vm96, %v290, 0.0
  %v414 = vadd.f32 %v412, %v413
  %v415 = vsel %vm96, %v291, 0.0
  %v416 = vadd.f32 %v414, %v415
  %v417 = vsel %vm96, %v292, 0.0
  %v418 = vadd.f32 %v416, %v417
  %v419 = vsel %vm96, %v293, 0.0
  %v420 = vadd.f32 %v418, %v419
  %v421 = vrot.slane %v420, 4
  %v422 = vadd.f32 %v420, %v421
  %v423 = vrot.slane %v422, 2
  %v424 = vadd.f32 %v422, %v423
  %v425 = vrot.slane %v424, 1
  %v426 = vadd.f32 %v424, %v425
  %p427 = scmp.eq.s32.totalorder 0, 0
  // Predicated region
  $region6: #{dense_layer_forward.3} parent=0 // pred_check
    %p428 = pneg %p427
  $region7: #{dense_layer_forward.3} parent=0 // pred_check_branch
    %430 = sbr.rel (%p428) target = $region9
  $region8: #{dense_layer_forward.3} parent=0 // pred_region
    %vm431 = vcmask 57344
    %432 = vst.msk [vmem:[%s1] sm:$0x1] %vm431, %v229
    %433 = vst.msk [vmem:[%s2] sm:$0x1] %vm431, %v426
  $region9: #{dense_layer_forward.3} parent=0 // pred_fallthru
    _
  %p434 = scmp.gt.s32.totalorder 0, 0
  // Predicated region
  $region10: #{dense_layer_forward.3} parent=0 // pred_check
    %p435 = pneg %p434
  $region11: #{dense_layer_forward.3} parent=0 // pred_check_branch
    %437 = sbr.rel (%p435) target = $region13
  $region12: #{dense_layer_forward.3} parent=0 // pred_region
    %v438 = vld [vmem:[%s1] sm:$0x1]
    %v439 = vadd.f32 %v438, %v229
    %vm440 = vcmask 57344
    %441 = vst.msk [vmem:[%s1] sm:$0x1] %vm440, %v439
    %v442 = vld [vmem:[%s2] sm:$0x1]
    %v443 = vadd.f32 %v442, %v426
    %444 = vst.msk [vmem:[%s2] sm:$0x1] %vm440, %v443
  $region13: #{dense_layer_forward.3} parent=0 // pred_fallthru
    _
  // Predicated region
  $region14: #{dense_layer_forward.3} parent=0 // pred_check
    _
  $region15: #{dense_layer_forward.3} parent=0 // pred_check_branch
    %446 = sbr.rel (0) target = $region17
  $region16: #{dense_layer_forward.3} parent=0 // pred_region
    _
  $region17: #{dense_layer_forward.3} parent=0 // pred_fallthru
    _
  // Predicated region
  $region18: #{dense_layer_forward.3} parent=0 // pred_check
    _
  $region19: #{dense_layer_forward.3} parent=0 // pred_check_branch
    %448 = sbr.rel (0) target = $region21
  $region20: #{dense_layer_forward.3} parent=0 // pred_region
    _
  $region21: #{dense_layer_forward.3} parent=0 // pred_fallthru
    _
  // Predicated region
  $region22: #{dense_layer_forward.3} parent=0 // pred_check
    _
  $region23: #{dense_layer_forward.3} parent=0 // pred_check_branch
    %450 = sbr.rel (0) target = $region25
  $region24: #{dense_layer_forward.3} parent=0 // pred_region
    _
  $region25: #{dense_layer_forward.3} parent=0 // pred_fallthru
    _
  // Predicated region
  $region26: #{dense_layer_forward.3} parent=0 // pred_check
    _
  $region27: #{dense_layer_forward.3} parent=0 // pred_check_branch
    %452 = sbr.rel (0) target = $region29
  $region28: #{dense_layer_forward.3} parent=0 // pred_region
    _
  $region29: #{dense_layer_forward.3} parent=0 // pred_fallthru
    _

// kernel: dense_layer_forward.4
$region0: #{dense_layer_forward.4}
  #allocation0 [shape = 'u32[]', space=smem, size = 0x4, offset = 0x4, fixed_abs, tag = 'smem constant byte address 0x4 - core index']
  #allocation1 [shape = 'u32[144,128]{1,0:T(1,128)}', space=vmem, size = 0x12000, scoped, tag = 'internal scratch']
  %s0 = inlined_call_operand.vmem [shape: f32[512,8], index: 0, kind: input, shape index: {}]
  %s1 = inlined_call_operand.vmem [shape: f32[1,8], index: 1, kind: input, shape index: {}]
  %s2 = inlined_call_operand.vmem [shape: f32[1,8], index: 2, kind: input, shape index: {}]
  %s3 = inlined_call_operand.vmem [shape: bf16[8,32], index: 3, kind: input, shape index: {}]
  %s4 = inlined_call_operand.vmem [shape: bf16[512,32], index: 4, kind: output, shape index: {0}]
  %s5 = inlined_call_operand.vmem [shape: f32[1,1,32], index: 5, kind: output, shape index: {1}]
  %s6 = inlined_call_operand.vmem [shape: f32[1,1,32], index: 6, kind: output, shape index: {2}]
  %7 = xla_tuple %s4, %s5, %s6
  %s8 = sld [smem:[#allocation0]]
  $region50: #{dense_layer_forward.4} parent=0
    _
  %s10 = ssub.s32 1, %s8
  %s11 = scalar_select 0, %s10, %s8
  // Predicated region
  $region2: #{dense_layer_forward.4} parent=0 // pred_check
    _
  $region3: #{dense_layer_forward.4} parent=0 // pred_check_branch
    %13 = sbr.rel (0) target = $region5
  $region4: #{dense_layer_forward.4} parent=0 // pred_region
    %s14 = sadd.s32 0, 0
    %s15 = smul.u32 64, %s14
    %p16 = scmp.lt.s32.totalorder %s15, 63
    %s17 = scalar_select %p16, %s15, 63
    %s18 = smul.addr %s17, 8
    %s19 = scalar_lea.vmem %s0, %s18
    %s20 = sadd.s32 0, 0
    %s21 = smul.u32 64, %s20
  $region5: #{dense_layer_forward.4} parent=0 // pred_fallthru
    _
  // Predicated region
  $region6: #{dense_layer_forward.4} parent=0 // pred_check
    _
  $region7: #{dense_layer_forward.4} parent=0 // pred_check_branch
    %23 = sbr.rel (0) target = $region9
  $region8: #{dense_layer_forward.4} parent=0 // pred_region
    _
  $region9: #{dense_layer_forward.4} parent=0 // pred_fallthru
    _
  // Predicated region
  $region10: #{dense_layer_forward.4} parent=0 // pred_check
    _
  $region11: #{dense_layer_forward.4} parent=0 // pred_check_branch
    %25 = sbr.rel (0) target = $region13
  $region12: #{dense_layer_forward.4} parent=0 // pred_region
    _
  $region13: #{dense_layer_forward.4} parent=0 // pred_fallthru
    _
  // Predicated region
  $region14: #{dense_layer_forward.4} parent=0 // pred_check
    _
  $region15: #{dense_layer_forward.4} parent=0 // pred_check_branch
    %27 = sbr.rel (0) target = $region17
  $region16: #{dense_layer_forward.4} parent=0 // pred_region
    _
  $region17: #{dense_layer_forward.4} parent=0 // pred_fallthru
    _
  %s28 = sadd.s32 0, 0
  %s29 = smul.u32 64, %s28
  %p30 = scmp.lt.s32.totalorder %s29, 63
  %s31 = scalar_select %p30, %s29, 63
  %s32 = smul.addr %s31, 8
  %s33 = scalar_lea.vmem %s0, %s32
  %s34 = sadd.s32 0, 0
  %s35 = smul.u32 64, %s34
  %p36 = scmp.lt.s32.totalorder %s35, 63
  %s37 = scalar_select %p36, %s35, 63
  %s38 = smul.addr %s37, 4
  %s39 = scalar_lea.vmem %s4, %s38
  %s40 = sadd.s32 0, 0
  %s41 = smul.u32 64, %s40
  %p42 = scmp.lt.s32.totalorder %s41, 63
  %s43 = scalar_select %p42, %s41, 63
  %s44 = smul.addr %s43, 8
  %s45 = scalar_lea.vmem %s0, %s44
  %s46 = sadd.s32 0, 0
  %s47 = smul.u32 64, %s46
  %s48 = sadd.s32 0, 0
  %s49 = smul.u32 64, %s48
  %p50 = scmp.lt.s32.totalorder %s49, 63
  %s51 = scalar_select %p50, %s49, 63
  %s52 = smul.addr %s51, 4
  %s53 = scalar_lea.vmem %s4, %s52
  %s54 = sadd.s32 0, 0
  %s55 = smul.u32 64, %s54
  %v57 = vld [vmem:[%s45] sm:$0xff]
  %v58 = vld [vmem:[%s45 + $0x8] sm:$0xff]
  %v59 = vld [vmem:[%s45 + $0x10] sm:$0xff]
  %v60 = vld [vmem:[%s45 + $0x18] sm:$0xff]
  %v61 = vld [vmem:[%s45 + $0x20] sm:$0xff]
  %v62 = vld [vmem:[%s45 + $0x28] sm:$0xff]
  %v63 = vld [vmem:[%s45 + $0x30] sm:$0xff]
  %v64 = vld [vmem:[%s45 + $0x38] sm:$0xff]
  %v65 = vld [vmem:[%s45 + $0x40] sm:$0xff]
  %v66 = vld [vmem:[%s45 + $0x48] sm:$0xff]
  %v67 = vld [vmem:[%s45 + $0x50] sm:$0xff]
  %v68 = vld [vmem:[%s45 + $0x58] sm:$0xff]
  %v69 = vld [vmem:[%s45 + $0x60] sm:$0xff]
  %v70 = vld [vmem:[%s45 + $0x68] sm:$0xff]
  %v71 = vld [vmem:[%s45 + $0x70] sm:$0xff]
  %v72 = vld [vmem:[%s45 + $0x78] sm:$0xff]
  %v73 = vld [vmem:[%s45 + $0x80] sm:$0xff]
  %v74 = vld [vmem:[%s45 + $0x88] sm:$0xff]
  %v75 = vld [vmem:[%s45 + $0x90] sm:$0xff]
  %v76 = vld [vmem:[%s45 + $0x98] sm:$0xff]
  %v77 = vld [vmem:[%s45 + $0xa0] sm:$0xff]
  %v78 = vld [vmem:[%s45 + $0xa8] sm:$0xff]
  %v79 = vld [vmem:[%s45 + $0xb0] sm:$0xff]
  %v80 = vld [vmem:[%s45 + $0xb8] sm:$0xff]
  %v81 = vld [vmem:[%s45 + $0xc0] sm:$0xff]
  %v82 = vld [vmem:[%s45 + $0xc8] sm:$0xff]
  %v83 = vld [vmem:[%s45 + $0xd0] sm:$0xff]
  %v84 = vld [vmem:[%s45 + $0xd8] sm:$0xff]
  %v85 = vld [vmem:[%s45 + $0xe0] sm:$0xff]
  %v86 = vld [vmem:[%s45 + $0xe8] sm:$0xff]
  %v87 = vld [vmem:[%s45 + $0xf0] sm:$0xff]
  %v88 = vld [vmem:[%s45 + $0xf8] sm:$0xff]
  %v89 = vld [vmem:[%s45 + $0x100] sm:$0xff]
  %v90 = vld [vmem:[%s45 + $0x108] sm:$0xff]
  %v91 = vld [vmem:[%s45 + $0x110] sm:$0xff]
  %v92 = vld [vmem:[%s45 + $0x118] sm:$0xff]
  %v93 = vld [vmem:[%s45 + $0x120] sm:$0xff]
  %v94 = vld [vmem:[%s45 + $0x128] sm:$0xff]
  %v95 = vld [vmem:[%s45 + $0x130] sm:$0xff]
  %v96 = vld [vmem:[%s45 + $0x138] sm:$0xff]
  %v97 = vld [vmem:[%s45 + $0x140] sm:$0xff]
  %v98 = vld [vmem:[%s45 + $0x148] sm:$0xff]
  %v99 = vld [vmem:[%s45 + $0x150] sm:$0xff]
  %v100 = vld [vmem:[%s45 + $0x158] sm:$0xff]
  %v101 = vld [vmem:[%s45 + $0x160] sm:$0xff]
  %v102 = vld [vmem:[%s45 + $0x168] sm:$0xff]
  %v103 = vld [vmem:[%s45 + $0x170] sm:$0xff]
  %v104 = vld [vmem:[%s45 + $0x178] sm:$0xff]
  %v105 = vld [vmem:[%s45 + $0x180] sm:$0xff]
  %v106 = vld [vmem:[%s45 + $0x188] sm:$0xff]
  %v107 = vld [vmem:[%s45 + $0x190] sm:$0xff]
  %v108 = vld [vmem:[%s45 + $0x198] sm:$0xff]
  %v109 = vld [vmem:[%s45 + $0x1a0] sm:$0xff]
  %v110 = vld [vmem:[%s45 + $0x1a8] sm:$0xff]
  %v111 = vld [vmem:[%s45 + $0x1b0] sm:$0xff]
  %v112 = vld [vmem:[%s45 + $0x1b8] sm:$0xff]
  %v113 = vld [vmem:[%s45 + $0x1c0] sm:$0xff]
  %v114 = vld [vmem:[%s45 + $0x1c8] sm:$0xff]
  %v115 = vld [vmem:[%s45 + $0x1d0] sm:$0xff]
  %v116 = vld [vmem:[%s45 + $0x1d8] sm:$0xff]
  %v117 = vld [vmem:[%s45 + $0x1e0] sm:$0xff]
  %v118 = vld [vmem:[%s45 + $0x1e8] sm:$0xff]
  %v119 = vld [vmem:[%s45 + $0x1f0] sm:$0xff]
  %v120 = vld [vmem:[%s45 + $0x1f8] sm:$0xff]
  %v121 = vld [vmem:[%s1] sm:$0x1]
  %v123 = vlaneseq
  %v124 = vshrl.u32 %v123, 7
  %v125 = vsub.s32 0, %v124
  %v126 = vrot.slane %v121, %v125
  %v128 = vmul.f32 %v57, %v126
  %v129 = vmul.f32 %v58, %v126
  %v130 = vmul.f32 %v59, %v126
  %v131 = vmul.f32 %v60, %v126
  %v132 = vmul.f32 %v61, %v126
  %v133 = vmul.f32 %v62, %v126
  %v134 = vmul.f32 %v63, %v126
  %v135 = vmul.f32 %v64, %v126
  %v136 = vmul.f32 %v65, %v126
  %v137 = vmul.f32 %v66, %v126
  %v138 = vmul.f32 %v67, %v126
  %v139 = vmul.f32 %v68, %v126
  %v140 = vmul.f32 %v69, %v126
  %v141 = vmul.f32 %v70, %v126
  %v142 = vmul.f32 %v71, %v126
  %v143 = vmul.f32 %v72, %v126
  %v144 = vmul.f32 %v73, %v126
  %v145 = vmul.f32 %v74, %v126
  %v146 = vmul.f32 %v75, %v126
  %v147 = vmul.f32 %v76, %v126
  %v148 = vmul.f32 %v77, %v126
  %v149 = vmul.f32 %v78, %v126
  %v150 = vmul.f32 %v79, %v126
  %v151 = vmul.f32 %v80, %v126
  %v152 = vmul.f32 %v81, %v126
  %v153 = vmul.f32 %v82, %v126
  %v154 = vmul.f32 %v83, %v126
  %v155 = vmul.f32 %v84, %v126
  %v156 = vmul.f32 %v85, %v126
  %v157 = vmul.f32 %v86, %v126
  %v158 = vmul.f32 %v87, %v126
  %v159 = vmul.f32 %v88, %v126
  %v160 = vmul.f32 %v89, %v126
  %v161 = vmul.f32 %v90, %v126
  %v162 = vmul.f32 %v91, %v126
  %v163 = vmul.f32 %v92, %v126
  %v164 = vmul.f32 %v93, %v126
  %v165 = vmul.f32 %v94, %v126
  %v166 = vmul.f32 %v95, %v126
  %v167 = vmul.f32 %v96, %v126
  %v168 = vmul.f32 %v97, %v126
  %v169 = vmul.f32 %v98, %v126
  %v170 = vmul.f32 %v99, %v126
  %v171 = vmul.f32 %v100, %v126
  %v172 = vmul.f32 %v101, %v126
  %v173 = vmul.f32 %v102, %v126
  %v174 = vmul.f32 %v103, %v126
  %v175 = vmul.f32 %v104, %v126
  %v176 = vmul.f32 %v105, %v126
  %v177 = vmul.f32 %v106, %v126
  %v178 = vmul.f32 %v107, %v126
  %v179 = vmul.f32 %v108, %v126
  %v180 = vmul.f32 %v109, %v126
  %v181 = vmul.f32 %v110, %v126
  %v182 = vmul.f32 %v111, %v126
  %v183 = vmul.f32 %v112, %v126
  %v184 = vmul.f32 %v113, %v126
  %v185 = vmul.f32 %v114, %v126
  %v186 = vmul.f32 %v115, %v126
  %v187 = vmul.f32 %v116, %v126
  %v188 = vmul.f32 %v117, %v126
  %v189 = vmul.f32 %v118, %v126
  %v190 = vmul.f32 %v119, %v126
  %v191 = vmul.f32 %v120, %v126
  %v192 = vld [vmem:[%s2] sm:$0x1]
  %v194 = vlaneseq
  %v195 = vshrl.u32 %v194, 7
  %v196 = vsub.s32 0, %v195
  %v197 = vrot.slane %v192, %v196
  %v199 = vadd.f32 %v128, %v197
  %v200 = vadd.f32 %v129, %v197
  %v201 = vadd.f32 %v130, %v197
  %v202 = vadd.f32 %v131, %v197
  %v203 = vadd.f32 %v132, %v197
  %v204 = vadd.f32 %v133, %v197
  %v205 = vadd.f32 %v134, %v197
  %v206 = vadd.f32 %v135, %v197
  %v207 = vadd.f32 %v136, %v197
  %v208 = vadd.f32 %v137, %v197
  %v209 = vadd.f32 %v138, %v197
  %v210 = vadd.f32 %v139, %v197
  %v211 = vadd.f32 %v140, %v197
  %v212 = vadd.f32 %v141, %v197
  %v213 = vadd.f32 %v142, %v197
  %v214 = vadd.f32 %v143, %v197
  %v215 = vadd.f32 %v144, %v197
  %v216 = vadd.f32 %v145, %v197
  %v217 = vadd.f32 %v146, %v197
  %v218 = vadd.f32 %v147, %v197
  %v219 = vadd.f32 %v148, %v197
  %v220 = vadd.f32 %v149, %v197
  %v221 = vadd.f32 %v150, %v197
  %v222 = vadd.f32 %v151, %v197
  %v223 = vadd.f32 %v152, %v197
  %v224 = vadd.f32 %v153, %v197
  %v225 = vadd.f32 %v154, %v197
  %v226 = vadd.f32 %v155, %v197
  %v227 = vadd.f32 %v156, %v197
  %v228 = vadd.f32 %v157, %v197
  %v229 = vadd.f32 %v158, %v197
  %v230 = vadd.f32 %v159, %v197
  %v231 = vadd.f32 %v160, %v197
  %v232 = vadd.f32 %v161, %v197
  %v233 = vadd.f32 %v162, %v197
  %v234 = vadd.f32 %v163, %v197
  %v235 = vadd.f32 %v164, %v197
  %v236 = vadd.f32 %v165, %v197
  %v237 = vadd.f32 %v166, %v197
  %v238 = vadd.f32 %v167, %v197
  %v239 = vadd.f32 %v168, %v197
  %v240 = vadd.f32 %v169, %v197
  %v241 = vadd.f32 %v170, %v197
  %v242 = vadd.f32 %v171, %v197
  %v243 = vadd.f32 %v172, %v197
  %v244 = vadd.f32 %v173, %v197
  %v245 = vadd.f32 %v174, %v197
  %v246 = vadd.f32 %v175, %v197
  %v247 = vadd.f32 %v176, %v197
  %v248 = vadd.f32 %v177, %v197
  %v249 = vadd.f32 %v178, %v197
  %v250 = vadd.f32 %v179, %v197
  %v251 = vadd.f32 %v180, %v197
  %v252 = vadd.f32 %v181, %v197
  %v253 = vadd.f32 %v182, %v197
  %v254 = vadd.f32 %v183, %v197
  %v255 = vadd.f32 %v184, %v197
  %v256 = vadd.f32 %v185, %v197
  %v257 = vadd.f32 %v186, %v197
  %v258 = vadd.f32 %v187, %v197
  %v259 = vadd.f32 %v188, %v197
  %v260 = vadd.f32 %v189, %v197
  %v261 = vadd.f32 %v190, %v197
  %v262 = vadd.f32 %v191, %v197
  %v263 = vmax.f32 %v199, 0.0
  %v264 = vmax.f32 %v200, 0.0
  %v265 = vmax.f32 %v201, 0.0
  %v266 = vmax.f32 %v202, 0.0
  %v267 = vmax.f32 %v203, 0.0
  %v268 = vmax.f32 %v204, 0.0
  %v269 = vmax.f32 %v205, 0.0
  %v270 = vmax.f32 %v206, 0.0
  %v271 = vmax.f32 %v207, 0.0
  %v272 = vmax.f32 %v208, 0.0
  %v273 = vmax.f32 %v209, 0.0
  %v274 = vmax.f32 %v210, 0.0
  %v275 = vmax.f32 %v211, 0.0
  %v276 = vmax.f32 %v212, 0.0
  %v277 = vmax.f32 %v213, 0.0
  %v278 = vmax.f32 %v214, 0.0
  %v279 = vmax.f32 %v215, 0.0
  %v280 = vmax.f32 %v216, 0.0
  %v281 = vmax.f32 %v217, 0.0
  %v282 = vmax.f32 %v218, 0.0
  %v283 = vmax.f32 %v219, 0.0
  %v284 = vmax.f32 %v220, 0.0
  %v285 = vmax.f32 %v221, 0.0
  %v286 = vmax.f32 %v222, 0.0
  %v287 = vmax.f32 %v223, 0.0
  %v288 = vmax.f32 %v224, 0.0
  %v289 = vmax.f32 %v225, 0.0
  %v290 = vmax.f32 %v226, 0.0
  %v291 = vmax.f32 %v227, 0.0
  %v292 = vmax.f32 %v228, 0.0
  %v293 = vmax.f32 %v229, 0.0
  %v294 = vmax.f32 %v230, 0.0
  %v295 = vmax.f32 %v231, 0.0
  %v296 = vmax.f32 %v232, 0.0
  %v297 = vmax.f32 %v233, 0.0
  %v298 = vmax.f32 %v234, 0.0
  %v299 = vmax.f32 %v235, 0.0
  %v300 = vmax.f32 %v236, 0.0
  %v301 = vmax.f32 %v237, 0.0
  %v302 = vmax.f32 %v238, 0.0
  %v303 = vmax.f32 %v239, 0.0
  %v304 = vmax.f32 %v240, 0.0
  %v305 = vmax.f32 %v241, 0.0
  %v306 = vmax.f32 %v242, 0.0
  %v307 = vmax.f32 %v243, 0.0
  %v308 = vmax.f32 %v244, 0.0
  %v309 = vmax.f32 %v245, 0.0
  %v310 = vmax.f32 %v246, 0.0
  %v311 = vmax.f32 %v247, 0.0
  %v312 = vmax.f32 %v248, 0.0
  %v313 = vmax.f32 %v249, 0.0
  %v314 = vmax.f32 %v250, 0.0
  %v315 = vmax.f32 %v251, 0.0
  %v316 = vmax.f32 %v252, 0.0
  %v317 = vmax.f32 %v253, 0.0
  %v318 = vmax.f32 %v254, 0.0
  %v319 = vmax.f32 %v255, 0.0
  %v320 = vmax.f32 %v256, 0.0
  %v321 = vmax.f32 %v257, 0.0
  %v322 = vmax.f32 %v258, 0.0
  %v323 = vmax.f32 %v259, 0.0
  %v324 = vmax.f32 %v260, 0.0
  %v325 = vmax.f32 %v261, 0.0
  %v326 = vmax.f32 %v262, 0.0
  %v327 = vpack.c.bf16 %v264, %v263
  %v328 = vpack.c.bf16 %v266, %v265
  %v329 = vpack.c.bf16 %v268, %v267
  %v330 = vpack.c.bf16 %v270, %v269
  %v331 = vpack.c.bf16 %v272, %v271
  %v332 = vpack.c.bf16 %v274, %v273
  %v333 = vpack.c.bf16 %v276, %v275
  %v334 = vpack.c.bf16 %v278, %v277
  %v335 = vpack.c.bf16 %v280, %v279
  %v336 = vpack.c.bf16 %v282, %v281
  %v337 = vpack.c.bf16 %v284, %v283
  %v338 = vpack.c.bf16 %v286, %v285
  %v339 = vpack.c.bf16 %v288, %v287
  %v340 = vpack.c.bf16 %v290, %v289
  %v341 = vpack.c.bf16 %v292, %v291
  %v342 = vpack.c.bf16 %v294, %v293
  %v343 = vpack.c.bf16 %v296, %v295
  %v344 = vpack.c.bf16 %v298, %v297
  %v345 = vpack.c.bf16 %v300, %v299
  %v346 = vpack.c.bf16 %v302, %v301
  %v347 = vpack.c.bf16 %v304, %v303
  %v348 = vpack.c.bf16 %v306, %v305
  %v349 = vpack.c.bf16 %v308, %v307
  %v350 = vpack.c.bf16 %v310, %v309
  %v351 = vpack.c.bf16 %v312, %v311
  %v352 = vpack.c.bf16 %v314, %v313
  %v353 = vpack.c.bf16 %v316, %v315
  %v354 = vpack.c.bf16 %v318, %v317
  %v355 = vpack.c.bf16 %v320, %v319
  %v356 = vpack.c.bf16 %v322, %v321
  %v357 = vpack.c.bf16 %v324, %v323
  %v358 = vpack.c.bf16 %v326, %v325
  %v359 = vld [vmem:[%s3] sm:$0xf]
  %vm360 = vcmask 64512
  %v362 = vsel %vm360, %v327, 0
  %v365 = vsel %vm360, %v328, 0
  %v368 = vsel %vm360, %v329, 0
  %v371 = vsel %vm360, %v330, 0
  %v374 = vsel %vm360, %v331, 0
  %v377 = vsel %vm360, %v332, 0
  %v380 = vsel %vm360, %v333, 0
  %v383 = vsel %vm360, %v334, 0
  %v386 = vsel %vm360, %v335, 0
  %v389 = vsel %vm360, %v336, 0
  %v392 = vsel %vm360, %v337, 0
  %v395 = vsel %vm360, %v338, 0
  %v398 = vsel %vm360, %v339, 0
  %v401 = vsel %vm360, %v340, 0
  %v404 = vsel %vm360, %v341, 0
  %v407 = vsel %vm360, %v342, 0
  %v410 = vsel %vm360, %v343, 0
  %v413 = vsel %vm360, %v344, 0
  %v416 = vsel %vm360, %v345, 0
  %v419 = vsel %vm360, %v346, 0
  %v422 = vsel %vm360, %v347, 0
  %v425 = vsel %vm360, %v348, 0
  %v428 = vsel %vm360, %v349, 0
  %v431 = vsel %vm360, %v350, 0
  %v434 = vsel %vm360, %v351, 0
  %v437 = vsel %vm360, %v352, 0
  %v440 = vsel %vm360, %v353, 0
  %v443 = vsel %vm360, %v354, 0
  %v446 = vsel %vm360, %v355, 0
  %v449 = vsel %vm360, %v356, 0
  %v452 = vsel %vm360, %v357, 0
  %v455 = vsel %vm360, %v358, 0
  %vm457 = vcmask 1043456
  %v459 = vsel %vm457, %v359, 0
  %461 = vmatprep.subr.bf16.mxu0 0
  %462 = vmatpush1.bf16.msra.mxu0 0
  %463 = vmatprep.subr.bf16.mxu0 0
  %464 = vmatpush1.bf16.msra.mxu0 0
  %465 = vmatprep.subr.bf16.mxu0 0
  %466 = vmatpush1.bf16.msra.mxu0 0
  %467 = vmatprep.subr.bf16.mxu0 0
  %468 = vmatpush1.bf16.msra.mxu0 0
  %469 = vmatprep.subr.bf16.mxu0 0
  %470 = vmatpush1.bf16.msra.mxu0 0
  %471 = vmatprep.subr.bf16.mxu0 0
  %472 = vmatpush1.bf16.msra.mxu0 0
  %473 = vmatprep.subr.bf16.mxu0 0
  %474 = vmatpush1.bf16.msra.mxu0 0
  %475 = vmatprep.subr.bf16.mxu0 0
  %476 = vmatpush1.bf16.msra.mxu0 %v459
  %477 = vmatprep.subr.bf16.mxu0 0
  %478 = vmatpush2.bf16.msra.mxu0 0
  %479 = vmatprep.subr.bf16.mxu0 0
  %480 = vmatpush2.bf16.msra.mxu0 0
  %481 = vmatprep.subr.bf16.mxu0 0
  %482 = vmatpush2.bf16.msra.mxu0 0
  %483 = vmatprep.subr.bf16.mxu0 0
  %484 = vmatpush2.bf16.msra.mxu0 0
  %485 = vmatprep.subr.bf16.mxu0 0
  %486 = vmatpush2.bf16.msra.mxu0 0
  %487 = vmatprep.subr.bf16.mxu0 0
  %488 = vmatpush2.bf16.msra.mxu0 0
  %489 = vmatprep.subr.bf16.mxu0 0
  %490 = vmatpush2.bf16.msra.mxu0 0
  %491 = vmatprep.subr.bf16.mxu0 0
  %492 = vmatpush2.bf16.msra.mxu0 0
  %493 = vmatprep.mubr.bf16.mxu0 0
  %494 = vmatmul.mubr.bf16.gmra.mxu0 %v362
  %v495 = vpop.f32.mrf.mxu0
  %v496 = vadd.f32 0.0, %v495
  %v497 = vpop.f32.mrf.mxu0
  %v498 = vpop.f32.mrf.mxu0
  %v499 = vadd.f32 0.0, %v498
  %v500 = vpop.f32.mrf.mxu0
  %501 = vmatprep.mubr.bf16.mxu0 0
  %502 = vmatmul.mubr.bf16.gmra.mxu0 %v365
  %v503 = vpop.f32.mrf.mxu0
  %v504 = vadd.f32 0.0, %v503
  %v505 = vpop.f32.mrf.mxu0
  %v506 = vpop.f32.mrf.mxu0
  %v507 = vadd.f32 0.0, %v506
  %v508 = vpop.f32.mrf.mxu0
  %509 = vmatprep.mubr.bf16.mxu0 0
  %510 = vmatmul.mubr.bf16.gmra.mxu0 %v368
  %v511 = vpop.f32.mrf.mxu0
  %v512 = vadd.f32 0.0, %v511
  %v513 = vpop.f32.mrf.mxu0
  %v514 = vpop.f32.mrf.mxu0
  %v515 = vadd.f32 0.0, %v514
  %v516 = vpop.f32.mrf.mxu0
  %517 = vmatprep.mubr.bf16.mxu0 0
  %518 = vmatmul.mubr.bf16.gmra.mxu0 %v371
  %v519 = vpop.f32.mrf.mxu0
  %v520 = vadd.f32 0.0, %v519
  %v521 = vpop.f32.mrf.mxu0
  %v522 = vpop.f32.mrf.mxu0
  %v523 = vadd.f32 0.0, %v522
  %v524 = vpop.f32.mrf.mxu0
  %525 = vmatprep.mubr.bf16.mxu0 0
  %526 = vmatmul.mubr.bf16.gmra.mxu0 %v374
  %v527 = vpop.f32.mrf.mxu0
  %v528 = vadd.f32 0.0, %v527
  %v529 = vpop.f32.mrf.mxu0
  %v530 = vpop.f32.mrf.mxu0
  %v531 = vadd.f32 0.0, %v530
  %v532 = vpop.f32.mrf.mxu0
  %533 = vmatprep.mubr.bf16.mxu0 0
  %534 = vmatmul.mubr.bf16.gmra.mxu0 %v377
  %v535 = vpop.f32.mrf.mxu0
  %v536 = vadd.f32 0.0, %v535
  %v537 = vpop.f32.mrf.mxu0
  %v538 = vpop.f32.mrf.mxu0
  %v539 = vadd.f32 0.0, %v538
  %v540 = vpop.f32.mrf.mxu0
  %541 = vmatprep.mubr.bf16.mxu0 0
  %542 = vmatmul.mubr.bf16.gmra.mxu0 %v380
  %v543 = vpop.f32.mrf.mxu0
  %v544 = vadd.f32 0.0, %v543
  %v545 = vpop.f32.mrf.mxu0
  %v546 = vpop.f32.mrf.mxu0
  %v547 = vadd.f32 0.0, %v546
  %v548 = vpop.f32.mrf.mxu0
  %549 = vmatprep.mubr.bf16.mxu0 0
  %550 = vmatmul.mubr.bf16.gmra.mxu0 %v383
  %v551 = vpop.f32.mrf.mxu0
  %v552 = vadd.f32 0.0, %v551
  %v553 = vpop.f32.mrf.mxu0
  %v554 = vpop.f32.mrf.mxu0
  %v555 = vadd.f32 0.0, %v554
  %v556 = vpop.f32.mrf.mxu0
  %557 = vmatprep.mubr.bf16.mxu0 0
  %558 = vmatmul.mubr.bf16.gmra.mxu0 %v386
  %v559 = vpop.f32.mrf.mxu0
  %v560 = vadd.f32 0.0, %v559
  %v561 = vpop.f32.mrf.mxu0
  %v562 = vpop.f32.mrf.mxu0
  %v563 = vadd.f32 0.0, %v562
  %v564 = vpop.f32.mrf.mxu0
  %565 = vmatprep.mubr.bf16.mxu0 0
  %566 = vmatmul.mubr.bf16.gmra.mxu0 %v389
  %v567 = vpop.f32.mrf.mxu0
  %v568 = vadd.f32 0.0, %v567
  %v569 = vpop.f32.mrf.mxu0
  %v570 = vpop.f32.mrf.mxu0
  %v571 = vadd.f32 0.0, %v570
  %v572 = vpop.f32.mrf.mxu0
  %573 = vmatprep.mubr.bf16.mxu0 0
  %574 = vmatmul.mubr.bf16.gmra.mxu0 %v392
  %v575 = vpop.f32.mrf.mxu0
  %v576 = vadd.f32 0.0, %v575
  %v577 = vpop.f32.mrf.mxu0
  %v578 = vpop.f32.mrf.mxu0
  %v579 = vadd.f32 0.0, %v578
  %v580 = vpop.f32.mrf.mxu0
  %581 = vmatprep.mubr.bf16.mxu0 0
  %582 = vmatmul.mubr.bf16.gmra.mxu0 %v395
  %v583 = vpop.f32.mrf.mxu0
  %v584 = vadd.f32 0.0, %v583
  %v585 = vpop.f32.mrf.mxu0
  %v586 = vpop.f32.mrf.mxu0
  %v587 = vadd.f32 0.0, %v586
  %v588 = vpop.f32.mrf.mxu0
  %589 = vmatprep.mubr.bf16.mxu0 0
  %590 = vmatmul.mubr.bf16.gmra.mxu0 %v398
  %v591 = vpop.f32.mrf.mxu0
  %v592 = vadd.f32 0.0, %v591
  %v593 = vpop.f32.mrf.mxu0
  %v594 = vpop.f32.mrf.mxu0
  %v595 = vadd.f32 0.0, %v594
  %v596 = vpop.f32.mrf.mxu0
  %597 = vmatprep.mubr.bf16.mxu0 0
  %598 = vmatmul.mubr.bf16.gmra.mxu0 %v401
  %v599 = vpop.f32.mrf.mxu0
  %v600 = vadd.f32 0.0, %v599
  %v601 = vpop.f32.mrf.mxu0
  %v602 = vpop.f32.mrf.mxu0
  %v603 = vadd.f32 0.0, %v602
  %v604 = vpop.f32.mrf.mxu0
  %605 = vmatprep.mubr.bf16.mxu0 0
  %606 = vmatmul.mubr.bf16.gmra.mxu0 %v404
  %v607 = vpop.f32.mrf.mxu0
  %v608 = vadd.f32 0.0, %v607
  %v609 = vpop.f32.mrf.mxu0
  %v610 = vpop.f32.mrf.mxu0
  %v611 = vadd.f32 0.0, %v610
  %v612 = vpop.f32.mrf.mxu0
  %613 = vmatprep.mubr.bf16.mxu0 0
  %614 = vmatmul.mubr.bf16.gmra.mxu0 %v407
  %v615 = vpop.f32.mrf.mxu0
  %v616 = vadd.f32 0.0, %v615
  %v617 = vpop.f32.mrf.mxu0
  %v618 = vpop.f32.mrf.mxu0
  %v619 = vadd.f32 0.0, %v618
  %v620 = vpop.f32.mrf.mxu0
  %621 = vmatprep.mubr.bf16.mxu0 0
  %622 = vmatmul.mubr.bf16.gmra.mxu0 %v410
  %v623 = vpop.f32.mrf.mxu0
  %v624 = vadd.f32 0.0, %v623
  %v625 = vpop.f32.mrf.mxu0
  %v626 = vpop.f32.mrf.mxu0
  %v627 = vadd.f32 0.0, %v626
  %v628 = vpop.f32.mrf.mxu0
  %629 = vmatprep.mubr.bf16.mxu0 0
  %630 = vmatmul.mubr.bf16.gmra.mxu0 %v413
  %v631 = vpop.f32.mrf.mxu0
  %v632 = vadd.f32 0.0, %v631
  %v633 = vpop.f32.mrf.mxu0
  %v634 = vpop.f32.mrf.mxu0
  %v635 = vadd.f32 0.0, %v634
  %v636 = vpop.f32.mrf.mxu0
  %637 = vmatprep.mubr.bf16.mxu0 0
  %638 = vmatmul.mubr.bf16.gmra.mxu0 %v416
  %v639 = vpop.f32.mrf.mxu0
  %v640 = vadd.f32 0.0, %v639
  %v641 = vpop.f32.mrf.mxu0
  %v642 = vpop.f32.mrf.mxu0
  %v643 = vadd.f32 0.0, %v642
  %v644 = vpop.f32.mrf.mxu0
  %645 = vmatprep.mubr.bf16.mxu0 0
  %646 = vmatmul.mubr.bf16.gmra.mxu0 %v419
  %v647 = vpop.f32.mrf.mxu0
  %v648 = vadd.f32 0.0, %v647
  %v649 = vpop.f32.mrf.mxu0
  %v650 = vpop.f32.mrf.mxu0
  %v651 = vadd.f32 0.0, %v650
  %v652 = vpop.f32.mrf.mxu0
  %653 = vmatprep.mubr.bf16.mxu0 0
  %654 = vmatmul.mubr.bf16.gmra.mxu0 %v422
  %v655 = vpop.f32.mrf.mxu0
  %v656 = vadd.f32 0.0, %v655
  %v657 = vpop.f32.mrf.mxu0
  %v658 = vpop.f32.mrf.mxu0
  %v659 = vadd.f32 0.0, %v658
  %v660 = vpop.f32.mrf.mxu0
  %661 = vmatprep.mubr.bf16.mxu0 0
  %662 = vmatmul.mubr.bf16.gmra.mxu0 %v425
  %v663 = vpop.f32.mrf.mxu0
  %v664 = vadd.f32 0.0, %v663
  %v665 = vpop.f32.mrf.mxu0
  %v666 = vpop.f32.mrf.mxu0
  %v667 = vadd.f32 0.0, %v666
  %v668 = vpop.f32.mrf.mxu0
  %669 = vmatprep.mubr.bf16.mxu0 0
  %670 = vmatmul.mubr.bf16.gmra.mxu0 %v428
  %v671 = vpop.f32.mrf.mxu0
  %v672 = vadd.f32 0.0, %v671
  %v673 = vpop.f32.mrf.mxu0
  %v674 = vpop.f32.mrf.mxu0
  %v675 = vadd.f32 0.0, %v674
  %v676 = vpop.f32.mrf.mxu0
  %677 = vmatprep.mubr.bf16.mxu0 0
  %678 = vmatmul.mubr.bf16.gmra.mxu0 %v431
  %v679 = vpop.f32.mrf.mxu0
  %v680 = vadd.f32 0.0, %v679
  %v681 = vpop.f32.mrf.mxu0
  %v682 = vpop.f32.mrf.mxu0
  %v683 = vadd.f32 0.0, %v682
  %v684 = vpop.f32.mrf.mxu0
  %685 = vmatprep.mubr.bf16.mxu0 0
  %686 = vmatmul.mubr.bf16.gmra.mxu0 %v434
  %v687 = vpop.f32.mrf.mxu0
  %v688 = vadd.f32 0.0, %v687
  %v689 = vpop.f32.mrf.mxu0
  %v690 = vpop.f32.mrf.mxu0
  %v691 = vadd.f32 0.0, %v690
  %v692 = vpop.f32.mrf.mxu0
  %693 = vmatprep.mubr.bf16.mxu0 0
  %694 = vmatmul.mubr.bf16.gmra.mxu0 %v437
  %v695 = vpop.f32.mrf.mxu0
  %v696 = vadd.f32 0.0, %v695
  %v697 = vpop.f32.mrf.mxu0
  %v698 = vpop.f32.mrf.mxu0
  %v699 = vadd.f32 0.0, %v698
  %v700 = vpop.f32.mrf.mxu0
  %701 = vmatprep.mubr.bf16.mxu0 0
  %702 = vmatmul.mubr.bf16.gmra.mxu0 %v440
  %v703 = vpop.f32.mrf.mxu0
  %v704 = vadd.f32 0.0, %v703
  %v705 = vpop.f32.mrf.mxu0
  %v706 = vpop.f32.mrf.mxu0
  %v707 = vadd.f32 0.0, %v706
  %v708 = vpop.f32.mrf.mxu0
  %709 = vmatprep.mubr.bf16.mxu0 0
  %710 = vmatmul.mubr.bf16.gmra.mxu0 %v443
  %v711 = vpop.f32.mrf.mxu0
  %v712 = vadd.f32 0.0, %v711
  %v713 = vpop.f32.mrf.mxu0
  %v714 = vpop.f32.mrf.mxu0
  %v715 = vadd.f32 0.0, %v714
  %v716 = vpop.f32.mrf.mxu0
  %717 = vmatprep.mubr.bf16.mxu0 0
  %718 = vmatmul.mubr.bf16.gmra.mxu0 %v446
  %v719 = vpop.f32.mrf.mxu0
  %v720 = vadd.f32 0.0, %v719
  %v721 = vpop.f32.mrf.mxu0
  %v722 = vpop.f32.mrf.mxu0
  %v723 = vadd.f32 0.0, %v722
  %v724 = vpop.f32.mrf.mxu0
  %725 = vmatprep.mubr.bf16.mxu0 0
  %726 = vmatmul.mubr.bf16.gmra.mxu0 %v449
  %v727 = vpop.f32.mrf.mxu0
  %v728 = vadd.f32 0.0, %v727
  %v729 = vpop.f32.mrf.mxu0
  %v730 = vpop.f32.mrf.mxu0
  %v731 = vadd.f32 0.0, %v730
  %v732 = vpop.f32.mrf.mxu0
  %733 = vmatprep.mubr.bf16.mxu0 0
  %734 = vmatmul.mubr.bf16.gmra.mxu0 %v452
  %v735 = vpop.f32.mrf.mxu0
  %v736 = vadd.f32 0.0, %v735
  %v737 = vpop.f32.mrf.mxu0
  %v738 = vpop.f32.mrf.mxu0
  %v739 = vadd.f32 0.0, %v738
  %v740 = vpop.f32.mrf.mxu0
  %741 = vmatprep.mubr.bf16.mxu0 0
  %742 = vmatmul.mubr.bf16.gmra.mxu0 %v455
  %v743 = vpop.f32.mrf.mxu0
  %v744 = vadd.f32 0.0, %v743
  %v745 = vpop.f32.mrf.mxu0
  %v746 = vpop.f32.mrf.mxu0
  %v747 = vadd.f32 0.0, %v746
  %v748 = vpop.f32.mrf.mxu0
  %749 = vdwg.mxu0
  %v750 = vpack.c.bf16 %v499, %v496
  %v751 = vpack.c.bf16 %v507, %v504
  %v752 = vpack.c.bf16 %v515, %v512
  %v753 = vpack.c.bf16 %v523, %v520
  %v754 = vpack.c.bf16 %v531, %v528
  %v755 = vpack.c.bf16 %v539, %v536
  %v756 = vpack.c.bf16 %v547, %v544
  %v757 = vpack.c.bf16 %v555, %v552
  %v758 = vpack.c.bf16 %v563, %v560
  %v759 = vpack.c.bf16 %v571, %v568
  %v760 = vpack.c.bf16 %v579, %v576
  %v761 = vpack.c.bf16 %v587, %v584
  %v762 = vpack.c.bf16 %v595, %v592
  %v763 = vpack.c.bf16 %v603, %v600
  %v764 = vpack.c.bf16 %v611, %v608
  %v765 = vpack.c.bf16 %v619, %v616
  %v766 = vpack.c.bf16 %v627, %v624
  %v767 = vpack.c.bf16 %v635, %v632
  %v768 = vpack.c.bf16 %v643, %v640
  %v769 = vpack.c.bf16 %v651, %v648
  %v770 = vpack.c.bf16 %v659, %v656
  %v771 = vpack.c.bf16 %v667, %v664
  %v772 = vpack.c.bf16 %v675, %v672
  %v773 = vpack.c.bf16 %v683, %v680
  %v774 = vpack.c.bf16 %v691, %v688
  %v775 = vpack.c.bf16 %v699, %v696
  %v776 = vpack.c.bf16 %v707, %v704
  %v777 = vpack.c.bf16 %v715, %v712
  %v778 = vpack.c.bf16 %v723, %v720
  %v779 = vpack.c.bf16 %v731, %v728
  %v780 = vpack.c.bf16 %v739, %v736
  %v781 = vpack.c.bf16 %v747, %v744
  %v814 = vunpack.c.l.b16 %v750
  %v815 = vunpack.c.h.b16 %v750
  %v816 = vunpack.c.l.b16 %v751
  %v817 = vunpack.c.h.b16 %v751
  %v818 = vunpack.c.l.b16 %v752
  %v819 = vunpack.c.h.b16 %v752
  %v820 = vunpack.c.l.b16 %v753
  %v821 = vunpack.c.h.b16 %v753
  %v822 = vunpack.c.l.b16 %v754
  %v823 = vunpack.c.h.b16 %v754
  %v824 = vunpack.c.l.b16 %v755
  %v825 = vunpack.c.h.b16 %v755
  %v826 = vunpack.c.l.b16 %v756
  %v827 = vunpack.c.h.b16 %v756
  %v828 = vunpack.c.l.b16 %v757
  %v829 = vunpack.c.h.b16 %v757
  %v830 = vunpack.c.l.b16 %v758
  %v831 = vunpack.c.h.b16 %v758
  %v832 = vunpack.c.l.b16 %v759
  %v833 = vunpack.c.h.b16 %v759
  %v834 = vunpack.c.l.b16 %v760
  %v835 = vunpack.c.h.b16 %v760
  %v836 = vunpack.c.l.b16 %v761
  %v837 = vunpack.c.h.b16 %v761
  %v838 = vunpack.c.l.b16 %v762
  %v839 = vunpack.c.h.b16 %v762
  %v840 = vunpack.c.l.b16 %v763
  %v841 = vunpack.c.h.b16 %v763
  %v842 = vunpack.c.l.b16 %v764
  %v843 = vunpack.c.h.b16 %v764
  %v844 = vunpack.c.l.b16 %v765
  %v845 = vunpack.c.h.b16 %v765
  %v846 = vunpack.c.l.b16 %v766
  %v847 = vunpack.c.h.b16 %v766
  %v848 = vunpack.c.l.b16 %v767
  %v849 = vunpack.c.h.b16 %v767
  %v850 = vunpack.c.l.b16 %v768
  %v851 = vunpack.c.h.b16 %v768
  %v852 = vunpack.c.l.b16 %v769
  %v853 = vunpack.c.h.b16 %v769
  %v854 = vunpack.c.l.b16 %v770
  %v855 = vunpack.c.h.b16 %v770
  %v856 = vunpack.c.l.b16 %v771
  %v857 = vunpack.c.h.b16 %v771
  %v858 = vunpack.c.l.b16 %v772
  %v859 = vunpack.c.h.b16 %v772
  %v860 = vunpack.c.l.b16 %v773
  %v861 = vunpack.c.h.b16 %v773
  %v862 = vunpack.c.l.b16 %v774
  %v863 = vunpack.c.h.b16 %v774
  %v864 = vunpack.c.l.b16 %v775
  %v865 = vunpack.c.h.b16 %v775
  %v866 = vunpack.c.l.b16 %v776
  %v867 = vunpack.c.h.b16 %v776
  %v868 = vunpack.c.l.b16 %v777
  %v869 = vunpack.c.h.b16 %v777
  %v870 = vunpack.c.l.b16 %v778
  %v871 = vunpack.c.h.b16 %v778
  %v872 = vunpack.c.l.b16 %v779
  %v873 = vunpack.c.h.b16 %v779
  %v874 = vunpack.c.l.b16 %v780
  %v875 = vunpack.c.h.b16 %v780
  %v876 = vunpack.c.l.b16 %v781
  %v877 = vunpack.c.h.b16 %v781
  %v878 = vpack.c.b16 %v814, %v814
  %v879 = vpack.c.b16 %v815, %v815
  %v880 = vpack.c.b16 %v816, %v816
  %v881 = vpack.c.b16 %v817, %v817
  %v882 = vpack.c.b16 %v818, %v818
  %v883 = vpack.c.b16 %v819, %v819
  %v884 = vpack.c.b16 %v820, %v820
  %v885 = vpack.c.b16 %v821, %v821
  %v886 = vpack.c.b16 %v822, %v822
  %v887 = vpack.c.b16 %v823, %v823
  %v888 = vpack.c.b16 %v824, %v824
  %v889 = vpack.c.b16 %v825, %v825
  %v890 = vpack.c.b16 %v826, %v826
  %v891 = vpack.c.b16 %v827, %v827
  %v892 = vpack.c.b16 %v828, %v828
  %v893 = vpack.c.b16 %v829, %v829
  %v894 = vpack.c.b16 %v830, %v830
  %v895 = vpack.c.b16 %v831, %v831
  %v896 = vpack.c.b16 %v832, %v832
  %v897 = vpack.c.b16 %v833, %v833
  %v898 = vpack.c.b16 %v834, %v834
  %v899 = vpack.c.b16 %v835, %v835
  %v900 = vpack.c.b16 %v836, %v836
  %v901 = vpack.c.b16 %v837, %v837
  %v902 = vpack.c.b16 %v838, %v838
  %v903 = vpack.c.b16 %v839, %v839
  %v904 = vpack.c.b16 %v840, %v840
  %v905 = vpack.c.b16 %v841, %v841
  %v906 = vpack.c.b16 %v842, %v842
  %v907 = vpack.c.b16 %v843, %v843
  %v908 = vpack.c.b16 %v844, %v844
  %v909 = vpack.c.b16 %v845, %v845
  %v910 = vpack.c.b16 %v846, %v846
  %v911 = vpack.c.b16 %v847, %v847
  %v912 = vpack.c.b16 %v848, %v848
  %v913 = vpack.c.b16 %v849, %v849
  %v914 = vpack.c.b16 %v850, %v850
  %v915 = vpack.c.b16 %v851, %v851
  %v916 = vpack.c.b16 %v852, %v852
  %v917 = vpack.c.b16 %v853, %v853
  %v918 = vpack.c.b16 %v854, %v854
  %v919 = vpack.c.b16 %v855, %v855
  %v920 = vpack.c.b16 %v856, %v856
  %v921 = vpack.c.b16 %v857, %v857
  %v922 = vpack.c.b16 %v858, %v858
  %v923 = vpack.c.b16 %v859, %v859
  %v924 = vpack.c.b16 %v860, %v860
  %v925 = vpack.c.b16 %v861, %v861
  %v926 = vpack.c.b16 %v862, %v862
  %v927 = vpack.c.b16 %v863, %v863
  %v928 = vpack.c.b16 %v864, %v864
  %v929 = vpack.c.b16 %v865, %v865
  %v930 = vpack.c.b16 %v866, %v866
  %v931 = vpack.c.b16 %v867, %v867
  %v932 = vpack.c.b16 %v868, %v868
  %v933 = vpack.c.b16 %v869, %v869
  %v934 = vpack.c.b16 %v870, %v870
  %v935 = vpack.c.b16 %v871, %v871
  %v936 = vpack.c.b16 %v872, %v872
  %v937 = vpack.c.b16 %v873, %v873
  %v938 = vpack.c.b16 %v874, %v874
  %v939 = vpack.c.b16 %v875, %v875
  %v940 = vpack.c.b16 %v876, %v876
  %v941 = vpack.c.b16 %v877, %v877
  %vm1006 = vcmask 257024
  %1007 = vst.msk [vmem:[%s53] sm:$0xf] %vm1006, %v878
  %1008 = vst.msk [vmem:[%s53 + $0x4] sm:$0xf] %vm1006, %v879
  %1009 = vst.msk [vmem:[%s53 + $0x8] sm:$0xf] %vm1006, %v880
  %1010 = vst.msk [vmem:[%s53 + $0xc] sm:$0xf] %vm1006, %v881
  %1011 = vst.msk [vmem:[%s53 + $0x10] sm:$0xf] %vm1006, %v882
  %1012 = vst.msk [vmem:[%s53 + $0x14] sm:$0xf] %vm1006, %v883
  %1013 = vst.msk [vmem:[%s53 + $0x18] sm:$0xf] %vm1006, %v884
  %1014 = vst.msk [vmem:[%s53 + $0x1c] sm:$0xf] %vm1006, %v885
  %1015 = vst.msk [vmem:[%s53 + $0x20] sm:$0xf] %vm1006, %v886
  %1016 = vst.msk [vmem:[%s53 + $0x24] sm:$0xf] %vm1006, %v887
  %1017 = vst.msk [vmem:[%s53 + $0x28] sm:$0xf] %vm1006, %v888
  %1018 = vst.msk [vmem:[%s53 + $0x2c] sm:$0xf] %vm1006, %v889
  %1019 = vst.msk [vmem:[%s53 + $0x30] sm:$0xf] %vm1006, %v890
  %1020 = vst.msk [vmem:[%s53 + $0x34] sm:$0xf] %vm1006, %v891
  %1021 = vst.msk [vmem:[%s53 + $0x38] sm:$0xf] %vm1006, %v892
  %1022 = vst.msk [vmem:[%s53 + $0x3c] sm:$0xf] %vm1006, %v893
  %1023 = vst.msk [vmem:[%s53 + $0x40] sm:$0xf] %vm1006, %v894
  %1024 = vst.msk [vmem:[%s53 + $0x44] sm:$0xf] %vm1006, %v895
  %1025 = vst.msk [vmem:[%s53 + $0x48] sm:$0xf] %vm1006, %v896
  %1026 = vst.msk [vmem:[%s53 + $0x4c] sm:$0xf] %vm1006, %v897
  %1027 = vst.msk [vmem:[%s53 + $0x50] sm:$0xf] %vm1006, %v898
  %1028 = vst.msk [vmem:[%s53 + $0x54] sm:$0xf] %vm1006, %v899
  %1029 = vst.msk [vmem:[%s53 + $0x58] sm:$0xf] %vm1006, %v900
  %1030 = vst.msk [vmem:[%s53 + $0x5c] sm:$0xf] %vm1006, %v901
  %1031 = vst.msk [vmem:[%s53 + $0x60] sm:$0xf] %vm1006, %v902
  %1032 = vst.msk [vmem:[%s53 + $0x64] sm:$0xf] %vm1006, %v903
  %1033 = vst.msk [vmem:[%s53 + $0x68] sm:$0xf] %vm1006, %v904
  %1034 = vst.msk [vmem:[%s53 + $0x6c] sm:$0xf] %vm1006, %v905
  %1035 = vst.msk [vmem:[%s53 + $0x70] sm:$0xf] %vm1006, %v906
  %1036 = vst.msk [vmem:[%s53 + $0x74] sm:$0xf] %vm1006, %v907
  %1037 = vst.msk [vmem:[%s53 + $0x78] sm:$0xf] %vm1006, %v908
  %1038 = vst.msk [vmem:[%s53 + $0x7c] sm:$0xf] %vm1006, %v909
  %1039 = vst.msk [vmem:[%s53 + $0x80] sm:$0xf] %vm1006, %v910
  %1040 = vst.msk [vmem:[%s53 + $0x84] sm:$0xf] %vm1006, %v911
  %1041 = vst.msk [vmem:[%s53 + $0x88] sm:$0xf] %vm1006, %v912
  %1042 = vst.msk [vmem:[%s53 + $0x8c] sm:$0xf] %vm1006, %v913
  %1043 = vst.msk [vmem:[%s53 + $0x90] sm:$0xf] %vm1006, %v914
  %1044 = vst.msk [vmem:[%s53 + $0x94] sm:$0xf] %vm1006, %v915
  %1045 = vst.msk [vmem:[%s53 + $0x98] sm:$0xf] %vm1006, %v916
  %1046 = vst.msk [vmem:[%s53 + $0x9c] sm:$0xf] %vm1006, %v917
  %1047 = vst.msk [vmem:[%s53 + $0xa0] sm:$0xf] %vm1006, %v918
  %1048 = vst.msk [vmem:[%s53 + $0xa4] sm:$0xf] %vm1006, %v919
  %1049 = vst.msk [vmem:[%s53 + $0xa8] sm:$0xf] %vm1006, %v920
  %1050 = vst.msk [vmem:[%s53 + $0xac] sm:$0xf] %vm1006, %v921
  %1051 = vst.msk [vmem:[%s53 + $0xb0] sm:$0xf] %vm1006, %v922
  %1052 = vst.msk [vmem:[%s53 + $0xb4] sm:$0xf] %vm1006, %v923
  %1053 = vst.msk [vmem:[%s53 + $0xb8] sm:$0xf] %vm1006, %v924
  %1054 = vst.msk [vmem:[%s53 + $0xbc] sm:$0xf] %vm1006, %v925
  %1055 = vst.msk [vmem:[%s53 + $0xc0] sm:$0xf] %vm1006, %v926
  %1056 = vst.msk [vmem:[%s53 + $0xc4] sm:$0xf] %vm1006, %v927
  %1057 = vst.msk [vmem:[%s53 + $0xc8] sm:$0xf] %vm1006, %v928
  %1058 = vst.msk [vmem:[%s53 + $0xcc] sm:$0xf] %vm1006, %v929
  %1059 = vst.msk [vmem:[%s53 + $0xd0] sm:$0xf] %vm1006, %v930
  %1060 = vst.msk [vmem:[%s53 + $0xd4] sm:$0xf] %vm1006, %v931
  %1061 = vst.msk [vmem:[%s53 + $0xd8] sm:$0xf] %vm1006, %v932
  %1062 = vst.msk [vmem:[%s53 + $0xdc] sm:$0xf] %vm1006, %v933
  %1063 = vst.msk [vmem:[%s53 + $0xe0] sm:$0xf] %vm1006, %v934
  %1064 = vst.msk [vmem:[%s53 + $0xe4] sm:$0xf] %vm1006, %v935
  %1065 = vst.msk [vmem:[%s53 + $0xe8] sm:$0xf] %vm1006, %v936
  %1066 = vst.msk [vmem:[%s53 + $0xec] sm:$0xf] %vm1006, %v937
  %1067 = vst.msk [vmem:[%s53 + $0xf0] sm:$0xf] %vm1006, %v938
  %1068 = vst.msk [vmem:[%s53 + $0xf4] sm:$0xf] %vm1006, %v939
  %1069 = vst.msk [vmem:[%s53 + $0xf8] sm:$0xf] %vm1006, %v940
  %1070 = vst.msk [vmem:[%s53 + $0xfc] sm:$0xf] %vm1006, %v941
  %vm1071 = vcmask 261120
  %v1072 = vsel %vm1071, %v496, 0.0
  %v1073 = vsel %vm1071, %v499, 0.0
  %v1074 = vadd.f32 %v1072, %v1073
  %v1075 = vsel %vm1071, %v504, 0.0
  %v1076 = vadd.f32 %v1074, %v1075
  %v1077 = vsel %vm1071, %v507, 0.0
  %v1078 = vadd.f32 %v1076, %v1077
  %v1079 = vsel %vm1071, %v512, 0.0
  %v1080 = vadd.f32 %v1078, %v1079
  %v1081 = vsel %vm1071, %v515, 0.0
  %v1082 = vadd.f32 %v1080, %v1081
  %v1083 = vsel %vm1071, %v520, 0.0
  %v1084 = vadd.f32 %v1082, %v1083
  %v1085 = vsel %vm1071, %v523, 0.0
  %v1086 = vadd.f32 %v1084, %v1085
  %v1087 = vsel %vm1071, %v528, 0.0
  %v1088 = vadd.f32 %v1086, %v1087
  %v1089 = vsel %vm1071, %v531, 0.0
  %v1090 = vadd.f32 %v1088, %v1089
  %v1091 = vsel %vm1071, %v536, 0.0
  %v1092 = vadd.f32 %v1090, %v1091
  %v1093 = vsel %vm1071, %v539, 0.0
  %v1094 = vadd.f32 %v1092, %v1093
  %v1095 = vsel %vm1071, %v544, 0.0
  %v1096 = vadd.f32 %v1094, %v1095
  %v1097 = vsel %vm1071, %v547, 0.0
  %v1098 = vadd.f32 %v1096, %v1097
  %v1099 = vsel %vm1071, %v552, 0.0
  %v1100 = vadd.f32 %v1098, %v1099
  %v1101 = vsel %vm1071, %v555, 0.0
  %v1102 = vadd.f32 %v1100, %v1101
  %v1103 = vsel %vm1071, %v560, 0.0
  %v1104 = vadd.f32 %v1102, %v1103
  %v1105 = vsel %vm1071, %v563, 0.0
  %v1106 = vadd.f32 %v1104, %v1105
  %v1107 = vsel %vm1071, %v568, 0.0
  %v1108 = vadd.f32 %v1106, %v1107
  %v1109 = vsel %vm1071, %v571, 0.0
  %v1110 = vadd.f32 %v1108, %v1109
  %v1111 = vsel %vm1071, %v576, 0.0
  %v1112 = vadd.f32 %v1110, %v1111
  %v1113 = vsel %vm1071, %v579, 0.0
  %v1114 = vadd.f32 %v1112, %v1113
  %v1115 = vsel %vm1071, %v584, 0.0
  %v1116 = vadd.f32 %v1114, %v1115
  %v1117 = vsel %vm1071, %v587, 0.0
  %v1118 = vadd.f32 %v1116, %v1117
  %v1119 = vsel %vm1071, %v592, 0.0
  %v1120 = vadd.f32 %v1118, %v1119
  %v1121 = vsel %vm1071, %v595, 0.0
  %v1122 = vadd.f32 %v1120, %v1121
  %v1123 = vsel %vm1071, %v600, 0.0
  %v1124 = vadd.f32 %v1122, %v1123
  %v1125 = vsel %vm1071, %v603, 0.0
  %v1126 = vadd.f32 %v1124, %v1125
  %v1127 = vsel %vm1071, %v608, 0.0
  %v1128 = vadd.f32 %v1126, %v1127
  %v1129 = vsel %vm1071, %v611, 0.0
  %v1130 = vadd.f32 %v1128, %v1129
  %v1131 = vsel %vm1071, %v616, 0.0
  %v1132 = vadd.f32 %v1130, %v1131
  %v1133 = vsel %vm1071, %v619, 0.0
  %v1134 = vadd.f32 %v1132, %v1133
  %v1135 = vsel %vm1071, %v624, 0.0
  %v1136 = vadd.f32 %v1134, %v1135
  %v1137 = vsel %vm1071, %v627, 0.0
  %v1138 = vadd.f32 %v1136, %v1137
  %v1139 = vsel %vm1071, %v632, 0.0
  %v1140 = vadd.f32 %v1138, %v1139
  %v1141 = vsel %vm1071, %v635, 0.0
  %v1142 = vadd.f32 %v1140, %v1141
  %v1143 = vsel %vm1071, %v640, 0.0
  %v1144 = vadd.f32 %v1142, %v1143
  %v1145 = vsel %vm1071, %v643, 0.0
  %v1146 = vadd.f32 %v1144, %v1145
  %v1147 = vsel %vm1071, %v648, 0.0
  %v1148 = vadd.f32 %v1146, %v1147
  %v1149 = vsel %vm1071, %v651, 0.0
  %v1150 = vadd.f32 %v1148, %v1149
  %v1151 = vsel %vm1071, %v656, 0.0
  %v1152 = vadd.f32 %v1150, %v1151
  %v1153 = vsel %vm1071, %v659, 0.0
  %v1154 = vadd.f32 %v1152, %v1153
  %v1155 = vsel %vm1071, %v664, 0.0
  %v1156 = vadd.f32 %v1154, %v1155
  %v1157 = vsel %vm1071, %v667, 0.0
  %v1158 = vadd.f32 %v1156, %v1157
  %v1159 = vsel %vm1071, %v672, 0.0
  %v1160 = vadd.f32 %v1158, %v1159
  %v1161 = vsel %vm1071, %v675, 0.0
  %v1162 = vadd.f32 %v1160, %v1161
  %v1163 = vsel %vm1071, %v680, 0.0
  %v1164 = vadd.f32 %v1162, %v1163
  %v1165 = vsel %vm1071, %v683, 0.0
  %v1166 = vadd.f32 %v1164, %v1165
  %v1167 = vsel %vm1071, %v688, 0.0
  %v1168 = vadd.f32 %v1166, %v1167
  %v1169 = vsel %vm1071, %v691, 0.0
  %v1170 = vadd.f32 %v1168, %v1169
  %v1171 = vsel %vm1071, %v696, 0.0
  %v1172 = vadd.f32 %v1170, %v1171
  %v1173 = vsel %vm1071, %v699, 0.0
  %v1174 = vadd.f32 %v1172, %v1173
  %v1175 = vsel %vm1071, %v704, 0.0
  %v1176 = vadd.f32 %v1174, %v1175
  %v1177 = vsel %vm1071, %v707, 0.0
  %v1178 = vadd.f32 %v1176, %v1177
  %v1179 = vsel %vm1071, %v712, 0.0
  %v1180 = vadd.f32 %v1178, %v1179
  %v1181 = vsel %vm1071, %v715, 0.0
  %v1182 = vadd.f32 %v1180, %v1181
  %v1183 = vsel %vm1071, %v720, 0.0
  %v1184 = vadd.f32 %v1182, %v1183
  %v1185 = vsel %vm1071, %v723, 0.0
  %v1186 = vadd.f32 %v1184, %v1185
  %v1187 = vsel %vm1071, %v728, 0.0
  %v1188 = vadd.f32 %v1186, %v1187
  %v1189 = vsel %vm1071, %v731, 0.0
  %v1190 = vadd.f32 %v1188, %v1189
  %v1191 = vsel %vm1071, %v736, 0.0
  %v1192 = vadd.f32 %v1190, %v1191
  %v1193 = vsel %vm1071, %v739, 0.0
  %v1194 = vadd.f32 %v1192, %v1193
  %v1195 = vsel %vm1071, %v744, 0.0
  %v1196 = vadd.f32 %v1194, %v1195
  %v1197 = vsel %vm1071, %v747, 0.0
  %v1198 = vadd.f32 %v1196, %v1197
  %v1199 = vrot.slane %v1198, 4
  %v1200 = vadd.f32 %v1198, %v1199
  %v1201 = vrot.slane %v1200, 2
  %v1202 = vadd.f32 %v1200, %v1201
  %v1203 = vrot.slane %v1202, 1
  %v1204 = vadd.f32 %v1202, %v1203
  %v1205 = vmul.f32 %v496, %v496
  %v1206 = vmul.f32 %v499, %v499
  %v1207 = vmul.f32 %v504, %v504
  %v1208 = vmul.f32 %v507, %v507
  %v1209 = vmul.f32 %v512, %v512
  %v1210 = vmul.f32 %v515, %v515
  %v1211 = vmul.f32 %v520, %v520
  %v1212 = vmul.f32 %v523, %v523
  %v1213 = vmul.f32 %v528, %v528
  %v1214 = vmul.f32 %v531, %v531
  %v1215 = vmul.f32 %v536, %v536
  %v1216 = vmul.f32 %v539, %v539
  %v1217 = vmul.f32 %v544, %v544
  %v1218 = vmul.f32 %v547, %v547
  %v1219 = vmul.f32 %v552, %v552
  %v1220 = vmul.f32 %v555, %v555
  %v1221 = vmul.f32 %v560, %v560
  %v1222 = vmul.f32 %v563, %v563
  %v1223 = vmul.f32 %v568, %v568
  %v1224 = vmul.f32 %v571, %v571
  %v1225 = vmul.f32 %v576, %v576
  %v1226 = vmul.f32 %v579, %v579
  %v1227 = vmul.f32 %v584, %v584
  %v1228 = vmul.f32 %v587, %v587
  %v1229 = vmul.f32 %v592, %v592
  %v1230 = vmul.f32 %v595, %v595
  %v1231 = vmul.f32 %v600, %v600
  %v1232 = vmul.f32 %v603, %v603
  %v1233 = vmul.f32 %v608, %v608
  %v1234 = vmul.f32 %v611, %v611
  %v1235 = vmul.f32 %v616, %v616
  %v1236 = vmul.f32 %v619, %v619
  %v1237 = vmul.f32 %v624, %v624
  %v1238 = vmul.f32 %v627, %v627
  %v1239 = vmul.f32 %v632, %v632
  %v1240 = vmul.f32 %v635, %v635
  %v1241 = vmul.f32 %v640, %v640
  %v1242 = vmul.f32 %v643, %v643
  %v1243 = vmul.f32 %v648, %v648
  %v1244 = vmul.f32 %v651, %v651
  %v1245 = vmul.f32 %v656, %v656
  %v1246 = vmul.f32 %v659, %v659
  %v1247 = vmul.f32 %v664, %v664
  %v1248 = vmul.f32 %v667, %v667
  %v1249 = vmul.f32 %v672, %v672
  %v1250 = vmul.f32 %v675, %v675
  %v1251 = vmul.f32 %v680, %v680
  %v1252 = vmul.f32 %v683, %v683
  %v1253 = vmul.f32 %v688, %v688
  %v1254 = vmul.f32 %v691, %v691
  %v1255 = vmul.f32 %v696, %v696
  %v1256 = vmul.f32 %v699, %v699
  %v1257 = vmul.f32 %v704, %v704
  %v1258 = vmul.f32 %v707, %v707
  %v1259 = vmul.f32 %v712, %v712
  %v1260 = vmul.f32 %v715, %v715
  %v1261 = vmul.f32 %v720, %v720
  %v1262 = vmul.f32 %v723, %v723
  %v1263 = vmul.f32 %v728, %v728
  %v1264 = vmul.f32 %v731, %v731
  %v1265 = vmul.f32 %v736, %v736
  %v1266 = vmul.f32 %v739, %v739
  %v1267 = vmul.f32 %v744, %v744
  %v1268 = vmul.f32 %v747, %v747
  %v1269 = vsel %vm1071, %v1205, 0.0
  %v1270 = vsel %vm1071, %v1206, 0.0
  %v1271 = vadd.f32 %v1269, %v1270
  %v1272 = vsel %vm1071, %v1207, 0.0
  %v1273 = vadd.f32 %v1271, %v1272
  %v1274 = vsel %vm1071, %v1208, 0.0
  %v1275 = vadd.f32 %v1273, %v1274
  %v1276 = vsel %vm1071, %v1209, 0.0
  %v1277 = vadd.f32 %v1275, %v1276
  %v1278 = vsel %vm1071, %v1210, 0.0
  %v1279 = vadd.f32 %v1277, %v1278
  %v1280 = vsel %vm1071, %v1211, 0.0
  %v1281 = vadd.f32 %v1279, %v1280
  %v1282 = vsel %vm1071, %v1212, 0.0
  %v1283 = vadd.f32 %v1281, %v1282
  %v1284 = vsel %vm1071, %v1213, 0.0
  %v1285 = vadd.f32 %v1283, %v1284
  %v1286 = vsel %vm1071, %v1214, 0.0
  %v1287 = vadd.f32 %v1285, %v1286
  %v1288 = vsel %vm1071, %v1215, 0.0
  %v1289 = vadd.f32 %v1287, %v1288
  %v1290 = vsel %vm1071, %v1216, 0.0
  %v1291 = vadd.f32 %v1289, %v1290
  %v1292 = vsel %vm1071, %v1217, 0.0
  %v1293 = vadd.f32 %v1291, %v1292
  %v1294 = vsel %vm1071, %v1218, 0.0
  %v1295 = vadd.f32 %v1293, %v1294
  %v1296 = vsel %vm1071, %v1219, 0.0
  %v1297 = vadd.f32 %v1295, %v1296
  %v1298 = vsel %vm1071, %v1220, 0.0
  %v1299 = vadd.f32 %v1297, %v1298
  %v1300 = vsel %vm1071, %v1221, 0.0
  %v1301 = vadd.f32 %v1299, %v1300
  %v1302 = vsel %vm1071, %v1222, 0.0
  %v1303 = vadd.f32 %v1301, %v1302
  %v1304 = vsel %vm1071, %v1223, 0.0
  %v1305 = vadd.f32 %v1303, %v1304
  %v1306 = vsel %vm1071, %v1224, 0.0
  %v1307 = vadd.f32 %v1305, %v1306
  %v1308 = vsel %vm1071, %v1225, 0.0
  %v1309 = vadd.f32 %v1307, %v1308
  %v1310 = vsel %vm1071, %v1226, 0.0
  %v1311 = vadd.f32 %v1309, %v1310
  %v1312 = vsel %vm1071, %v1227, 0.0
  %v1313 = vadd.f32 %v1311, %v1312
  %v1314 = vsel %vm1071, %v1228, 0.0
  %v1315 = vadd.f32 %v1313, %v1314
  %v1316 = vsel %vm1071, %v1229, 0.0
  %v1317 = vadd.f32 %v1315, %v1316
  %v1318 = vsel %vm1071, %v1230, 0.0
  %v1319 = vadd.f32 %v1317, %v1318
  %v1320 = vsel %vm1071, %v1231, 0.0
  %v1321 = vadd.f32 %v1319, %v1320
  %v1322 = vsel %vm1071, %v1232, 0.0
  %v1323 = vadd.f32 %v1321, %v1322
  %v1324 = vsel %vm1071, %v1233, 0.0
  %v1325 = vadd.f32 %v1323, %v1324
  %v1326 = vsel %vm1071, %v1234, 0.0
  %v1327 = vadd.f32 %v1325, %v1326
  %v1328 = vsel %vm1071, %v1235, 0.0
  %v1329 = vadd.f32 %v1327, %v1328
  %v1330 = vsel %vm1071, %v1236, 0.0
  %v1331 = vadd.f32 %v1329, %v1330
  %v1332 = vsel %vm1071, %v1237, 0.0
  %v1333 = vadd.f32 %v1331, %v1332
  %v1334 = vsel %vm1071, %v1238, 0.0
  %v1335 = vadd.f32 %v1333, %v1334
  %v1336 = vsel %vm1071, %v1239, 0.0
  %v1337 = vadd.f32 %v1335, %v1336
  %v1338 = vsel %vm1071, %v1240, 0.0
  %v1339 = vadd.f32 %v1337, %v1338
  %v1340 = vsel %vm1071, %v1241, 0.0
  %v1341 = vadd.f32 %v1339, %v1340
  %v1342 = vsel %vm1071, %v1242, 0.0
  %v1343 = vadd.f32 %v1341, %v1342
  %v1344 = vsel %vm1071, %v1243, 0.0
  %v1345 = vadd.f32 %v1343, %v1344
  %v1346 = vsel %vm1071, %v1244, 0.0
  %v1347 = vadd.f32 %v1345, %v1346
  %v1348 = vsel %vm1071, %v1245, 0.0
  %v1349 = vadd.f32 %v1347, %v1348
  %v1350 = vsel %vm1071, %v1246, 0.0
  %v1351 = vadd.f32 %v1349, %v1350
  %v1352 = vsel %vm1071, %v1247, 0.0
  %v1353 = vadd.f32 %v1351, %v1352
  %v1354 = vsel %vm1071, %v1248, 0.0
  %v1355 = vadd.f32 %v1353, %v1354
  %v1356 = vsel %vm1071, %v1249, 0.0
  %v1357 = vadd.f32 %v1355, %v1356
  %v1358 = vsel %vm1071, %v1250, 0.0
  %v1359 = vadd.f32 %v1357, %v1358
  %v1360 = vsel %vm1071, %v1251, 0.0
  %v1361 = vadd.f32 %v1359, %v1360
  %v1362 = vsel %vm1071, %v1252, 0.0
  %v1363 = vadd.f32 %v1361, %v1362
  %v1364 = vsel %vm1071, %v1253, 0.0
  %v1365 = vadd.f32 %v1363, %v1364
  %v1366 = vsel %vm1071, %v1254, 0.0
  %v1367 = vadd.f32 %v1365, %v1366
  %v1368 = vsel %vm1071, %v1255, 0.0
  %v1369 = vadd.f32 %v1367, %v1368
  %v1370 = vsel %vm1071, %v1256, 0.0
  %v1371 = vadd.f32 %v1369, %v1370
  %v1372 = vsel %vm1071, %v1257, 0.0
  %v1373 = vadd.f32 %v1371, %v1372
  %v1374 = vsel %vm1071, %v1258, 0.0
  %v1375 = vadd.f32 %v1373, %v1374
  %v1376 = vsel %vm1071, %v1259, 0.0
  %v1377 = vadd.f32 %v1375, %v1376
  %v1378 = vsel %vm1071, %v1260, 0.0
  %v1379 = vadd.f32 %v1377, %v1378
  %v1380 = vsel %vm1071, %v1261, 0.0
  %v1381 = vadd.f32 %v1379, %v1380
  %v1382 = vsel %vm1071, %v1262, 0.0
  %v1383 = vadd.f32 %v1381, %v1382
  %v1384 = vsel %vm1071, %v1263, 0.0
  %v1385 = vadd.f32 %v1383, %v1384
  %v1386 = vsel %vm1071, %v1264, 0.0
  %v1387 = vadd.f32 %v1385, %v1386
  %v1388 = vsel %vm1071, %v1265, 0.0
  %v1389 = vadd.f32 %v1387, %v1388
  %v1390 = vsel %vm1071, %v1266, 0.0
  %v1391 = vadd.f32 %v1389, %v1390
  %v1392 = vsel %vm1071, %v1267, 0.0
  %v1393 = vadd.f32 %v1391, %v1392
  %v1394 = vsel %vm1071, %v1268, 0.0
  %v1395 = vadd.f32 %v1393, %v1394
  %v1396 = vrot.slane %v1395, 4
  %v1397 = vadd.f32 %v1395, %v1396
  %v1398 = vrot.slane %v1397, 2
  %v1399 = vadd.f32 %v1397, %v1398
  %v1400 = vrot.slane %v1399, 1
  %v1401 = vadd.f32 %v1399, %v1400
  %p1402 = scmp.eq.s32.totalorder 0, 0
  // Predicated region
  $region18: #{dense_layer_forward.4} parent=0 // pred_check
    %p1403 = pneg %p1402
  $region19: #{dense_layer_forward.4} parent=0 // pred_check_branch
    %1405 = sbr.rel (%p1403) target = $region21
  $region20: #{dense_layer_forward.4} parent=0 // pred_region
    %vm1406 = vcmask 253952
    %1407 = vst.msk [vmem:[%s5] sm:$0x1] %vm1406, %v1204
    %1408 = vst.msk [vmem:[%s6] sm:$0x1] %vm1406, %v1401
  $region21: #{dense_layer_forward.4} parent=0 // pred_fallthru
    _
  %p1409 = scmp.gt.s32.totalorder 0, 0
  // Predicated region
  $region22: #{dense_layer_forward.4} parent=0 // pred_check
    %p1410 = pneg %p1409
  $region23: #{dense_layer_forward.4} parent=0 // pred_check_branch
    %1412 = sbr.rel (%p1410) target = $region25
  $region24: #{dense_layer_forward.4} parent=0 // pred_region
    %v1413 = vld [vmem:[%s5] sm:$0x1]
    %v1414 = vadd.f32 %v1413, %v1204
    %vm1415 = vcmask 253952
    %1416 = vst.msk [vmem:[%s5] sm:$0x1] %vm1415, %v1414
    %v1417 = vld [vmem:[%s6] sm:$0x1]
    %v1418 = vadd.f32 %v1417, %v1401
    %1419 = vst.msk [vmem:[%s6] sm:$0x1] %vm1415, %v1418
  $region25: #{dense_layer_forward.4} parent=0 // pred_fallthru
    _
  %s1420 = sadd.s32 0, 0
  %s1421 = smul.u32 64, %s1420
  %p1422 = scmp.lt.s32.totalorder %s1421, 63
  %s1423 = scalar_select %p1422, %s1421, 63
  %s1424 = smul.addr %s1423, 4
  %s1425 = scalar_lea.vmem %s4, %s1424
  // Predicated region
  $region26: #{dense_layer_forward.4} parent=0 // pred_check
    _
  $region27: #{dense_layer_forward.4} parent=0 // pred_check_branch
    %1427 = sbr.rel (0) target = $region29
  $region28: #{dense_layer_forward.4} parent=0 // pred_region
    %s1428 = sadd.s32 0, 0
    %s1429 = smul.u32 64, %s1428
  $region29: #{dense_layer_forward.4} parent=0 // pred_fallthru
    _
  // Predicated region
  $region30: #{dense_layer_forward.4} parent=0 // pred_check
    _
  $region31: #{dense_layer_forward.4} parent=0 // pred_check_branch
    %1431 = sbr.rel (0) target = $region33
  $region32: #{dense_layer_forward.4} parent=0 // pred_region
    _
  $region33: #{dense_layer_forward.4} parent=0 // pred_fallthru
    _
  // Predicated region
  $region34: #{dense_layer_forward.4} parent=0 // pred_check
    _
  $region35: #{dense_layer_forward.4} parent=0 // pred_check_branch
    %1433 = sbr.rel (0) target = $region37
  $region36: #{dense_layer_forward.4} parent=0 // pred_region
    _
  $region37: #{dense_layer_forward.4} parent=0 // pred_fallthru
    _
  // Predicated region
  $region38: #{dense_layer_forward.4} parent=0 // pred_check
    _
  $region39: #{dense_layer_forward.4} parent=0 // pred_check_branch
    %1435 = sbr.rel (0) target = $region41
  $region40: #{dense_layer_forward.4} parent=0 // pred_region
    %s1436 = sadd.s32 0, 0
    %s1437 = smul.u32 64, %s1436
    %p1438 = scmp.lt.s32.totalorder %s1437, 63
    %s1439 = scalar_select %p1438, %s1437, 63
    %s1440 = smul.addr %s1439, 4
    %s1441 = scalar_lea.vmem %s4, %s1440
  $region41: #{dense_layer_forward.4} parent=0 // pred_fallthru
    _
  // Predicated region
  $region42: #{dense_layer_forward.4} parent=0 // pred_check
    _
  $region43: #{dense_layer_forward.4} parent=0 // pred_check_branch
    %1443 = sbr.rel (0) target = $region45
  $region44: #{dense_layer_forward.4} parent=0 // pred_region
    _
  $region45: #{dense_layer_forward.4} parent=0 // pred_fallthru
    _
  // Predicated region
  $region46: #{dense_layer_forward.4} parent=0 // pred_check
    _
  $region47: #{dense_layer_forward.4} parent=0 // pred_check_branch
    %1445 = sbr.rel (0) target = $region49
  $region48: #{dense_layer_forward.4} parent=0 // pred_region
    _
  $region49: #{dense_layer_forward.4} parent=0 // pred_fallthru
    _

// kernel: dense_layer_forward.5
$region0: #{dense_layer_forward.5}
  #allocation0 [shape = 'u32[]', space=smem, size = 0x4, offset = 0x4, fixed_abs, tag = 'smem constant byte address 0x4 - core index']
  #allocation1 [shape = 'u32[144,128]{1,0:T(1,128)}', space=vmem, size = 0x12000, scoped, tag = 'internal scratch']
  #allocation2 [shape = 'f32[18,18,32]{2,1,0:T(8,128)}', space=vmem, size = 0x36000, scoped, tag = 'scratch operand']
  #allocation3 [shape = 'bf16[2,256,96]{2,1,0:T(8,128)(2,1)}', space=vmem, size = 0x20000, scoped, tag = 'scratch operand']
  %s0 = inlined_call_operand.vmem [shape: bf16[512,32], index: 0, kind: input, shape index: {}]
  %s1 = inlined_call_operand.vmem [shape: f32[1,32], index: 1, kind: input, shape index: {}]
  %s2 = inlined_call_operand.vmem [shape: f32[1,32], index: 2, kind: input, shape index: {}]
  %s3 = inlined_call_operand.vmem [shape: bf16[288,8], index: 3, kind: input, shape index: {}]
  %s4 = inlined_call_operand.vmem [shape: f32[512,8], index: 4, kind: output, shape index: {}]
  %s5 = sld [smem:[#allocation0]]
  $region49: #{dense_layer_forward.5} parent=0
    _
  %s7 = ssub.s32 1, %s5
  %s8 = scalar_select 0, %s7, %s5
  loop: start=0, step=1, limit=4
  $region2: #{dense_layer_forward.5} parent=0 // loop_pre_header
    _
  $region3: #{dense_layer_forward.5} parent=0 // loop_header
    %s10 = sphi 0, %s14
    %p11 = scmp.ge.s32.totalorder %s10, 4
    %s20 = sphi 0, %s22
    %s23 = sphi 0, %s20
    %s24 = sphi 0, %s23
    %s40 = sphi 0, %s24
    %s44 = sphi 0, %s44
    %s46 = sphi 0, %s44
    %s47 = sphi 0, %s46
    %s61 = sphi 0, %s47
    %s65 = sphi 0, %s65
    %s67 = sphi 0, %s65
    %s68 = sphi 0, %s67
    %s82 = sphi 0, %s68
    %s86 = sphi 0, %s86
    %s88 = sphi 0, %s86
    %s89 = sphi 0, %s88
    %s103 = sphi 0, %s89
    %s109 = sphi 0, %s111
    %s112 = sphi 0, %s109
    %s113 = sphi 0, %s112
    %s129 = sphi 0, %s113
  $region4: #{dense_layer_forward.5} parent=0 // loop_header_branch
    %13 = sbr.rel (%p11) target = $region8
  $region5: #{dense_layer_forward.5} parent=0 // loop_body
    %s15 = ssub.s32 %s10, 1
    %s16 = ssub.s32 %s10, 2
    %s17 = sadd.s32 %s10, 1
    %s18 = ssub.s32 %s10, %s17
    %p19 = scmp.eq.s32.totalorder %s18, 0
    %s21 = sadd.s32 %s20, 1
    %s22 = scalar_select %p19, %s20, %s21
    %p25 = pneg %p19
    %p26 = scmp.eq.s32.totalorder %s10, 1
    %p27 = por %p25, %p26
    %p28 = scmp.ne.s32.totalorder %s20, %s23
    %p29 = scmp.eq.s32.totalorder %s10, 0
    %p30 = por %p28, %p29
    %p31 = scmp.ne.s32.totalorder %s20, %s23
    %p32 = scmp.eq.s32.totalorder %s15, 1
    %p33 = por %p31, %p32
    %p34 = scmp.ne.s32.totalorder %s23, %s24
    %p35 = scmp.eq.s32.totalorder %s15, 0
    %p36 = por %p34, %p35
    %p37 = scmp.ne.s32.totalorder %s23, %s24
    %p38 = scmp.eq.s32.totalorder %s16, 1
    %p39 = por %p37, %p38
    %p41 = scmp.ne.s32.totalorder %s24, %s40
    %p42 = scmp.eq.s32.totalorder %s16, 0
    %p43 = por %p41, %p42
    %s45 = sadd.s32 %s44, 1
    %p48 = scmp.eq.s32.totalorder %s10, 1
    %p49 = scmp.ne.s32.totalorder %s44, %s46
    %p50 = scmp.eq.s32.totalorder %s10, 0
    %p51 = por %p49, %p50
    %p52 = scmp.ne.s32.totalorder %s44, %s46
    %p53 = scmp.eq.s32.totalorder %s15, 1
    %p54 = por %p52, %p53
    %p55 = scmp.ne.s32.totalorder %s46, %s47
    %p56 = scmp.eq.s32.totalorder %s15, 0
    %p57 = por %p55, %p56
    %p58 = scmp.ne.s32.totalorder %s46, %s47
    %p59 = scmp.eq.s32.totalorder %s16, 1
    %p60 = por %p58, %p59
    %p62 = scmp.ne.s32.totalorder %s47, %s61
    %p63 = scmp.eq.s32.totalorder %s16, 0
    %p64 = por %p62, %p63
    %s66 = sadd.s32 %s65, 1
    %p69 = scmp.eq.s32.totalorder %s10, 1
    %p70 = scmp.ne.s32.totalorder %s65, %s67
    %p71 = scmp.eq.s32.totalorder %s10, 0
    %p72 = por %p70, %p71
    %p73 = scmp.ne.s32.totalorder %s65, %s67
    %p74 = scmp.eq.s32.totalorder %s15, 1
    %p75 = por %p73, %p74
    %p76 = scmp.ne.s32.totalorder %s67, %s68
    %p77 = scmp.eq.s32.totalorder %s15, 0
    %p78 = por %p76, %p77
    %p79 = scmp.ne.s32.totalorder %s67, %s68
    %p80 = scmp.eq.s32.totalorder %s16, 1
    %p81 = por %p79, %p80
    %p83 = scmp.ne.s32.totalorder %s68, %s82
    %p84 = scmp.eq.s32.totalorder %s16, 0
    %p85 = por %p83, %p84
    %s87 = sadd.s32 %s86, 1
    %p90 = scmp.eq.s32.totalorder %s10, 1
    %p91 = scmp.ne.s32.totalorder %s86, %s88
    %p92 = scmp.eq.s32.totalorder %s10, 0
    %p93 = por %p91, %p92
    %p94 = scmp.ne.s32.totalorder %s86, %s88
    %p95 = scmp.eq.s32.totalorder %s15, 1
    %p96 = por %p94, %p95
    %p97 = scmp.ne.s32.totalorder %s88, %s89
    %p98 = scmp.eq.s32.totalorder %s15, 0
    %p99 = por %p97, %p98
    %p100 = scmp.ne.s32.totalorder %s88, %s89
    %p101 = scmp.eq.s32.totalorder %s16, 1
    %p102 = por %p100, %p101
    %p104 = scmp.ne.s32.totalorder %s89, %s103
    %p105 = scmp.eq.s32.totalorder %s16, 0
    %p106 = por %p104, %p105
    %s107 = ssub.s32 %s10, %s17
    %p108 = scmp.eq.s32.totalorder %s107, 0
    %s110 = sadd.s32 %s109, 1
    %s111 = scalar_select %p108, %s109, %s110
    %p114 = pneg %p108
    %p115 = scmp.eq.s32.totalorder %s10, 1
    %p116 = por %p114, %p115
    %p117 = scmp.ne.s32.totalorder %s109, %s112
    %p118 = scmp.eq.s32.totalorder %s10, 0
    %p119 = por %p117, %p118
    %p120 = scmp.ne.s32.totalorder %s109, %s112
    %p121 = scmp.eq.s32.totalorder %s15, 1
    %p122 = por %p120, %p121
    %p123 = scmp.ne.s32.totalorder %s112, %s113
    %p124 = scmp.eq.s32.totalorder %s15, 0
    %p125 = por %p123, %p124
    %p126 = scmp.ne.s32.totalorder %s112, %s113
    %p127 = scmp.eq.s32.totalorder %s16, 1
    %p128 = por %p126, %p127
    %p130 = scmp.ne.s32.totalorder %s113, %s129
    %p131 = scmp.eq.s32.totalorder %s16, 0
    %p132 = por %p130, %p131
    %p133 = scmp.le.s32.totalorder 1, %s10
    %p134 = scmp.lt.s32.totalorder %s10, 3
    %p135 = pnand %p133, %p134
    %p136 = pneg %p135
    // Predicated region
    $region9: #{dense_layer_forward.5} parent=5 // pred_check
      _
    $region10: #{dense_layer_forward.5} parent=5 // pred_check_branch
      %138 = sbr.rel (%p135) target = $region12
    $region11: #{dense_layer_forward.5} parent=5 // pred_region
      %s139 = ssub.s32 %s10, 1
      // Predicated region
      $region13: #{dense_layer_forward.5} parent=11 // pred_check
        %p140 = pneg %p57
      $region14: #{dense_layer_forward.5} parent=11 // pred_check_branch
        %142 = sbr.rel (%p140) target = $region16
      $region15: #{dense_layer_forward.5} parent=11 // pred_region
        _
      $region16: #{dense_layer_forward.5} parent=11 // pred_fallthru
        _
      // Predicated region
      $region17: #{dense_layer_forward.5} parent=11 // pred_check
        %p143 = pneg %p78
      $region18: #{dense_layer_forward.5} parent=11 // pred_check_branch
        %145 = sbr.rel (%p143) target = $region20
      $region19: #{dense_layer_forward.5} parent=11 // pred_region
        _
      $region20: #{dense_layer_forward.5} parent=11 // pred_fallthru
        _
      // Predicated region
      $region21: #{dense_layer_forward.5} parent=11 // pred_check
        %p146 = pneg %p99
      $region22: #{dense_layer_forward.5} parent=11 // pred_check_branch
        %148 = sbr.rel (%p146) target = $region24
      $region23: #{dense_layer_forward.5} parent=11 // pred_region
        _
      $region24: #{dense_layer_forward.5} parent=11 // pred_fallthru
        _
    $region12: #{dense_layer_forward.5} parent=5 // pred_fallthru
      _
    %p149 = scmp.lt.s32.totalorder %s10, 2
    // Predicated region
    $region25: #{dense_layer_forward.5} parent=5 // pred_check
      %p150 = pneg %p149
    $region26: #{dense_layer_forward.5} parent=5 // pred_check_branch
      %152 = sbr.rel (%p150) target = $region28
    $region27: #{dense_layer_forward.5} parent=5 // pred_region
      // Predicated region
      $region29: #{dense_layer_forward.5} parent=27 // pred_check
        %p153 = pneg %p30
      $region30: #{dense_layer_forward.5} parent=27 // pred_check_branch
        %155 = sbr.rel (%p153) target = $region32
      $region31: #{dense_layer_forward.5} parent=27 // pred_region
        %s156 = smul.u32 32, %s10
        %p157 = scmp.lt.s32.totalorder %s156, 63
        %s158 = scalar_select %p157, %s156, 63
        %s159 = smul.addr %s158, 4
        %s160 = scalar_lea.vmem %s0, %s159
        %s161 = smul.u32 32, %s10
      $region32: #{dense_layer_forward.5} parent=27 // pred_fallthru
        _
    $region28: #{dense_layer_forward.5} parent=5 // pred_fallthru
      _
    %p162 = scmp.le.s32.totalorder 1, %s10
    %p163 = scmp.lt.s32.totalorder %s10, 3
    %p164 = pnand %p162, %p163
    %p165 = pneg %p164
    // Predicated region
    $region33: #{dense_layer_forward.5} parent=5 // pred_check
      _
    $region34: #{dense_layer_forward.5} parent=5 // pred_check_branch
      %167 = sbr.rel (%p164) target = $region36
    $region35: #{dense_layer_forward.5} parent=5 // pred_region
      %s168 = ssub.s32 %s10, 1
      %s169 = smul.u32 32, %s15
      %p170 = scmp.lt.s32.totalorder %s169, 63
      %s171 = scalar_select %p170, %s169, 63
      %s172 = smul.addr %s171, 4
      %s173 = scalar_lea.vmem %s0, %s172
      %p174 = pneg %p36
      %p175 = pneg %p33
      %p176 = pneg %p57
      %p177 = pneg %p54
      %p178 = pneg %p78
      %p179 = pneg %p75
      %p180 = pneg %p99
      %p181 = pneg %p96
      %p182 = pneg %p125
      %p183 = pneg %p122
      %s184 = smul.u32 32, %s15
      %p185 = scmp.lt.s32.totalorder %s184, 63
      %s186 = scalar_select %p185, %s184, 63
      %s187 = smul.addr %s186, 8
      %s188 = scalar_lea.vmem %s4, %s187
      %s189 = smul.u32 32, %s15
      %p190 = scmp.lt.s32.totalorder %s189, 63
      %s191 = scalar_select %p190, %s189, 63
      %s192 = smul.addr %s191, 4
      %s193 = scalar_lea.vmem %s0, %s192
      %s194 = smul.u32 32, %s15
      %s195 = smul.u32 32, %s15
      %p196 = scmp.lt.s32.totalorder %s195, 63
      %s197 = scalar_select %p196, %s195, 63
      %s198 = smul.addr %s197, 8
      %s199 = scalar_lea.vmem %s4, %s198
      %s200 = smul.u32 32, %s15
      %v202 = vld [vmem:[%s193] sm:$0xf]
      %v203 = vld [vmem:[%s193 + $0x4] sm:$0xf]
      %v204 = vld [vmem:[%s193 + $0x8] sm:$0xf]
      %v205 = vld [vmem:[%s193 + $0xc] sm:$0xf]
      %v206 = vld [vmem:[%s193 + $0x10] sm:$0xf]
      %v207 = vld [vmem:[%s193 + $0x14] sm:$0xf]
      %v208 = vld [vmem:[%s193 + $0x18] sm:$0xf]
      %v209 = vld [vmem:[%s193 + $0x1c] sm:$0xf]
      %v210 = vld [vmem:[%s193 + $0x20] sm:$0xf]
      %v211 = vld [vmem:[%s193 + $0x24] sm:$0xf]
      %v212 = vld [vmem:[%s193 + $0x28] sm:$0xf]
      %v213 = vld [vmem:[%s193 + $0x2c] sm:$0xf]
      %v214 = vld [vmem:[%s193 + $0x30] sm:$0xf]
      %v215 = vld [vmem:[%s193 + $0x34] sm:$0xf]
      %v216 = vld [vmem:[%s193 + $0x38] sm:$0xf]
      %v217 = vld [vmem:[%s193 + $0x3c] sm:$0xf]
      %v218 = vld [vmem:[%s193 + $0x40] sm:$0xf]
      %v219 = vld [vmem:[%s193 + $0x44] sm:$0xf]
      %v220 = vld [vmem:[%s193 + $0x48] sm:$0xf]
      %v221 = vld [vmem:[%s193 + $0x4c] sm:$0xf]
      %v222 = vld [vmem:[%s193 + $0x50] sm:$0xf]
      %v223 = vld [vmem:[%s193 + $0x54] sm:$0xf]
      %v224 = vld [vmem:[%s193 + $0x58] sm:$0xf]
      %v225 = vld [vmem:[%s193 + $0x5c] sm:$0xf]
      %v226 = vld [vmem:[%s193 + $0x60] sm:$0xf]
      %v227 = vld [vmem:[%s193 + $0x64] sm:$0xf]
      %v228 = vld [vmem:[%s193 + $0x68] sm:$0xf]
      %v229 = vld [vmem:[%s193 + $0x6c] sm:$0xf]
      %v230 = vld [vmem:[%s193 + $0x70] sm:$0xf]
      %v231 = vld [vmem:[%s193 + $0x74] sm:$0xf]
      %v232 = vld [vmem:[%s193 + $0x78] sm:$0xf]
      %v233 = vld [vmem:[%s193 + $0x7c] sm:$0xf]
      %v234 = vunpack.c.l.bf16 %v202
      %v235 = vunpack.c.l.bf16 %v203
      %v236 = vunpack.c.l.bf16 %v204
      %v237 = vunpack.c.l.bf16 %v205
      %v238 = vunpack.c.l.bf16 %v206
      %v239 = vunpack.c.l.bf16 %v207
      %v240 = vunpack.c.l.bf16 %v208
      %v241 = vunpack.c.l.bf16 %v209
      %v242 = vunpack.c.l.bf16 %v210
      %v243 = vunpack.c.l.bf16 %v211
      %v244 = vunpack.c.l.bf16 %v212
      %v245 = vunpack.c.l.bf16 %v213
      %v246 = vunpack.c.l.bf16 %v214
      %v247 = vunpack.c.l.bf16 %v215
      %v248 = vunpack.c.l.bf16 %v216
      %v249 = vunpack.c.l.bf16 %v217
      %v250 = vunpack.c.l.bf16 %v218
      %v251 = vunpack.c.l.bf16 %v219
      %v252 = vunpack.c.l.bf16 %v220
      %v253 = vunpack.c.l.bf16 %v221
      %v254 = vunpack.c.l.bf16 %v222
      %v255 = vunpack.c.l.bf16 %v223
      %v256 = vunpack.c.l.bf16 %v224
      %v257 = vunpack.c.l.bf16 %v225
      %v258 = vunpack.c.l.bf16 %v226
      %v259 = vunpack.c.l.bf16 %v227
      %v260 = vunpack.c.l.bf16 %v228
      %v261 = vunpack.c.l.bf16 %v229
      %v262 = vunpack.c.l.bf16 %v230
      %v263 = vunpack.c.l.bf16 %v231
      %v264 = vunpack.c.l.bf16 %v232
      %v265 = vunpack.c.l.bf16 %v233
      %v266 = vld [vmem:[%s1] sm:$0x1]
      %v268 = vlaneseq
      %v269 = vshrl.u32 %v268, 7
      %v270 = vsub.s32 0, %v269
      %v271 = vrot.slane %v266, %v270
      %v273 = vmul.f32 %v234, %v271
      %v274 = vmul.f32 %v235, %v271
      %v275 = vmul.f32 %v236, %v271
      %v276 = vmul.f32 %v237, %v271
      %v277 = vmul.f32 %v238, %v271
      %v278 = vmul.f32 %v239, %v271
      %v279 = vmul.f32 %v240, %v271
      %v280 = vmul.f32 %v241, %v271
      %v281 = vmul.f32 %v242, %v271
      %v282 = vmul.f32 %v243, %v271
      %v283 = vmul.f32 %v244, %v271
      %v284 = vmul.f32 %v245, %v271
      %v285 = vmul.f32 %v246, %v271
      %v286 = vmul.f32 %v247, %v271
      %v287 = vmul.f32 %v248, %v271
      %v288 = vmul.f32 %v249, %v271
      %v289 = vmul.f32 %v250, %v271
      %v290 = vmul.f32 %v251, %v271
      %v291 = vmul.f32 %v252, %v271
      %v292 = vmul.f32 %v253, %v271
      %v293 = vmul.f32 %v254, %v271
      %v294 = vmul.f32 %v255, %v271
      %v295 = vmul.f32 %v256, %v271
      %v296 = vmul.f32 %v257, %v271
      %v297 = vmul.f32 %v258, %v271
      %v298 = vmul.f32 %v259, %v271
      %v299 = vmul.f32 %v260, %v271
      %v300 = vmul.f32 %v261, %v271
      %v301 = vmul.f32 %v262, %v271
      %v302 = vmul.f32 %v263, %v271
      %v303 = vmul.f32 %v264, %v271
      %v304 = vmul.f32 %v265, %v271
      %v305 = vld [vmem:[%s2] sm:$0x1]
      %v307 = vlaneseq
      %v308 = vshrl.u32 %v307, 7
      %v309 = vsub.s32 0, %v308
      %v310 = vrot.slane %v305, %v309
      %v312 = vadd.f32 %v273, %v310
      %v313 = vadd.f32 %v274, %v310
      %v314 = vadd.f32 %v275, %v310
      %v315 = vadd.f32 %v276, %v310
      %v316 = vadd.f32 %v277, %v310
      %v317 = vadd.f32 %v278, %v310
      %v318 = vadd.f32 %v279, %v310
      %v319 = vadd.f32 %v280, %v310
      %v320 = vadd.f32 %v281, %v310
      %v321 = vadd.f32 %v282, %v310
      %v322 = vadd.f32 %v283, %v310
      %v323 = vadd.f32 %v284, %v310
      %v324 = vadd.f32 %v285, %v310
      %v325 = vadd.f32 %v286, %v310
      %v326 = vadd.f32 %v287, %v310
      %v327 = vadd.f32 %v288, %v310
      %v328 = vadd.f32 %v289, %v310
      %v329 = vadd.f32 %v290, %v310
      %v330 = vadd.f32 %v291, %v310
      %v331 = vadd.f32 %v292, %v310
      %v332 = vadd.f32 %v293, %v310
      %v333 = vadd.f32 %v294, %v310
      %v334 = vadd.f32 %v295, %v310
      %v335 = vadd.f32 %v296, %v310
      %v336 = vadd.f32 %v297, %v310
      %v337 = vadd.f32 %v298, %v310
      %v338 = vadd.f32 %v299, %v310
      %v339 = vadd.f32 %v300, %v310
      %v340 = vadd.f32 %v301, %v310
      %v341 = vadd.f32 %v302, %v310
      %v342 = vadd.f32 %v303, %v310
      %v343 = vadd.f32 %v304, %v310
      %v344 = vmax.f32 %v312, 0.0
      %v345 = vmax.f32 %v313, 0.0
      %v346 = vmax.f32 %v314, 0.0
      %v347 = vmax.f32 %v315, 0.0
      %v348 = vmax.f32 %v316, 0.0
      %v349 = vmax.f32 %v317, 0.0
      %v350 = vmax.f32 %v318, 0.0
      %v351 = vmax.f32 %v319, 0.0
      %v352 = vmax.f32 %v320, 0.0
      %v353 = vmax.f32 %v321, 0.0
      %v354 = vmax.f32 %v322, 0.0
      %v355 = vmax.f32 %v323, 0.0
      %v356 = vmax.f32 %v324, 0.0
      %v357 = vmax.f32 %v325, 0.0
      %v358 = vmax.f32 %v326, 0.0
      %v359 = vmax.f32 %v327, 0.0
      %v360 = vmax.f32 %v328, 0.0
      %v361 = vmax.f32 %v329, 0.0
      %v362 = vmax.f32 %v330, 0.0
      %v363 = vmax.f32 %v331, 0.0
      %v364 = vmax.f32 %v332, 0.0
      %v365 = vmax.f32 %v333, 0.0
      %v366 = vmax.f32 %v334, 0.0
      %v367 = vmax.f32 %v335, 0.0
      %v368 = vmax.f32 %v336, 0.0
      %v369 = vmax.f32 %v337, 0.0
      %v370 = vmax.f32 %v338, 0.0
      %v371 = vmax.f32 %v339, 0.0
      %v372 = vmax.f32 %v340, 0.0
      %v373 = vmax.f32 %v341, 0.0
      %v374 = vmax.f32 %v342, 0.0
      %v375 = vmax.f32 %v343, 0.0
      %vm376 = vcmask 261120
      %377 = vst.msk [vmem:[#allocation2] sm:$0xff] %vm376, 0.0
      %378 = vst.msk [vmem:[#allocation2 + $0x8] sm:$0xff] %vm376, 0.0
      %vm379 = vcmask 254976
      %380 = vst.msk [vmem:[#allocation2 + $0x10] sm:$0x3] %vm379, 0.0
      %s381 = scalar_lea.vmem [#allocation2], 408
      %382 = vst.msk [vmem:[%s381] sm:$0xff] %vm376, 0.0
      %383 = vst.msk [vmem:[%s381 + $0x8] sm:$0xff] %vm376, 0.0
      %384 = vst.msk [vmem:[%s381 + $0x10] sm:$0x3] %vm379, 0.0
      %vm385 = vcmask 253952
      %386 = vst.msk [vmem:[#allocation2] sm:$0x1] %vm385, 0.0
      %387 = vst.msk [vmem:[#allocation2 + $0x18] sm:$0x1] %vm385, 0.0
      %388 = vst.msk [vmem:[#allocation2 + $0x30] sm:$0x1] %vm385, 0.0
      %389 = vst.msk [vmem:[#allocation2 + $0x48] sm:$0x1] %vm385, 0.0
      %390 = vst.msk [vmem:[#allocation2 + $0x60] sm:$0x1] %vm385, 0.0
      %391 = vst.msk [vmem:[#allocation2 + $0x78] sm:$0x1] %vm385, 0.0
      %392 = vst.msk [vmem:[#allocation2 + $0x90] sm:$0x1] %vm385, 0.0
      %393 = vst.msk [vmem:[#allocation2 + $0xa8] sm:$0x1] %vm385, 0.0
      %394 = vst.msk [vmem:[#allocation2 + $0xc0] sm:$0x1] %vm385, 0.0
      %395 = vst.msk [vmem:[#allocation2 + $0xd8] sm:$0x1] %vm385, 0.0
      %396 = vst.msk [vmem:[#allocation2 + $0xf0] sm:$0x1] %vm385, 0.0
      %397 = vst.msk [vmem:[#allocation2 + $0x108] sm:$0x1] %vm385, 0.0
      %398 = vst.msk [vmem:[#allocation2 + $0x120] sm:$0x1] %vm385, 0.0
      %399 = vst.msk [vmem:[#allocation2 + $0x138] sm:$0x1] %vm385, 0.0
      %400 = vst.msk [vmem:[#allocation2 + $0x150] sm:$0x1] %vm385, 0.0
      %401 = vst.msk [vmem:[#allocation2 + $0x168] sm:$0x1] %vm385, 0.0
      %402 = vst.msk [vmem:[#allocation2 + $0x180] sm:$0x1] %vm385, 0.0
      %403 = vst.msk [vmem:[#allocation2 + $0x198] sm:$0x1] %vm385, 0.0
      %404 = vst.msk [vmem:[#allocation2 + $0x11] sm:$0x1] %vm385, 0.0
      %405 = vst.msk [vmem:[#allocation2 + $0x29] sm:$0x1] %vm385, 0.0
      %406 = vst.msk [vmem:[#allocation2 + $0x41] sm:$0x1] %vm385, 0.0
      %407 = vst.msk [vmem:[#allocation2 + $0x59] sm:$0x1] %vm385, 0.0
      %408 = vst.msk [vmem:[#allocation2 + $0x71] sm:$0x1] %vm385, 0.0
      %409 = vst.msk [vmem:[#allocation2 + $0x89] sm:$0x1] %vm385, 0.0
      %410 = vst.msk [vmem:[#allocation2 + $0xa1] sm:$0x1] %vm385, 0.0
      %411 = vst.msk [vmem:[#allocation2 + $0xb9] sm:$0x1] %vm385, 0.0
      %412 = vst.msk [vmem:[#allocation2 + $0xd1] sm:$0x1] %vm385, 0.0
      %413 = vst.msk [vmem:[#allocation2 + $0xe9] sm:$0x1] %vm385, 0.0
      %414 = vst.msk [vmem:[#allocation2 + $0x101] sm:$0x1] %vm385, 0.0
      %415 = vst.msk [vmem:[#allocation2 + $0x119] sm:$0x1] %vm385, 0.0
      %416 = vst.msk [vmem:[#allocation2 + $0x131] sm:$0x1] %vm385, 0.0
      %417 = vst.msk [vmem:[#allocation2 + $0x149] sm:$0x1] %vm385, 0.0
      %418 = vst.msk [vmem:[#allocation2 + $0x161] sm:$0x1] %vm385, 0.0
      %419 = vst.msk [vmem:[#allocation2 + $0x179] sm:$0x1] %vm385, 0.0
      %420 = vst.msk [vmem:[#allocation2 + $0x191] sm:$0x1] %vm385, 0.0
      %421 = vst.msk [vmem:[#allocation2 + $0x1a9] sm:$0x1] %vm385, 0.0
      %s422 = scalar_lea.vmem [#allocation2], 24
      %423 = vst.msk [vmem:[%s422 + $0x1] sm:$0xff] %vm376, %v344
      %424 = vst.msk [vmem:[%s422 + $0x9] sm:$0xff] %vm376, %v345
      %425 = vst.msk [vmem:[%s422 + $0x19] sm:$0xff] %vm376, %v346
      %426 = vst.msk [vmem:[%s422 + $0x21] sm:$0xff] %vm376, %v347
      %427 = vst.msk [vmem:[%s422 + $0x31] sm:$0xff] %vm376, %v348
      %428 = vst.msk [vmem:[%s422 + $0x39] sm:$0xff] %vm376, %v349
      %429 = vst.msk [vmem:[%s422 + $0x49] sm:$0xff] %vm376, %v350
      %430 = vst.msk [vmem:[%s422 + $0x51] sm:$0xff] %vm376, %v351
      %431 = vst.msk [vmem:[%s422 + $0x61] sm:$0xff] %vm376, %v352
      %432 = vst.msk [vmem:[%s422 + $0x69] sm:$0xff] %vm376, %v353
      %433 = vst.msk [vmem:[%s422 + $0x79] sm:$0xff] %vm376, %v354
      %434 = vst.msk [vmem:[%s422 + $0x81] sm:$0xff] %vm376, %v355
      %435 = vst.msk [vmem:[%s422 + $0x91] sm:$0xff] %vm376, %v356
      %436 = vst.msk [vmem:[%s422 + $0x99] sm:$0xff] %vm376, %v357
      %437 = vst.msk [vmem:[%s422 + $0xa9] sm:$0xff] %vm376, %v358
      %438 = vst.msk [vmem:[%s422 + $0xb1] sm:$0xff] %vm376, %v359
      %439 = vst.msk [vmem:[%s422 + $0xc1] sm:$0xff] %vm376, %v360
      %440 = vst.msk [vmem:[%s422 + $0xc9] sm:$0xff] %vm376, %v361
      %441 = vst.msk [vmem:[%s422 + $0xd9] sm:$0xff] %vm376, %v362
      %442 = vst.msk [vmem:[%s422 + $0xe1] sm:$0xff] %vm376, %v363
      %443 = vst.msk [vmem:[%s422 + $0xf1] sm:$0xff] %vm376, %v364
      %444 = vst.msk [vmem:[%s422 + $0xf9] sm:$0xff] %vm376, %v365
      %445 = vst.msk [vmem:[%s422 + $0x109] sm:$0xff] %vm376, %v366
      %446 = vst.msk [vmem:[%s422 + $0x111] sm:$0xff] %vm376, %v367
      %447 = vst.msk [vmem:[%s422 + $0x121] sm:$0xff] %vm376, %v368
      %448 = vst.msk [vmem:[%s422 + $0x129] sm:$0xff] %vm376, %v369
      %449 = vst.msk [vmem:[%s422 + $0x139] sm:$0xff] %vm376, %v370
      %450 = vst.msk [vmem:[%s422 + $0x141] sm:$0xff] %vm376, %v371
      %451 = vst.msk [vmem:[%s422 + $0x151] sm:$0xff] %vm376, %v372
      %452 = vst.msk [vmem:[%s422 + $0x159] sm:$0xff] %vm376, %v373
      %453 = vst.msk [vmem:[%s422 + $0x169] sm:$0xff] %vm376, %v374
      %454 = vst.msk [vmem:[%s422 + $0x171] sm:$0xff] %vm376, %v375
      %v455 = vld [vmem:[#allocation2] sm:$0xff]
      %v456 = vld [vmem:[#allocation2 + $0x8] sm:$0xff]
      %v457 = vld [vmem:[#allocation2 + $0x18] sm:$0xff]
      %v458 = vld [vmem:[#allocation2 + $0x20] sm:$0xff]
      %v459 = vld [vmem:[#allocation2 + $0x30] sm:$0xff]
      %v460 = vld [vmem:[#allocation2 + $0x38] sm:$0xff]
      %v461 = vld [vmem:[#allocation2 + $0x48] sm:$0xff]
      %v462 = vld [vmem:[#allocation2 + $0x50] sm:$0xff]
      %v463 = vld [vmem:[#allocation2 + $0x60] sm:$0xff]
      %v464 = vld [vmem:[#allocation2 + $0x68] sm:$0xff]
      %v465 = vld [vmem:[#allocation2 + $0x78] sm:$0xff]
      %v466 = vld [vmem:[#allocation2 + $0x80] sm:$0xff]
      %v467 = vld [vmem:[#allocation2 + $0x90] sm:$0xff]
      %v468 = vld [vmem:[#allocation2 + $0x98] sm:$0xff]
      %v469 = vld [vmem:[#allocation2 + $0xa8] sm:$0xff]
      %v470 = vld [vmem:[#allocation2 + $0xb0] sm:$0xff]
      %v471 = vld [vmem:[#allocation2 + $0xc0] sm:$0xff]
      %v472 = vld [vmem:[#allocation2 + $0xc8] sm:$0xff]
      %v473 = vld [vmem:[#allocation2 + $0xd8] sm:$0xff]
      %v474 = vld [vmem:[#allocation2 + $0xe0] sm:$0xff]
      %v475 = vld [vmem:[#allocation2 + $0xf0] sm:$0xff]
      %v476 = vld [vmem:[#allocation2 + $0xf8] sm:$0xff]
      %v477 = vld [vmem:[#allocation2 + $0x108] sm:$0xff]
      %v478 = vld [vmem:[#allocation2 + $0x110] sm:$0xff]
      %v479 = vld [vmem:[#allocation2 + $0x120] sm:$0xff]
      %v480 = vld [vmem:[#allocation2 + $0x128] sm:$0xff]
      %v481 = vld [vmem:[#allocation2 + $0x138] sm:$0xff]
      %v482 = vld [vmem:[#allocation2 + $0x140] sm:$0xff]
      %v483 = vld [vmem:[#allocation2 + $0x150] sm:$0xff]
      %v484 = vld [vmem:[#allocation2 + $0x158] sm:$0xff]
      %v485 = vld [vmem:[#allocation2 + $0x168] sm:$0xff]
      %v486 = vld [vmem:[#allocation2 + $0x170] sm:$0xff]
      %v487 = vpack.c.bf16 %v456, %v455
      %v488 = vpack.c.bf16 %v458, %v457
      %v489 = vpack.c.bf16 %v460, %v459
      %v490 = vpack.c.bf16 %v462, %v461
      %v491 = vpack.c.bf16 %v464, %v463
      %v492 = vpack.c.bf16 %v466, %v465
      %v493 = vpack.c.bf16 %v468, %v467
      %v494 = vpack.c.bf16 %v470, %v469
      %v495 = vpack.c.bf16 %v472, %v471
      %v496 = vpack.c.bf16 %v474, %v473
      %v497 = vpack.c.bf16 %v476, %v475
      %v498 = vpack.c.bf16 %v478, %v477
      %v499 = vpack.c.bf16 %v480, %v479
      %v500 = vpack.c.bf16 %v482, %v481
      %v501 = vpack.c.bf16 %v484, %v483
      %v502 = vpack.c.bf16 %v486, %v485
      %v519 = vunpack.c.l.b16 %v487
      %v520 = vunpack.c.h.b16 %v487
      %v521 = vunpack.c.l.b16 %v488
      %v522 = vunpack.c.h.b16 %v488
      %v523 = vunpack.c.l.b16 %v489
      %v524 = vunpack.c.h.b16 %v489
      %v525 = vunpack.c.l.b16 %v490
      %v526 = vunpack.c.h.b16 %v490
      %v527 = vunpack.c.l.b16 %v491
      %v528 = vunpack.c.h.b16 %v491
      %v529 = vunpack.c.l.b16 %v492
      %v530 = vunpack.c.h.b16 %v492
      %v531 = vunpack.c.l.b16 %v493
      %v532 = vunpack.c.h.b16 %v493
      %v533 = vunpack.c.l.b16 %v494
      %v534 = vunpack.c.h.b16 %v494
      %v535 = vunpack.c.l.b16 %v495
      %v536 = vunpack.c.h.b16 %v495
      %v537 = vunpack.c.l.b16 %v496
      %v538 = vunpack.c.h.b16 %v496
      %v539 = vunpack.c.l.b16 %v497
      %v540 = vunpack.c.h.b16 %v497
      %v541 = vunpack.c.l.b16 %v498
      %v542 = vunpack.c.h.b16 %v498
      %v543 = vunpack.c.l.b16 %v499
      %v544 = vunpack.c.h.b16 %v499
      %v545 = vunpack.c.l.b16 %v500
      %v546 = vunpack.c.h.b16 %v500
      %v547 = vunpack.c.l.b16 %v501
      %v548 = vunpack.c.h.b16 %v501
      %v549 = vunpack.c.l.b16 %v502
      %v550 = vunpack.c.h.b16 %v502
      %v551 = vpack.c.b16 %v519, %v519
      %v552 = vpack.c.b16 %v520, %v520
      %v553 = vpack.c.b16 %v521, %v521
      %v554 = vpack.c.b16 %v522, %v522
      %v555 = vpack.c.b16 %v523, %v523
      %v556 = vpack.c.b16 %v524, %v524
      %v557 = vpack.c.b16 %v525, %v525
      %v558 = vpack.c.b16 %v526, %v526
      %v559 = vpack.c.b16 %v527, %v527
      %v560 = vpack.c.b16 %v528, %v528
      %v561 = vpack.c.b16 %v529, %v529
      %v562 = vpack.c.b16 %v530, %v530
      %v563 = vpack.c.b16 %v531, %v531
      %v564 = vpack.c.b16 %v532, %v532
      %v565 = vpack.c.b16 %v533, %v533
      %v566 = vpack.c.b16 %v534, %v534
      %v567 = vpack.c.b16 %v535, %v535
      %v568 = vpack.c.b16 %v536, %v536
      %v569 = vpack.c.b16 %v537, %v537
      %v570 = vpack.c.b16 %v538, %v538
      %v571 = vpack.c.b16 %v539, %v539
      %v572 = vpack.c.b16 %v540, %v540
      %v573 = vpack.c.b16 %v541, %v541
      %v574 = vpack.c.b16 %v542, %v542
      %v575 = vpack.c.b16 %v543, %v543
      %v576 = vpack.c.b16 %v544, %v544
      %v577 = vpack.c.b16 %v545, %v545
      %v578 = vpack.c.b16 %v546, %v546
      %v579 = vpack.c.b16 %v547, %v547
      %v580 = vpack.c.b16 %v548, %v548
      %v581 = vpack.c.b16 %v549, %v549
      %v582 = vpack.c.b16 %v550, %v550
      %vm615 = vcmask 257024
      %616 = vst.msk [vmem:[#allocation3] sm:$0xf] %vm615, %v551
      %617 = vst.msk [vmem:[#allocation3 + $0x4] sm:$0xf] %vm615, %v552
      %618 = vst.msk [vmem:[#allocation3 + $0x8] sm:$0xf] %vm615, %v553
      %619 = vst.msk [vmem:[#allocation3 + $0xc] sm:$0xf] %vm615, %v554
      %620 = vst.msk [vmem:[#allocation3 + $0x10] sm:$0xf] %vm615, %v555
      %621 = vst.msk [vmem:[#allocation3 + $0x14] sm:$0xf] %vm615, %v556
      %622 = vst.msk [vmem:[#allocation3 + $0x18] sm:$0xf] %vm615, %v557
      %623 = vst.msk [vmem:[#allocation3 + $0x1c] sm:$0xf] %vm615, %v558
      %624 = vst.msk [vmem:[#allocation3 + $0x20] sm:$0xf] %vm615, %v559
      %625 = vst.msk [vmem:[#allocation3 + $0x24] sm:$0xf] %vm615, %v560
      %626 = vst.msk [vmem:[#allocation3 + $0x28] sm:$0xf] %vm615, %v561
      %627 = vst.msk [vmem:[#allocation3 + $0x2c] sm:$0xf] %vm615, %v562
      %628 = vst.msk [vmem:[#allocation3 + $0x30] sm:$0xf] %vm615, %v563
      %629 = vst.msk [vmem:[#allocation3 + $0x34] sm:$0xf] %vm615, %v564
      %630 = vst.msk [vmem:[#allocation3 + $0x38] sm:$0xf] %vm615, %v565
      %631 = vst.msk [vmem:[#allocation3 + $0x3c] sm:$0xf] %vm615, %v566
      %632 = vst.msk [vmem:[#allocation3 + $0x40] sm:$0xf] %vm615, %v567
      %633 = vst.msk [vmem:[#allocation3 + $0x44] sm:$0xf] %vm615, %v568
      %634 = vst.msk [vmem:[#allocation3 + $0x48] sm:$0xf] %vm615, %v569
      %635 = vst.msk [vmem:[#allocation3 + $0x4c] sm:$0xf] %vm615, %v570
      %636 = vst.msk [vmem:[#allocation3 + $0x50] sm:$0xf] %vm615, %v571
      %637 = vst.msk [vmem:[#allocation3 + $0x54] sm:$0xf] %vm615, %v572
      %638 = vst.msk [vmem:[#allocation3 + $0x58] sm:$0xf] %vm615, %v573
      %639 = vst.msk [vmem:[#allocation3 + $0x5c] sm:$0xf] %vm615, %v574
      %640 = vst.msk [vmem:[#allocation3 + $0x60] sm:$0xf] %vm615, %v575
      %641 = vst.msk [vmem:[#allocation3 + $0x64] sm:$0xf] %vm615, %v576
      %642 = vst.msk [vmem:[#allocation3 + $0x68] sm:$0xf] %vm615, %v577
      %643 = vst.msk [vmem:[#allocation3 + $0x6c] sm:$0xf] %vm615, %v578
      %644 = vst.msk [vmem:[#allocation3 + $0x70] sm:$0xf] %vm615, %v579
      %645 = vst.msk [vmem:[#allocation3 + $0x74] sm:$0xf] %vm615, %v580
      %646 = vst.msk [vmem:[#allocation3 + $0x78] sm:$0xf] %vm615, %v581
      %647 = vst.msk [vmem:[#allocation3 + $0x7c] sm:$0xf] %vm615, %v582
      %v648 = vld [vmem:[#allocation2 + $0x1] sm:$0xff]
      %v649 = vld [vmem:[#allocation2 + $0x9] sm:$0xff]
      %v650 = vld [vmem:[#allocation2 + $0x19] sm:$0xff]
      %v651 = vld [vmem:[#allocation2 + $0x21] sm:$0xff]
      %v652 = vld [vmem:[#allocation2 + $0x31] sm:$0xff]
      %v653 = vld [vmem:[#allocation2 + $0x39] sm:$0xff]
      %v654 = vld [vmem:[#allocation2 + $0x49] sm:$0xff]
      %v655 = vld [vmem:[#allocation2 + $0x51] sm:$0xff]
      %v656 = vld [vmem:[#allocation2 + $0x61] sm:$0xff]
      %v657 = vld [vmem:[#allocation2 + $0x69] sm:$0xff]
      %v658 = vld [vmem:[#allocation2 + $0x79] sm:$0xff]
      %v659 = vld [vmem:[#allocation2 + $0x81] sm:$0xff]
      %v660 = vld [vmem:[#allocation2 + $0x91] sm:$0xff]
      %v661 = vld [vmem:[#allocation2 + $0x99] sm:$0xff]
      %v662 = vld [vmem:[#allocation2 + $0xa9] sm:$0xff]
      %v663 = vld [vmem:[#allocation2 + $0xb1] sm:$0xff]
      %v664 = vld [vmem:[#allocation2 + $0xc1] sm:$0xff]
      %v665 = vld [vmem:[#allocation2 + $0xc9] sm:$0xff]
      %v666 = vld [vmem:[#allocation2 + $0xd9] sm:$0xff]
      %v667 = vld [vmem:[#allocation2 + $0xe1] sm:$0xff]
      %v668 = vld [vmem:[#allocation2 + $0xf1] sm:$0xff]
      %v669 = vld [vmem:[#allocation2 + $0xf9] sm:$0xff]
      %v670 = vld [vmem:[#allocation2 + $0x109] sm:$0xff]
      %v671 = vld [vmem:[#allocation2 + $0x111] sm:$0xff]
      %v672 = vld [vmem:[#allocation2 + $0x121] sm:$0xff]
      %v673 = vld [vmem:[#allocation2 + $0x129] sm:$0xff]
      %v674 = vld [vmem:[#allocation2 + $0x139] sm:$0xff]
      %v675 = vld [vmem:[#allocation2 + $0x141] sm:$0xff]
      %v676 = vld [vmem:[#allocation2 + $0x151] sm:$0xff]
      %v677 = vld [vmem:[#allocation2 + $0x159] sm:$0xff]
      %v678 = vld [vmem:[#allocation2 + $0x169] sm:$0xff]
      %v679 = vld [vmem:[#allocation2 + $0x171] sm:$0xff]
      %v680 = vpack.c.bf16 %v649, %v648
      %v681 = vpack.c.bf16 %v651, %v650
      %v682 = vpack.c.bf16 %v653, %v652
      %v683 = vpack.c.bf16 %v655, %v654
      %v684 = vpack.c.bf16 %v657, %v656
      %v685 = vpack.c.bf16 %v659, %v658
      %v686 = vpack.c.bf16 %v661, %v660
      %v687 = vpack.c.bf16 %v663, %v662
      %v688 = vpack.c.bf16 %v665, %v664
      %v689 = vpack.c.bf16 %v667, %v666
      %v690 = vpack.c.bf16 %v669, %v668
      %v691 = vpack.c.bf16 %v671, %v670
      %v692 = vpack.c.bf16 %v673, %v672
      %v693 = vpack.c.bf16 %v675, %v674
      %v694 = vpack.c.bf16 %v677, %v676
      %v695 = vpack.c.bf16 %v679, %v678
      %v712 = vunpack.c.l.b16 %v680
      %v713 = vunpack.c.h.b16 %v680
      %v714 = vunpack.c.l.b16 %v681
      %v715 = vunpack.c.h.b16 %v681
      %v716 = vunpack.c.l.b16 %v682
      %v717 = vunpack.c.h.b16 %v682
      %v718 = vunpack.c.l.b16 %v683
      %v719 = vunpack.c.h.b16 %v683
      %v720 = vunpack.c.l.b16 %v684
      %v721 = vunpack.c.h.b16 %v684
      %v722 = vunpack.c.l.b16 %v685
      %v723 = vunpack.c.h.b16 %v685
      %v724 = vunpack.c.l.b16 %v686
      %v725 = vunpack.c.h.b16 %v686
      %v726 = vunpack.c.l.b16 %v687
      %v727 = vunpack.c.h.b16 %v687
      %v728 = vunpack.c.l.b16 %v688
      %v729 = vunpack.c.h.b16 %v688
      %v730 = vunpack.c.l.b16 %v689
      %v731 = vunpack.c.h.b16 %v689
      %v732 = vunpack.c.l.b16 %v690
      %v733 = vunpack.c.h.b16 %v690
      %v734 = vunpack.c.l.b16 %v691
      %v735 = vunpack.c.h.b16 %v691
      %v736 = vunpack.c.l.b16 %v692
      %v737 = vunpack.c.h.b16 %v692
      %v738 = vunpack.c.l.b16 %v693
      %v739 = vunpack.c.h.b16 %v693
      %v740 = vunpack.c.l.b16 %v694
      %v741 = vunpack.c.h.b16 %v694
      %v742 = vunpack.c.l.b16 %v695
      %v743 = vunpack.c.h.b16 %v695
      %v744 = vpack.c.b16 %v712, %v712
      %v745 = vpack.c.b16 %v713, %v713
      %v746 = vpack.c.b16 %v714, %v714
      %v747 = vpack.c.b16 %v715, %v715
      %v748 = vpack.c.b16 %v716, %v716
      %v749 = vpack.c.b16 %v717, %v717
      %v750 = vpack.c.b16 %v718, %v718
      %v751 = vpack.c.b16 %v719, %v719
      %v752 = vpack.c.b16 %v720, %v720
      %v753 = vpack.c.b16 %v721, %v721
      %v754 = vpack.c.b16 %v722, %v722
      %v755 = vpack.c.b16 %v723, %v723
      %v756 = vpack.c.b16 %v724, %v724
      %v757 = vpack.c.b16 %v725, %v725
      %v758 = vpack.c.b16 %v726, %v726
      %v759 = vpack.c.b16 %v727, %v727
      %v760 = vpack.c.b16 %v728, %v728
      %v761 = vpack.c.b16 %v729, %v729
      %v762 = vpack.c.b16 %v730, %v730
      %v763 = vpack.c.b16 %v731, %v731
      %v764 = vpack.c.b16 %v732, %v732
      %v765 = vpack.c.b16 %v733, %v733
      %v766 = vpack.c.b16 %v734, %v734
      %v767 = vpack.c.b16 %v735, %v735
      %v768 = vpack.c.b16 %v736, %v736
      %v769 = vpack.c.b16 %v737, %v737
      %v770 = vpack.c.b16 %v738, %v738
      %v771 = vpack.c.b16 %v739, %v739
      %v772 = vpack.c.b16 %v740, %v740
      %v773 = vpack.c.b16 %v741, %v741
      %v774 = vpack.c.b16 %v742, %v742
      %v775 = vpack.c.b16 %v743, %v743
      %776 = vrot.lane.b32.xlu0 %v744, 32
      %v777 = vpop.permute.xlu0 %776
      %778 = vrot.lane.b32.xlu0 %v745, 32
      %v779 = vpop.permute.xlu0 %778
      %780 = vrot.lane.b32.xlu0 %v746, 32
      %v781 = vpop.permute.xlu0 %780
      %782 = vrot.lane.b32.xlu0 %v747, 32
      %v783 = vpop.permute.xlu0 %782
      %784 = vrot.lane.b32.xlu0 %v748, 32
      %v785 = vpop.permute.xlu0 %784
      %786 = vrot.lane.b32.xlu0 %v749, 32
      %v787 = vpop.permute.xlu0 %786
      %788 = vrot.lane.b32.xlu0 %v750, 32
      %v789 = vpop.permute.xlu0 %788
      %790 = vrot.lane.b32.xlu0 %v751, 32
      %v791 = vpop.permute.xlu0 %790
      %792 = vrot.lane.b32.xlu0 %v752, 32
      %v793 = vpop.permute.xlu0 %792
      %794 = vrot.lane.b32.xlu0 %v753, 32
      %v795 = vpop.permute.xlu0 %794
      %796 = vrot.lane.b32.xlu0 %v754, 32
      %v797 = vpop.permute.xlu0 %796
      %798 = vrot.lane.b32.xlu0 %v755, 32
      %v799 = vpop.permute.xlu0 %798
      %800 = vrot.lane.b32.xlu0 %v756, 32
      %v801 = vpop.permute.xlu0 %800
      %802 = vrot.lane.b32.xlu0 %v757, 32
      %v803 = vpop.permute.xlu0 %802
      %804 = vrot.lane.b32.xlu0 %v758, 32
      %v805 = vpop.permute.xlu0 %804
      %806 = vrot.lane.b32.xlu0 %v759, 32
      %v807 = vpop.permute.xlu0 %806
      %808 = vrot.lane.b32.xlu0 %v760, 32
      %v809 = vpop.permute.xlu0 %808
      %810 = vrot.lane.b32.xlu0 %v761, 32
      %v811 = vpop.permute.xlu0 %810
      %812 = vrot.lane.b32.xlu0 %v762, 32
      %v813 = vpop.permute.xlu0 %812
      %814 = vrot.lane.b32.xlu0 %v763, 32
      %v815 = vpop.permute.xlu0 %814
      %816 = vrot.lane.b32.xlu0 %v764, 32
      %v817 = vpop.permute.xlu0 %816
      %818 = vrot.lane.b32.xlu0 %v765, 32
      %v819 = vpop.permute.xlu0 %818
      %820 = vrot.lane.b32.xlu0 %v766, 32
      %v821 = vpop.permute.xlu0 %820
      %822 = vrot.lane.b32.xlu0 %v767, 32
      %v823 = vpop.permute.xlu0 %822
      %824 = vrot.lane.b32.xlu0 %v768, 32
      %v825 = vpop.permute.xlu0 %824
      %826 = vrot.lane.b32.xlu0 %v769, 32
      %v827 = vpop.permute.xlu0 %826
      %828 = vrot.lane.b32.xlu0 %v770, 32
      %v829 = vpop.permute.xlu0 %828
      %830 = vrot.lane.b32.xlu0 %v771, 32
      %v831 = vpop.permute.xlu0 %830
      %832 = vrot.lane.b32.xlu0 %v772, 32
      %v833 = vpop.permute.xlu0 %832
      %834 = vrot.lane.b32.xlu0 %v773, 32
      %v835 = vpop.permute.xlu0 %834
      %836 = vrot.lane.b32.xlu0 %v774, 32
      %v837 = vpop.permute.xlu0 %836
      %838 = vrot.lane.b32.xlu0 %v775, 32
      %v839 = vpop.permute.xlu0 %838
      %vm872 = vcmask 519424
      %873 = vst.msk [vmem:[#allocation3] sm:$0xf] %vm872, %v777
      %874 = vst.msk [vmem:[#allocation3 + $0x4] sm:$0xf] %vm872, %v779
      %875 = vst.msk [vmem:[#allocation3 + $0x8] sm:$0xf] %vm872, %v781
      %876 = vst.msk [vmem:[#allocation3 + $0xc] sm:$0xf] %vm872, %v783
      %877 = vst.msk [vmem:[#allocation3 + $0x10] sm:$0xf] %vm872, %v785
      %878 = vst.msk [vmem:[#allocation3 + $0x14] sm:$0xf] %vm872, %v787
      %879 = vst.msk [vmem:[#allocation3 + $0x18] sm:$0xf] %vm872, %v789
      %880 = vst.msk [vmem:[#allocation3 + $0x1c] sm:$0xf] %vm872, %v791
      %881 = vst.msk [vmem:[#allocation3 + $0x20] sm:$0xf] %vm872, %v793
      %882 = vst.msk [vmem:[#allocation3 + $0x24] sm:$0xf] %vm872, %v795
      %883 = vst.msk [vmem:[#allocation3 + $0x28] sm:$0xf] %vm872, %v797
      %884 = vst.msk [vmem:[#allocation3 + $0x2c] sm:$0xf] %vm872, %v799
      %885 = vst.msk [vmem:[#allocation3 + $0x30] sm:$0xf] %vm872, %v801
      %886 = vst.msk [vmem:[#allocation3 + $0x34] sm:$0xf] %vm872, %v803
      %887 = vst.msk [vmem:[#allocation3 + $0x38] sm:$0xf] %vm872, %v805
      %888 = vst.msk [vmem:[#allocation3 + $0x3c] sm:$0xf] %vm872, %v807
      %889 = vst.msk [vmem:[#allocation3 + $0x40] sm:$0xf] %vm872, %v809
      %890 = vst.msk [vmem:[#allocation3 + $0x44] sm:$0xf] %vm872, %v811
      %891 = vst.msk [vmem:[#allocation3 + $0x48] sm:$0xf] %vm872, %v813
      %892 = vst.msk [vmem:[#allocation3 + $0x4c] sm:$0xf] %vm872, %v815
      %893 = vst.msk [vmem:[#allocation3 + $0x50] sm:$0xf] %vm872, %v817
      %894 = vst.msk [vmem:[#allocation3 + $0x54] sm:$0xf] %vm872, %v819
      %895 = vst.msk [vmem:[#allocation3 + $0x58] sm:$0xf] %vm872, %v821
      %896 = vst.msk [vmem:[#allocation3 + $0x5c] sm:$0xf] %vm872, %v823
      %897 = vst.msk [vmem:[#allocation3 + $0x60] sm:$0xf] %vm872, %v825
      %898 = vst.msk [vmem:[#allocation3 + $0x64] sm:$0xf] %vm872, %v827
      %899 = vst.msk [vmem:[#allocation3 + $0x68] sm:$0xf] %vm872, %v829
      %900 = vst.msk [vmem:[#allocation3 + $0x6c] sm:$0xf] %vm872, %v831
      %901 = vst.msk [vmem:[#allocation3 + $0x70] sm:$0xf] %vm872, %v833
      %902 = vst.msk [vmem:[#allocation3 + $0x74] sm:$0xf] %vm872, %v835
      %903 = vst.msk [vmem:[#allocation3 + $0x78] sm:$0xf] %vm872, %v837
      %904 = vst.msk [vmem:[#allocation3 + $0x7c] sm:$0xf] %vm872, %v839
      %v905 = vld [vmem:[#allocation2 + $0x2] sm:$0xff]
      %v906 = vld [vmem:[#allocation2 + $0xa] sm:$0xff]
      %v907 = vld [vmem:[#allocation2 + $0x1a] sm:$0xff]
      %v908 = vld [vmem:[#allocation2 + $0x22] sm:$0xff]
      %v909 = vld [vmem:[#allocation2 + $0x32] sm:$0xff]
      %v910 = vld [vmem:[#allocation2 + $0x3a] sm:$0xff]
      %v911 = vld [vmem:[#allocation2 + $0x4a] sm:$0xff]
      %v912 = vld [vmem:[#allocation2 + $0x52] sm:$0xff]
      %v913 = vld [vmem:[#allocation2 + $0x62] sm:$0xff]
      %v914 = vld [vmem:[#allocation2 + $0x6a] sm:$0xff]
      %v915 = vld [vmem:[#allocation2 + $0x7a] sm:$0xff]
      %v916 = vld [vmem:[#allocation2 + $0x82] sm:$0xff]
      %v917 = vld [vmem:[#allocation2 + $0x92] sm:$0xff]
      %v918 = vld [vmem:[#allocation2 + $0x9a] sm:$0xff]
      %v919 = vld [vmem:[#allocation2 + $0xaa] sm:$0xff]
      %v920 = vld [vmem:[#allocation2 + $0xb2] sm:$0xff]
      %v921 = vld [vmem:[#allocation2 + $0xc2] sm:$0xff]
      %v922 = vld [vmem:[#allocation2 + $0xca] sm:$0xff]
      %v923 = vld [vmem:[#allocation2 + $0xda] sm:$0xff]
      %v924 = vld [vmem:[#allocation2 + $0xe2] sm:$0xff]
      %v925 = vld [vmem:[#allocation2 + $0xf2] sm:$0xff]
      %v926 = vld [vmem:[#allocation2 + $0xfa] sm:$0xff]
      %v927 = vld [vmem:[#allocation2 + $0x10a] sm:$0xff]
      %v928 = vld [vmem:[#allocation2 + $0x112] sm:$0xff]
      %v929 = vld [vmem:[#allocation2 + $0x122] sm:$0xff]
      %v930 = vld [vmem:[#allocation2 + $0x12a] sm:$0xff]
      %v931 = vld [vmem:[#allocation2 + $0x13a] sm:$0xff]
      %v932 = vld [vmem:[#allocation2 + $0x142] sm:$0xff]
      %v933 = vld [vmem:[#allocation2 + $0x152] sm:$0xff]
      %v934 = vld [vmem:[#allocation2 + $0x15a] sm:$0xff]
      %v935 = vld [vmem:[#allocation2 + $0x16a] sm:$0xff]
      %v936 = vld [vmem:[#allocation2 + $0x172] sm:$0xff]
      %v937 = vpack.c.bf16 %v906, %v905
      %v938 = vpack.c.bf16 %v908, %v907
      %v939 = vpack.c.bf16 %v910, %v909
      %v940 = vpack.c.bf16 %v912, %v911
      %v941 = vpack.c.bf16 %v914, %v913
      %v942 = vpack.c.bf16 %v916, %v915
      %v943 = vpack.c.bf16 %v918, %v917
      %v944 = vpack.c.bf16 %v920, %v919
      %v945 = vpack.c.bf16 %v922, %v921
      %v946 = vpack.c.bf16 %v924, %v923
      %v947 = vpack.c.bf16 %v926, %v925
      %v948 = vpack.c.bf16 %v928, %v927
      %v949 = vpack.c.bf16 %v930, %v929
      %v950 = vpack.c.bf16 %v932, %v931
      %v951 = vpack.c.bf16 %v934, %v933
      %v952 = vpack.c.bf16 %v936, %v935
      %v969 = vunpack.c.l.b16 %v937
      %v970 = vunpack.c.h.b16 %v937
      %v971 = vunpack.c.l.b16 %v938
      %v972 = vunpack.c.h.b16 %v938
      %v973 = vunpack.c.l.b16 %v939
      %v974 = vunpack.c.h.b16 %v939
      %v975 = vunpack.c.l.b16 %v940
      %v976 = vunpack.c.h.b16 %v940
      %v977 = vunpack.c.l.b16 %v941
      %v978 = vunpack.c.h.b16 %v941
      %v979 = vunpack.c.l.b16 %v942
      %v980 = vunpack.c.h.b16 %v942
      %v981 = vunpack.c.l.b16 %v943
      %v982 = vunpack.c.h.b16 %v943
      %v983 = vunpack.c.l.b16 %v944
      %v984 = vunpack.c.h.b16 %v944
      %v985 = vunpack.c.l.b16 %v945
      %v986 = vunpack.c.h.b16 %v945
      %v987 = vunpack.c.l.b16 %v946
      %v988 = vunpack.c.h.b16 %v946
      %v989 = vunpack.c.l.b16 %v947
      %v990 = vunpack.c.h.b16 %v947
      %v991 = vunpack.c.l.b16 %v948
      %v992 = vunpack.c.h.b16 %v948
      %v993 = vunpack.c.l.b16 %v949
      %v994 = vunpack.c.h.b16 %v949
      %v995 = vunpack.c.l.b16 %v950
      %v996 = vunpack.c.h.b16 %v950
      %v997 = vunpack.c.l.b16 %v951
      %v998 = vunpack.c.h.b16 %v951
      %v999 = vunpack.c.l.b16 %v952
      %v1000 = vunpack.c.h.b16 %v952
      %v1001 = vpack.c.b16 %v969, %v969
      %v1002 = vpack.c.b16 %v970, %v970
      %v1003 = vpack.c.b16 %v971, %v971
      %v1004 = vpack.c.b16 %v972, %v972
      %v1005 = vpack.c.b16 %v973, %v973
      %v1006 = vpack.c.b16 %v974, %v974
      %v1007 = vpack.c.b16 %v975, %v975
      %v1008 = vpack.c.b16 %v976, %v976
      %v1009 = vpack.c.b16 %v977, %v977
      %v1010 = vpack.c.b16 %v978, %v978
      %v1011 = vpack.c.b16 %v979, %v979
      %v1012 = vpack.c.b16 %v980, %v980
      %v1013 = vpack.c.b16 %v981, %v981
      %v1014 = vpack.c.b16 %v982, %v982
      %v1015 = vpack.c.b16 %v983, %v983
      %v1016 = vpack.c.b16 %v984, %v984
      %v1017 = vpack.c.b16 %v985, %v985
      %v1018 = vpack.c.b16 %v986, %v986
      %v1019 = vpack.c.b16 %v987, %v987
      %v1020 = vpack.c.b16 %v988, %v988
      %v1021 = vpack.c.b16 %v989, %v989
      %v1022 = vpack.c.b16 %v990, %v990
      %v1023 = vpack.c.b16 %v991, %v991
      %v1024 = vpack.c.b16 %v992, %v992
      %v1025 = vpack.c.b16 %v993, %v993
      %v1026 = vpack.c.b16 %v994, %v994
      %v1027 = vpack.c.b16 %v995, %v995
      %v1028 = vpack.c.b16 %v996, %v996
      %v1029 = vpack.c.b16 %v997, %v997
      %v1030 = vpack.c.b16 %v998, %v998
      %v1031 = vpack.c.b16 %v999, %v999
      %v1032 = vpack.c.b16 %v1000, %v1000
      %1033 = vrot.lane.b32.xlu0 %v1001, 64
      %v1034 = vpop.permute.xlu0 %1033
      %1035 = vrot.lane.b32.xlu0 %v1002, 64
      %v1036 = vpop.permute.xlu0 %1035
      %1037 = vrot.lane.b32.xlu0 %v1003, 64
      %v1038 = vpop.permute.xlu0 %1037
      %1039 = vrot.lane.b32.xlu0 %v1004, 64
      %v1040 = vpop.permute.xlu0 %1039
      %1041 = vrot.lane.b32.xlu0 %v1005, 64
      %v1042 = vpop.permute.xlu0 %1041
      %1043 = vrot.lane.b32.xlu0 %v1006, 64
      %v1044 = vpop.permute.xlu0 %1043
      %1045 = vrot.lane.b32.xlu0 %v1007, 64
      %v1046 = vpop.permute.xlu0 %1045
      %1047 = vrot.lane.b32.xlu0 %v1008, 64
      %v1048 = vpop.permute.xlu0 %1047
      %1049 = vrot.lane.b32.xlu0 %v1009, 64
      %v1050 = vpop.permute.xlu0 %1049
      %1051 = vrot.lane.b32.xlu0 %v1010, 64
      %v1052 = vpop.permute.xlu0 %1051
      %1053 = vrot.lane.b32.xlu0 %v1011, 64
      %v1054 = vpop.permute.xlu0 %1053
      %1055 = vrot.lane.b32.xlu0 %v1012, 64
      %v1056 = vpop.permute.xlu0 %1055
      %1057 = vrot.lane.b32.xlu0 %v1013, 64
      %v1058 = vpop.permute.xlu0 %1057
      %1059 = vrot.lane.b32.xlu0 %v1014, 64
      %v1060 = vpop.permute.xlu0 %1059
      %1061 = vrot.lane.b32.xlu0 %v1015, 64
      %v1062 = vpop.permute.xlu0 %1061
      %1063 = vrot.lane.b32.xlu0 %v1016, 64
      %v1064 = vpop.permute.xlu0 %1063
      %1065 = vrot.lane.b32.xlu0 %v1017, 64
      %v1066 = vpop.permute.xlu0 %1065
      %1067 = vrot.lane.b32.xlu0 %v1018, 64
      %v1068 = vpop.permute.xlu0 %1067
      %1069 = vrot.lane.b32.xlu0 %v1019, 64
      %v1070 = vpop.permute.xlu0 %1069
      %1071 = vrot.lane.b32.xlu0 %v1020, 64
      %v1072 = vpop.permute.xlu0 %1071
      %1073 = vrot.lane.b32.xlu0 %v1021, 64
      %v1074 = vpop.permute.xlu0 %1073
      %1075 = vrot.lane.b32.xlu0 %v1022, 64
      %v1076 = vpop.permute.xlu0 %1075
      %1077 = vrot.lane.b32.xlu0 %v1023, 64
      %v1078 = vpop.permute.xlu0 %1077
      %1079 = vrot.lane.b32.xlu0 %v1024, 64
      %v1080 = vpop.permute.xlu0 %1079
      %1081 = vrot.lane.b32.xlu0 %v1025, 64
      %v1082 = vpop.permute.xlu0 %1081
      %1083 = vrot.lane.b32.xlu0 %v1026, 64
      %v1084 = vpop.permute.xlu0 %1083
      %1085 = vrot.lane.b32.xlu0 %v1027, 64
      %v1086 = vpop.permute.xlu0 %1085
      %1087 = vrot.lane.b32.xlu0 %v1028, 64
      %v1088 = vpop.permute.xlu0 %1087
      %1089 = vrot.lane.b32.xlu0 %v1029, 64
      %v1090 = vpop.permute.xlu0 %1089
      %1091 = vrot.lane.b32.xlu0 %v1030, 64
      %v1092 = vpop.permute.xlu0 %1091
      %1093 = vrot.lane.b32.xlu0 %v1031, 64
      %v1094 = vpop.permute.xlu0 %1093
      %1095 = vrot.lane.b32.xlu0 %v1032, 64
      %v1096 = vpop.permute.xlu0 %1095
      %vm1129 = vcmask 781824
      %1130 = vst.msk [vmem:[#allocation3] sm:$0xf] %vm1129, %v1034
      %1131 = vst.msk [vmem:[#allocation3 + $0x4] sm:$0xf] %vm1129, %v1036
      %1132 = vst.msk [vmem:[#allocation3 + $0x8] sm:$0xf] %vm1129, %v1038
      %1133 = vst.msk [vmem:[#allocation3 + $0xc] sm:$0xf] %vm1129, %v1040
      %1134 = vst.msk [vmem:[#allocation3 + $0x10] sm:$0xf] %vm1129, %v1042
      %1135 = vst.msk [vmem:[#allocation3 + $0x14] sm:$0xf] %vm1129, %v1044
      %1136 = vst.msk [vmem:[#allocation3 + $0x18] sm:$0xf] %vm1129, %v1046
      %1137 = vst.msk [vmem:[#allocation3 + $0x1c] sm:$0xf] %vm1129, %v1048
      %1138 = vst.msk [vmem:[#allocation3 + $0x20] sm:$0xf] %vm1129, %v1050
      %1139 = vst.msk [vmem:[#allocation3 + $0x24] sm:$0xf] %vm1129, %v1052
      %1140 = vst.msk [vmem:[#allocation3 + $0x28] sm:$0xf] %vm1129, %v1054
      %1141 = vst.msk [vmem:[#allocation3 + $0x2c] sm:$0xf] %vm1129, %v1056
      %1142 = vst.msk [vmem:[#allocation3 + $0x30] sm:$0xf] %vm1129, %v1058
      %1143 = vst.msk [vmem:[#allocation3 + $0x34] sm:$0xf] %vm1129, %v1060
      %1144 = vst.msk [vmem:[#allocation3 + $0x38] sm:$0xf] %vm1129, %v1062
      %1145 = vst.msk [vmem:[#allocation3 + $0x3c] sm:$0xf] %vm1129, %v1064
      %1146 = vst.msk [vmem:[#allocation3 + $0x40] sm:$0xf] %vm1129, %v1066
      %1147 = vst.msk [vmem:[#allocation3 + $0x44] sm:$0xf] %vm1129, %v1068
      %1148 = vst.msk [vmem:[#allocation3 + $0x48] sm:$0xf] %vm1129, %v1070
      %1149 = vst.msk [vmem:[#allocation3 + $0x4c] sm:$0xf] %vm1129, %v1072
      %1150 = vst.msk [vmem:[#allocation3 + $0x50] sm:$0xf] %vm1129, %v1074
      %1151 = vst.msk [vmem:[#allocation3 + $0x54] sm:$0xf] %vm1129, %v1076
      %1152 = vst.msk [vmem:[#allocation3 + $0x58] sm:$0xf] %vm1129, %v1078
      %1153 = vst.msk [vmem:[#allocation3 + $0x5c] sm:$0xf] %vm1129, %v1080
      %1154 = vst.msk [vmem:[#allocation3 + $0x60] sm:$0xf] %vm1129, %v1082
      %1155 = vst.msk [vmem:[#allocation3 + $0x64] sm:$0xf] %vm1129, %v1084
      %1156 = vst.msk [vmem:[#allocation3 + $0x68] sm:$0xf] %vm1129, %v1086
      %1157 = vst.msk [vmem:[#allocation3 + $0x6c] sm:$0xf] %vm1129, %v1088
      %1158 = vst.msk [vmem:[#allocation3 + $0x70] sm:$0xf] %vm1129, %v1090
      %1159 = vst.msk [vmem:[#allocation3 + $0x74] sm:$0xf] %vm1129, %v1092
      %1160 = vst.msk [vmem:[#allocation3 + $0x78] sm:$0xf] %vm1129, %v1094
      %1161 = vst.msk [vmem:[#allocation3 + $0x7c] sm:$0xf] %vm1129, %v1096
      %v1162 = vld [vmem:[#allocation3] sm:$0xf]
      %v1163 = vld [vmem:[#allocation3 + $0x4] sm:$0xf]
      %v1164 = vld [vmem:[#allocation3 + $0x8] sm:$0xf]
      %v1165 = vld [vmem:[#allocation3 + $0xc] sm:$0xf]
      %v1166 = vld [vmem:[#allocation3 + $0x10] sm:$0xf]
      %v1167 = vld [vmem:[#allocation3 + $0x14] sm:$0xf]
      %v1168 = vld [vmem:[#allocation3 + $0x18] sm:$0xf]
      %v1169 = vld [vmem:[#allocation3 + $0x1c] sm:$0xf]
      %v1170 = vld [vmem:[#allocation3 + $0x20] sm:$0xf]
      %v1171 = vld [vmem:[#allocation3 + $0x24] sm:$0xf]
      %v1172 = vld [vmem:[#allocation3 + $0x28] sm:$0xf]
      %v1173 = vld [vmem:[#allocation3 + $0x2c] sm:$0xf]
      %v1174 = vld [vmem:[#allocation3 + $0x30] sm:$0xf]
      %v1175 = vld [vmem:[#allocation3 + $0x34] sm:$0xf]
      %v1176 = vld [vmem:[#allocation3 + $0x38] sm:$0xf]
      %v1177 = vld [vmem:[#allocation3 + $0x3c] sm:$0xf]
      %v1178 = vld [vmem:[#allocation3 + $0x40] sm:$0xf]
      %v1179 = vld [vmem:[#allocation3 + $0x44] sm:$0xf]
      %v1180 = vld [vmem:[#allocation3 + $0x48] sm:$0xf]
      %v1181 = vld [vmem:[#allocation3 + $0x4c] sm:$0xf]
      %v1182 = vld [vmem:[#allocation3 + $0x50] sm:$0xf]
      %v1183 = vld [vmem:[#allocation3 + $0x54] sm:$0xf]
      %v1184 = vld [vmem:[#allocation3 + $0x58] sm:$0xf]
      %v1185 = vld [vmem:[#allocation3 + $0x5c] sm:$0xf]
      %v1186 = vld [vmem:[#allocation3 + $0x60] sm:$0xf]
      %v1187 = vld [vmem:[#allocation3 + $0x64] sm:$0xf]
      %v1188 = vld [vmem:[#allocation3 + $0x68] sm:$0xf]
      %v1189 = vld [vmem:[#allocation3 + $0x6c] sm:$0xf]
      %v1190 = vld [vmem:[#allocation3 + $0x70] sm:$0xf]
      %v1191 = vld [vmem:[#allocation3 + $0x74] sm:$0xf]
      %v1192 = vld [vmem:[#allocation3 + $0x78] sm:$0xf]
      %v1193 = vld [vmem:[#allocation3 + $0x7c] sm:$0xf]
      %v1194 = vld [vmem:[%s3] sm:$0xf]
      %v1195 = vld [vmem:[%s3 + $0x4] sm:$0xf]
      %v1196 = vld [vmem:[%s3 + $0x8] sm:$0xf]
      %v1197 = vld [vmem:[%s3 + $0xc] sm:$0xf]
      %v1198 = vld [vmem:[%s3 + $0x10] sm:$0xf]
      %v1199 = vld [vmem:[%s3 + $0x14] sm:$0xf]
      %v1200 = vld [vmem:[%s3 + $0x18] sm:$0xf]
      %v1201 = vld [vmem:[%s3 + $0x1c] sm:$0xf]
      %v1202 = vld [vmem:[%s3 + $0x20] sm:$0xf]
      %v1203 = vld [vmem:[%s3 + $0x24] sm:$0xf]
      %v1204 = vld [vmem:[%s3 + $0x28] sm:$0xf]
      %v1205 = vld [vmem:[%s3 + $0x2c] sm:$0xf]
      %v1206 = vld [vmem:[%s422] sm:$0xff]
      %v1207 = vld [vmem:[%s422 + $0x8] sm:$0xff]
      %v1208 = vld [vmem:[%s422 + $0x18] sm:$0xff]
      %v1209 = vld [vmem:[%s422 + $0x20] sm:$0xff]
      %v1210 = vld [vmem:[%s422 + $0x30] sm:$0xff]
      %v1211 = vld [vmem:[%s422 + $0x38] sm:$0xff]
      %v1212 = vld [vmem:[%s422 + $0x48] sm:$0xff]
      %v1213 = vld [vmem:[%s422 + $0x50] sm:$0xff]
      %v1214 = vld [vmem:[%s422 + $0x60] sm:$0xff]
      %v1215 = vld [vmem:[%s422 + $0x68] sm:$0xff]
      %v1216 = vld [vmem:[%s422 + $0x78] sm:$0xff]
      %v1217 = vld [vmem:[%s422 + $0x80] sm:$0xff]
      %v1218 = vld [vmem:[%s422 + $0x90] sm:$0xff]
      %v1219 = vld [vmem:[%s422 + $0x98] sm:$0xff]
      %v1220 = vld [vmem:[%s422 + $0xa8] sm:$0xff]
      %v1221 = vld [vmem:[%s422 + $0xb0] sm:$0xff]
      %v1222 = vld [vmem:[%s422 + $0xc0] sm:$0xff]
      %v1223 = vld [vmem:[%s422 + $0xc8] sm:$0xff]
      %v1224 = vld [vmem:[%s422 + $0xd8] sm:$0xff]
      %v1225 = vld [vmem:[%s422 + $0xe0] sm:$0xff]
      %v1226 = vld [vmem:[%s422 + $0xf0] sm:$0xff]
      %v1227 = vld [vmem:[%s422 + $0xf8] sm:$0xff]
      %v1228 = vld [vmem:[%s422 + $0x108] sm:$0xff]
      %v1229 = vld [vmem:[%s422 + $0x110] sm:$0xff]
      %v1230 = vld [vmem:[%s422 + $0x120] sm:$0xff]
      %v1231 = vld [vmem:[%s422 + $0x128] sm:$0xff]
      %v1232 = vld [vmem:[%s422 + $0x138] sm:$0xff]
      %v1233 = vld [vmem:[%s422 + $0x140] sm:$0xff]
      %v1234 = vld [vmem:[%s422 + $0x150] sm:$0xff]
      %v1235 = vld [vmem:[%s422 + $0x158] sm:$0xff]
      %v1236 = vld [vmem:[%s422 + $0x168] sm:$0xff]
      %v1237 = vld [vmem:[%s422 + $0x170] sm:$0xff]
      %v1238 = vpack.c.bf16 %v1207, %v1206
      %v1239 = vpack.c.bf16 %v1209, %v1208
      %v1240 = vpack.c.bf16 %v1211, %v1210
      %v1241 = vpack.c.bf16 %v1213, %v1212
      %v1242 = vpack.c.bf16 %v1215, %v1214
      %v1243 = vpack.c.bf16 %v1217, %v1216
      %v1244 = vpack.c.bf16 %v1219, %v1218
      %v1245 = vpack.c.bf16 %v1221, %v1220
      %v1246 = vpack.c.bf16 %v1223, %v1222
      %v1247 = vpack.c.bf16 %v1225, %v1224
      %v1248 = vpack.c.bf16 %v1227, %v1226
      %v1249 = vpack.c.bf16 %v1229, %v1228
      %v1250 = vpack.c.bf16 %v1231, %v1230
      %v1251 = vpack.c.bf16 %v1233, %v1232
      %v1252 = vpack.c.bf16 %v1235, %v1234
      %v1253 = vpack.c.bf16 %v1237, %v1236
      %v1270 = vunpack.c.l.b16 %v1238
      %v1271 = vunpack.c.h.b16 %v1238
      %v1272 = vunpack.c.l.b16 %v1239
      %v1273 = vunpack.c.h.b16 %v1239
      %v1274 = vunpack.c.l.b16 %v1240
      %v1275 = vunpack.c.h.b16 %v1240
      %v1276 = vunpack.c.l.b16 %v1241
      %v1277 = vunpack.c.h.b16 %v1241
      %v1278 = vunpack.c.l.b16 %v1242
      %v1279 = vunpack.c.h.b16 %v1242
      %v1280 = vunpack.c.l.b16 %v1243
      %v1281 = vunpack.c.h.b16 %v1243
      %v1282 = vunpack.c.l.b16 %v1244
      %v1283 = vunpack.c.h.b16 %v1244
      %v1284 = vunpack.c.l.b16 %v1245
      %v1285 = vunpack.c.h.b16 %v1245
      %v1286 = vunpack.c.l.b16 %v1246
      %v1287 = vunpack.c.h.b16 %v1246
      %v1288 = vunpack.c.l.b16 %v1247
      %v1289 = vunpack.c.h.b16 %v1247
      %v1290 = vunpack.c.l.b16 %v1248
      %v1291 = vunpack.c.h.b16 %v1248
      %v1292 = vunpack.c.l.b16 %v1249
      %v1293 = vunpack.c.h.b16 %v1249
      %v1294 = vunpack.c.l.b16 %v1250
      %v1295 = vunpack.c.h.b16 %v1250
      %v1296 = vunpack.c.l.b16 %v1251
      %v1297 = vunpack.c.h.b16 %v1251
      %v1298 = vunpack.c.l.b16 %v1252
      %v1299 = vunpack.c.h.b16 %v1252
      %v1300 = vunpack.c.l.b16 %v1253
      %v1301 = vunpack.c.h.b16 %v1253
      %v1302 = vpack.c.b16 %v1270, %v1270
      %v1303 = vpack.c.b16 %v1271, %v1271
      %v1304 = vpack.c.b16 %v1272, %v1272
      %v1305 = vpack.c.b16 %v1273, %v1273
      %v1306 = vpack.c.b16 %v1274, %v1274
      %v1307 = vpack.c.b16 %v1275, %v1275
      %v1308 = vpack.c.b16 %v1276, %v1276
      %v1309 = vpack.c.b16 %v1277, %v1277
      %v1310 = vpack.c.b16 %v1278, %v1278
      %v1311 = vpack.c.b16 %v1279, %v1279
      %v1312 = vpack.c.b16 %v1280, %v1280
      %v1313 = vpack.c.b16 %v1281, %v1281
      %v1314 = vpack.c.b16 %v1282, %v1282
      %v1315 = vpack.c.b16 %v1283, %v1283
      %v1316 = vpack.c.b16 %v1284, %v1284
      %v1317 = vpack.c.b16 %v1285, %v1285
      %v1318 = vpack.c.b16 %v1286, %v1286
      %v1319 = vpack.c.b16 %v1287, %v1287
      %v1320 = vpack.c.b16 %v1288, %v1288
      %v1321 = vpack.c.b16 %v1289, %v1289
      %v1322 = vpack.c.b16 %v1290, %v1290
      %v1323 = vpack.c.b16 %v1291, %v1291
      %v1324 = vpack.c.b16 %v1292, %v1292
      %v1325 = vpack.c.b16 %v1293, %v1293
      %v1326 = vpack.c.b16 %v1294, %v1294
      %v1327 = vpack.c.b16 %v1295, %v1295
      %v1328 = vpack.c.b16 %v1296, %v1296
      %v1329 = vpack.c.b16 %v1297, %v1297
      %v1330 = vpack.c.b16 %v1298, %v1298
      %v1331 = vpack.c.b16 %v1299, %v1299
      %v1332 = vpack.c.b16 %v1300, %v1300
      %v1333 = vpack.c.b16 %v1301, %v1301
      %s1366 = scalar_lea.vmem [#allocation3], 128
      %1367 = vst.msk [vmem:[%s1366] sm:$0xf] %vm615, %v1302
      %1368 = vst.msk [vmem:[%s1366 + $0x4] sm:$0xf] %vm615, %v1303
      %1369 = vst.msk [vmem:[%s1366 + $0x8] sm:$0xf] %vm615, %v1304
      %1370 = vst.msk [vmem:[%s1366 + $0xc] sm:$0xf] %vm615, %v1305
      %1371 = vst.msk [vmem:[%s1366 + $0x10] sm:$0xf] %vm615, %v1306
      %1372 = vst.msk [vmem:[%s1366 + $0x14] sm:$0xf] %vm615, %v1307
      %1373 = vst.msk [vmem:[%s1366 + $0x18] sm:$0xf] %vm615, %v1308
      %1374 = vst.msk [vmem:[%s1366 + $0x1c] sm:$0xf] %vm615, %v1309
      %1375 = vst.msk [vmem:[%s1366 + $0x20] sm:$0xf] %vm615, %v1310
      %1376 = vst.msk [vmem:[%s1366 + $0x24] sm:$0xf] %vm615, %v1311
      %1377 = vst.msk [vmem:[%s1366 + $0x28] sm:$0xf] %vm615, %v1312
      %1378 = vst.msk [vmem:[%s1366 + $0x2c] sm:$0xf] %vm615, %v1313
      %1379 = vst.msk [vmem:[%s1366 + $0x30] sm:$0xf] %vm615, %v1314
      %1380 = vst.msk [vmem:[%s1366 + $0x34] sm:$0xf] %vm615, %v1315
      %1381 = vst.msk [vmem:[%s1366 + $0x38] sm:$0xf] %vm615, %v1316
      %1382 = vst.msk [vmem:[%s1366 + $0x3c] sm:$0xf] %vm615, %v1317
      %1383 = vst.msk [vmem:[%s1366 + $0x40] sm:$0xf] %vm615, %v1318
      %1384 = vst.msk [vmem:[%s1366 + $0x44] sm:$0xf] %vm615, %v1319
      %1385 = vst.msk [vmem:[%s1366 + $0x48] sm:$0xf] %vm615, %v1320
      %1386 = vst.msk [vmem:[%s1366 + $0x4c] sm:$0xf] %vm615, %v1321
      %1387 = vst.msk [vmem:[%s1366 + $0x50] sm:$0xf] %vm615, %v1322
      %1388 = vst.msk [vmem:[%s1366 + $0x54] sm:$0xf] %vm615, %v1323
      %1389 = vst.msk [vmem:[%s1366 + $0x58] sm:$0xf] %vm615, %v1324
      %1390 = vst.msk [vmem:[%s1366 + $0x5c] sm:$0xf] %vm615, %v1325
      %1391 = vst.msk [vmem:[%s1366 + $0x60] sm:$0xf] %vm615, %v1326
      %1392 = vst.msk [vmem:[%s1366 + $0x64] sm:$0xf] %vm615, %v1327
      %1393 = vst.msk [vmem:[%s1366 + $0x68] sm:$0xf] %vm615, %v1328
      %1394 = vst.msk [vmem:[%s1366 + $0x6c] sm:$0xf] %vm615, %v1329
      %1395 = vst.msk [vmem:[%s1366 + $0x70] sm:$0xf] %vm615, %v1330
      %1396 = vst.msk [vmem:[%s1366 + $0x74] sm:$0xf] %vm615, %v1331
      %1397 = vst.msk [vmem:[%s1366 + $0x78] sm:$0xf] %vm615, %v1332
      %1398 = vst.msk [vmem:[%s1366 + $0x7c] sm:$0xf] %vm615, %v1333
      %v1399 = vld [vmem:[%s422 + $0x1] sm:$0xff]
      %v1400 = vld [vmem:[%s422 + $0x9] sm:$0xff]
      %v1401 = vld [vmem:[%s422 + $0x19] sm:$0xff]
      %v1402 = vld [vmem:[%s422 + $0x21] sm:$0xff]
      %v1403 = vld [vmem:[%s422 + $0x31] sm:$0xff]
      %v1404 = vld [vmem:[%s422 + $0x39] sm:$0xff]
      %v1405 = vld [vmem:[%s422 + $0x49] sm:$0xff]
      %v1406 = vld [vmem:[%s422 + $0x51] sm:$0xff]
      %v1407 = vld [vmem:[%s422 + $0x61] sm:$0xff]
      %v1408 = vld [vmem:[%s422 + $0x69] sm:$0xff]
      %v1409 = vld [vmem:[%s422 + $0x79] sm:$0xff]
      %v1410 = vld [vmem:[%s422 + $0x81] sm:$0xff]
      %v1411 = vld [vmem:[%s422 + $0x91] sm:$0xff]
      %v1412 = vld [vmem:[%s422 + $0x99] sm:$0xff]
      %v1413 = vld [vmem:[%s422 + $0xa9] sm:$0xff]
      %v1414 = vld [vmem:[%s422 + $0xb1] sm:$0xff]
      %v1415 = vld [vmem:[%s422 + $0xc1] sm:$0xff]
      %v1416 = vld [vmem:[%s422 + $0xc9] sm:$0xff]
      %v1417 = vld [vmem:[%s422 + $0xd9] sm:$0xff]
      %v1418 = vld [vmem:[%s422 + $0xe1] sm:$0xff]
      %v1419 = vld [vmem:[%s422 + $0xf1] sm:$0xff]
      %v1420 = vld [vmem:[%s422 + $0xf9] sm:$0xff]
      %v1421 = vld [vmem:[%s422 + $0x109] sm:$0xff]
      %v1422 = vld [vmem:[%s422 + $0x111] sm:$0xff]
      %v1423 = vld [vmem:[%s422 + $0x121] sm:$0xff]
      %v1424 = vld [vmem:[%s422 + $0x129] sm:$0xff]
      %v1425 = vld [vmem:[%s422 + $0x139] sm:$0xff]
      %v1426 = vld [vmem:[%s422 + $0x141] sm:$0xff]
      %v1427 = vld [vmem:[%s422 + $0x151] sm:$0xff]
      %v1428 = vld [vmem:[%s422 + $0x159] sm:$0xff]
      %v1429 = vld [vmem:[%s422 + $0x169] sm:$0xff]
      %v1430 = vld [vmem:[%s422 + $0x171] sm:$0xff]
      %v1431 = vpack.c.bf16 %v1400, %v1399
      %v1432 = vpack.c.bf16 %v1402, %v1401
      %v1433 = vpack.c.bf16 %v1404, %v1403
      %v1434 = vpack.c.bf16 %v1406, %v1405
      %v1435 = vpack.c.bf16 %v1408, %v1407
      %v1436 = vpack.c.bf16 %v1410, %v1409
      %v1437 = vpack.c.bf16 %v1412, %v1411
      %v1438 = vpack.c.bf16 %v1414, %v1413
      %v1439 = vpack.c.bf16 %v1416, %v1415
      %v1440 = vpack.c.bf16 %v1418, %v1417
      %v1441 = vpack.c.bf16 %v1420, %v1419
      %v1442 = vpack.c.bf16 %v1422, %v1421
      %v1443 = vpack.c.bf16 %v1424, %v1423
      %v1444 = vpack.c.bf16 %v1426, %v1425
      %v1445 = vpack.c.bf16 %v1428, %v1427
      %v1446 = vpack.c.bf16 %v1430, %v1429
      %v1463 = vunpack.c.l.b16 %v1431
      %v1464 = vunpack.c.h.b16 %v1431
      %v1465 = vunpack.c.l.b16 %v1432
      %v1466 = vunpack.c.h.b16 %v1432
      %v1467 = vunpack.c.l.b16 %v1433
      %v1468 = vunpack.c.h.b16 %v1433
      %v1469 = vunpack.c.l.b16 %v1434
      %v1470 = vunpack.c.h.b16 %v1434
      %v1471 = vunpack.c.l.b16 %v1435
      %v1472 = vunpack.c.h.b16 %v1435
      %v1473 = vunpack.c.l.b16 %v1436
      %v1474 = vunpack.c.h.b16 %v1436
      %v1475 = vunpack.c.l.b16 %v1437
      %v1476 = vunpack.c.h.b16 %v1437
      %v1477 = vunpack.c.l.b16 %v1438
      %v1478 = vunpack.c.h.b16 %v1438
      %v1479 = vunpack.c.l.b16 %v1439
      %v1480 = vunpack.c.h.b16 %v1439
      %v1481 = vunpack.c.l.b16 %v1440
      %v1482 = vunpack.c.h.b16 %v1440
      %v1483 = vunpack.c.l.b16 %v1441
      %v1484 = vunpack.c.h.b16 %v1441
      %v1485 = vunpack.c.l.b16 %v1442
      %v1486 = vunpack.c.h.b16 %v1442
      %v1487 = vunpack.c.l.b16 %v1443
      %v1488 = vunpack.c.h.b16 %v1443
      %v1489 = vunpack.c.l.b16 %v1444
      %v1490 = vunpack.c.h.b16 %v1444
      %v1491 = vunpack.c.l.b16 %v1445
      %v1492 = vunpack.c.h.b16 %v1445
      %v1493 = vunpack.c.l.b16 %v1446
      %v1494 = vunpack.c.h.b16 %v1446
      %v1495 = vpack.c.b16 %v1463, %v1463
      %v1496 = vpack.c.b16 %v1464, %v1464
      %v1497 = vpack.c.b16 %v1465, %v1465
      %v1498 = vpack.c.b16 %v1466, %v1466
      %v1499 = vpack.c.b16 %v1467, %v1467
      %v1500 = vpack.c.b16 %v1468, %v1468
      %v1501 = vpack.c.b16 %v1469, %v1469
      %v1502 = vpack.c.b16 %v1470, %v1470
      %v1503 = vpack.c.b16 %v1471, %v1471
      %v1504 = vpack.c.b16 %v1472, %v1472
      %v1505 = vpack.c.b16 %v1473, %v1473
      %v1506 = vpack.c.b16 %v1474, %v1474
      %v1507 = vpack.c.b16 %v1475, %v1475
      %v1508 = vpack.c.b16 %v1476, %v1476
      %v1509 = vpack.c.b16 %v1477, %v1477
      %v1510 = vpack.c.b16 %v1478, %v1478
      %v1511 = vpack.c.b16 %v1479, %v1479
      %v1512 = vpack.c.b16 %v1480, %v1480
      %v1513 = vpack.c.b16 %v1481, %v1481
      %v1514 = vpack.c.b16 %v1482, %v1482
      %v1515 = vpack.c.b16 %v1483, %v1483
      %v1516 = vpack.c.b16 %v1484, %v1484
      %v1517 = vpack.c.b16 %v1485, %v1485
      %v1518 = vpack.c.b16 %v1486, %v1486
      %v1519 = vpack.c.b16 %v1487, %v1487
      %v1520 = vpack.c.b16 %v1488, %v1488
      %v1521 = vpack.c.b16 %v1489, %v1489
      %v1522 = vpack.c.b16 %v1490, %v1490
      %v1523 = vpack.c.b16 %v1491, %v1491
      %v1524 = vpack.c.b16 %v1492, %v1492
      %v1525 = vpack.c.b16 %v1493, %v1493
      %v1526 = vpack.c.b16 %v1494, %v1494
      %1527 = vrot.lane.b32.xlu0 %v1495, 32
      %v1528 = vpop.permute.xlu0 %1527
      %1529 = vrot.lane.b32.xlu0 %v1496, 32
      %v1530 = vpop.permute.xlu0 %1529
      %1531 = vrot.lane.b32.xlu0 %v1497, 32
      %v1532 = vpop.permute.xlu0 %1531
      %1533 = vrot.lane.b32.xlu0 %v1498, 32
      %v1534 = vpop.permute.xlu0 %1533
      %1535 = vrot.lane.b32.xlu0 %v1499, 32
      %v1536 = vpop.permute.xlu0 %1535
      %1537 = vrot.lane.b32.xlu0 %v1500, 32
      %v1538 = vpop.permute.xlu0 %1537
      %1539 = vrot.lane.b32.xlu0 %v1501, 32
      %v1540 = vpop.permute.xlu0 %1539
      %1541 = vrot.lane.b32.xlu0 %v1502, 32
      %v1542 = vpop.permute.xlu0 %1541
      %1543 = vrot.lane.b32.xlu0 %v1503, 32
      %v1544 = vpop.permute.xlu0 %1543
      %1545 = vrot.lane.b32.xlu0 %v1504, 32
      %v1546 = vpop.permute.xlu0 %1545
      %1547 = vrot.lane.b32.xlu0 %v1505, 32
      %v1548 = vpop.permute.xlu0 %1547
      %1549 = vrot.lane.b32.xlu0 %v1506, 32
      %v1550 = vpop.permute.xlu0 %1549
      %1551 = vrot.lane.b32.xlu0 %v1507, 32
      %v1552 = vpop.permute.xlu0 %1551
      %1553 = vrot.lane.b32.xlu0 %v1508, 32
      %v1554 = vpop.permute.xlu0 %1553
      %1555 = vrot.lane.b32.xlu0 %v1509, 32
      %v1556 = vpop.permute.xlu0 %1555
      %1557 = vrot.lane.b32.xlu0 %v1510, 32
      %v1558 = vpop.permute.xlu0 %1557
      %1559 = vrot.lane.b32.xlu0 %v1511, 32
      %v1560 = vpop.permute.xlu0 %1559
      %1561 = vrot.lane.b32.xlu0 %v1512, 32
      %v1562 = vpop.permute.xlu0 %1561
      %1563 = vrot.lane.b32.xlu0 %v1513, 32
      %v1564 = vpop.permute.xlu0 %1563
      %1565 = vrot.lane.b32.xlu0 %v1514, 32
      %v1566 = vpop.permute.xlu0 %1565
      %1567 = vrot.lane.b32.xlu0 %v1515, 32
      %v1568 = vpop.permute.xlu0 %1567
      %1569 = vrot.lane.b32.xlu0 %v1516, 32
      %v1570 = vpop.permute.xlu0 %1569
      %1571 = vrot.lane.b32.xlu0 %v1517, 32
      %v1572 = vpop.permute.xlu0 %1571
      %1573 = vrot.lane.b32.xlu0 %v1518, 32
      %v1574 = vpop.permute.xlu0 %1573
      %1575 = vrot.lane.b32.xlu0 %v1519, 32
      %v1576 = vpop.permute.xlu0 %1575
      %1577 = vrot.lane.b32.xlu0 %v1520, 32
      %v1578 = vpop.permute.xlu0 %1577
      %1579 = vrot.lane.b32.xlu0 %v1521, 32
      %v1580 = vpop.permute.xlu0 %1579
      %1581 = vrot.lane.b32.xlu0 %v1522, 32
      %v1582 = vpop.permute.xlu0 %1581
      %1583 = vrot.lane.b32.xlu0 %v1523, 32
      %v1584 = vpop.permute.xlu0 %1583
      %1585 = vrot.lane.b32.xlu0 %v1524, 32
      %v1586 = vpop.permute.xlu0 %1585
      %1587 = vrot.lane.b32.xlu0 %v1525, 32
      %v1588 = vpop.permute.xlu0 %1587
      %1589 = vrot.lane.b32.xlu0 %v1526, 32
      %v1590 = vpop.permute.xlu0 %1589
      %1623 = vst.msk [vmem:[%s1366] sm:$0xf] %vm872, %v1528
      %1624 = vst.msk [vmem:[%s1366 + $0x4] sm:$0xf] %vm872, %v1530
      %1625 = vst.msk [vmem:[%s1366 + $0x8] sm:$0xf] %vm872, %v1532
      %1626 = vst.msk [vmem:[%s1366 + $0xc] sm:$0xf] %vm872, %v1534
      %1627 = vst.msk [vmem:[%s1366 + $0x10] sm:$0xf] %vm872, %v1536
      %1628 = vst.msk [vmem:[%s1366 + $0x14] sm:$0xf] %vm872, %v1538
      %1629 = vst.msk [vmem:[%s1366 + $0x18] sm:$0xf] %vm872, %v1540
      %1630 = vst.msk [vmem:[%s1366 + $0x1c] sm:$0xf] %vm872, %v1542
      %1631 = vst.msk [vmem:[%s1366 + $0x20] sm:$0xf] %vm872, %v1544
      %1632 = vst.msk [vmem:[%s1366 + $0x24] sm:$0xf] %vm872, %v1546
      %1633 = vst.msk [vmem:[%s1366 + $0x28] sm:$0xf] %vm872, %v1548
      %1634 = vst.msk [vmem:[%s1366 + $0x2c] sm:$0xf] %vm872, %v1550
      %1635 = vst.msk [vmem:[%s1366 + $0x30] sm:$0xf] %vm872, %v1552
      %1636 = vst.msk [vmem:[%s1366 + $0x34] sm:$0xf] %vm872, %v1554
      %1637 = vst.msk [vmem:[%s1366 + $0x38] sm:$0xf] %vm872, %v1556
      %1638 = vst.msk [vmem:[%s1366 + $0x3c] sm:$0xf] %vm872, %v1558
      %1639 = vst.msk [vmem:[%s1366 + $0x40] sm:$0xf] %vm872, %v1560
      %1640 = vst.msk [vmem:[%s1366 + $0x44] sm:$0xf] %vm872, %v1562
      %1641 = vst.msk [vmem:[%s1366 + $0x48] sm:$0xf] %vm872, %v1564
      %1642 = vst.msk [vmem:[%s1366 + $0x4c] sm:$0xf] %vm872, %v1566
      %1643 = vst.msk [vmem:[%s1366 + $0x50] sm:$0xf] %vm872, %v1568
      %1644 = vst.msk [vmem:[%s1366 + $0x54] sm:$0xf] %vm872, %v1570
      %1645 = vst.msk [vmem:[%s1366 + $0x58] sm:$0xf] %vm872, %v1572
      %1646 = vst.msk [vmem:[%s1366 + $0x5c] sm:$0xf] %vm872, %v1574
      %1647 = vst.msk [vmem:[%s1366 + $0x60] sm:$0xf] %vm872, %v1576
      %1648 = vst.msk [vmem:[%s1366 + $0x64] sm:$0xf] %vm872, %v1578
      %1649 = vst.msk [vmem:[%s1366 + $0x68] sm:$0xf] %vm872, %v1580
      %1650 = vst.msk [vmem:[%s1366 + $0x6c] sm:$0xf] %vm872, %v1582
      %1651 = vst.msk [vmem:[%s1366 + $0x70] sm:$0xf] %vm872, %v1584
      %1652 = vst.msk [vmem:[%s1366 + $0x74] sm:$0xf] %vm872, %v1586
      %1653 = vst.msk [vmem:[%s1366 + $0x78] sm:$0xf] %vm872, %v1588
      %1654 = vst.msk [vmem:[%s1366 + $0x7c] sm:$0xf] %vm872, %v1590
      %v1655 = vld [vmem:[%s422 + $0x2] sm:$0xff]
      %v1656 = vld [vmem:[%s422 + $0xa] sm:$0xff]
      %v1657 = vld [vmem:[%s422 + $0x1a] sm:$0xff]
      %v1658 = vld [vmem:[%s422 + $0x22] sm:$0xff]
      %v1659 = vld [vmem:[%s422 + $0x32] sm:$0xff]
      %v1660 = vld [vmem:[%s422 + $0x3a] sm:$0xff]
      %v1661 = vld [vmem:[%s422 + $0x4a] sm:$0xff]
      %v1662 = vld [vmem:[%s422 + $0x52] sm:$0xff]
      %v1663 = vld [vmem:[%s422 + $0x62] sm:$0xff]
      %v1664 = vld [vmem:[%s422 + $0x6a] sm:$0xff]
      %v1665 = vld [vmem:[%s422 + $0x7a] sm:$0xff]
      %v1666 = vld [vmem:[%s422 + $0x82] sm:$0xff]
      %v1667 = vld [vmem:[%s422 + $0x92] sm:$0xff]
      %v1668 = vld [vmem:[%s422 + $0x9a] sm:$0xff]
      %v1669 = vld [vmem:[%s422 + $0xaa] sm:$0xff]
      %v1670 = vld [vmem:[%s422 + $0xb2] sm:$0xff]
      %v1671 = vld [vmem:[%s422 + $0xc2] sm:$0xff]
      %v1672 = vld [vmem:[%s422 + $0xca] sm:$0xff]
      %v1673 = vld [vmem:[%s422 + $0xda] sm:$0xff]
      %v1674 = vld [vmem:[%s422 + $0xe2] sm:$0xff]
      %v1675 = vld [vmem:[%s422 + $0xf2] sm:$0xff]
      %v1676 = vld [vmem:[%s422 + $0xfa] sm:$0xff]
      %v1677 = vld [vmem:[%s422 + $0x10a] sm:$0xff]
      %v1678 = vld [vmem:[%s422 + $0x112] sm:$0xff]
      %v1679 = vld [vmem:[%s422 + $0x122] sm:$0xff]
      %v1680 = vld [vmem:[%s422 + $0x12a] sm:$0xff]
      %v1681 = vld [vmem:[%s422 + $0x13a] sm:$0xff]
      %v1682 = vld [vmem:[%s422 + $0x142] sm:$0xff]
      %v1683 = vld [vmem:[%s422 + $0x152] sm:$0xff]
      %v1684 = vld [vmem:[%s422 + $0x15a] sm:$0xff]
      %v1685 = vld [vmem:[%s422 + $0x16a] sm:$0xff]
      %v1686 = vld [vmem:[%s422 + $0x172] sm:$0xff]
      %v1687 = vpack.c.bf16 %v1656, %v1655
      %v1688 = vpack.c.bf16 %v1658, %v1657
      %v1689 = vpack.c.bf16 %v1660, %v1659
      %v1690 = vpack.c.bf16 %v1662, %v1661
      %v1691 = vpack.c.bf16 %v1664, %v1663
      %v1692 = vpack.c.bf16 %v1666, %v1665
      %v1693 = vpack.c.bf16 %v1668, %v1667
      %v1694 = vpack.c.bf16 %v1670, %v1669
      %v1695 = vpack.c.bf16 %v1672, %v1671
      %v1696 = vpack.c.bf16 %v1674, %v1673
      %v1697 = vpack.c.bf16 %v1676, %v1675
      %v1698 = vpack.c.bf16 %v1678, %v1677
      %v1699 = vpack.c.bf16 %v1680, %v1679
      %v1700 = vpack.c.bf16 %v1682, %v1681
      %v1701 = vpack.c.bf16 %v1684, %v1683
      %v1702 = vpack.c.bf16 %v1686, %v1685
      %v1719 = vunpack.c.l.b16 %v1687
      %v1720 = vunpack.c.h.b16 %v1687
      %v1721 = vunpack.c.l.b16 %v1688
      %v1722 = vunpack.c.h.b16 %v1688
      %v1723 = vunpack.c.l.b16 %v1689
      %v1724 = vunpack.c.h.b16 %v1689
      %v1725 = vunpack.c.l.b16 %v1690
      %v1726 = vunpack.c.h.b16 %v1690
      %v1727 = vunpack.c.l.b16 %v1691
      %v1728 = vunpack.c.h.b16 %v1691
      %v1729 = vunpack.c.l.b16 %v1692
      %v1730 = vunpack.c.h.b16 %v1692
      %v1731 = vunpack.c.l.b16 %v1693
      %v1732 = vunpack.c.h.b16 %v1693
      %v1733 = vunpack.c.l.b16 %v1694
      %v1734 = vunpack.c.h.b16 %v1694
      %v1735 = vunpack.c.l.b16 %v1695
      %v1736 = vunpack.c.h.b16 %v1695
      %v1737 = vunpack.c.l.b16 %v1696
      %v1738 = vunpack.c.h.b16 %v1696
      %v1739 = vunpack.c.l.b16 %v1697
      %v1740 = vunpack.c.h.b16 %v1697
      %v1741 = vunpack.c.l.b16 %v1698
      %v1742 = vunpack.c.h.b16 %v1698
      %v1743 = vunpack.c.l.b16 %v1699
      %v1744 = vunpack.c.h.b16 %v1699
      %v1745 = vunpack.c.l.b16 %v1700
      %v1746 = vunpack.c.h.b16 %v1700
      %v1747 = vunpack.c.l.b16 %v1701
      %v1748 = vunpack.c.h.b16 %v1701
      %v1749 = vunpack.c.l.b16 %v1702
      %v1750 = vunpack.c.h.b16 %v1702
      %v1751 = vpack.c.b16 %v1719, %v1719
      %v1752 = vpack.c.b16 %v1720, %v1720
      %v1753 = vpack.c.b16 %v1721, %v1721
      %v1754 = vpack.c.b16 %v1722, %v1722
      %v1755 = vpack.c.b16 %v1723, %v1723
      %v1756 = vpack.c.b16 %v1724, %v1724
      %v1757 = vpack.c.b16 %v1725, %v1725
      %v1758 = vpack.c.b16 %v1726, %v1726
      %v1759 = vpack.c.b16 %v1727, %v1727
      %v1760 = vpack.c.b16 %v1728, %v1728
      %v1761 = vpack.c.b16 %v1729, %v1729
      %v1762 = vpack.c.b16 %v1730, %v1730
      %v1763 = vpack.c.b16 %v1731, %v1731
      %v1764 = vpack.c.b16 %v1732, %v1732
      %v1765 = vpack.c.b16 %v1733, %v1733
      %v1766 = vpack.c.b16 %v1734, %v1734
      %v1767 = vpack.c.b16 %v1735, %v1735
      %v1768 = vpack.c.b16 %v1736, %v1736
      %v1769 = vpack.c.b16 %v1737, %v1737
      %v1770 = vpack.c.b16 %v1738, %v1738
      %v1771 = vpack.c.b16 %v1739, %v1739
      %v1772 = vpack.c.b16 %v1740, %v1740
      %v1773 = vpack.c.b16 %v1741, %v1741
      %v1774 = vpack.c.b16 %v1742, %v1742
      %v1775 = vpack.c.b16 %v1743, %v1743
      %v1776 = vpack.c.b16 %v1744, %v1744
      %v1777 = vpack.c.b16 %v1745, %v1745
      %v1778 = vpack.c.b16 %v1746, %v1746
      %v1779 = vpack.c.b16 %v1747, %v1747
      %v1780 = vpack.c.b16 %v1748, %v1748
      %v1781 = vpack.c.b16 %v1749, %v1749
      %v1782 = vpack.c.b16 %v1750, %v1750
      %1783 = vrot.lane.b32.xlu0 %v1751, 64
      %v1784 = vpop.permute.xlu0 %1783
      %1785 = vrot.lane.b32.xlu0 %v1752, 64
      %v1786 = vpop.permute.xlu0 %1785
      %1787 = vrot.lane.b32.xlu0 %v1753, 64
      %v1788 = vpop.permute.xlu0 %1787
      %1789 = vrot.lane.b32.xlu0 %v1754, 64
      %v1790 = vpop.permute.xlu0 %1789
      %1791 = vrot.lane.b32.xlu0 %v1755, 64
      %v1792 = vpop.permute.xlu0 %1791
      %1793 = vrot.lane.b32.xlu0 %v1756, 64
      %v1794 = vpop.permute.xlu0 %1793
      %1795 = vrot.lane.b32.xlu0 %v1757, 64
      %v1796 = vpop.permute.xlu0 %1795
      %1797 = vrot.lane.b32.xlu0 %v1758, 64
      %v1798 = vpop.permute.xlu0 %1797
      %1799 = vrot.lane.b32.xlu0 %v1759, 64
      %v1800 = vpop.permute.xlu0 %1799
      %1801 = vrot.lane.b32.xlu0 %v1760, 64
      %v1802 = vpop.permute.xlu0 %1801
      %1803 = vrot.lane.b32.xlu0 %v1761, 64
      %v1804 = vpop.permute.xlu0 %1803
      %1805 = vrot.lane.b32.xlu0 %v1762, 64
      %v1806 = vpop.permute.xlu0 %1805
      %1807 = vrot.lane.b32.xlu0 %v1763, 64
      %v1808 = vpop.permute.xlu0 %1807
      %1809 = vrot.lane.b32.xlu0 %v1764, 64
      %v1810 = vpop.permute.xlu0 %1809
      %1811 = vrot.lane.b32.xlu0 %v1765, 64
      %v1812 = vpop.permute.xlu0 %1811
      %1813 = vrot.lane.b32.xlu0 %v1766, 64
      %v1814 = vpop.permute.xlu0 %1813
      %1815 = vrot.lane.b32.xlu0 %v1767, 64
      %v1816 = vpop.permute.xlu0 %1815
      %1817 = vrot.lane.b32.xlu0 %v1768, 64
      %v1818 = vpop.permute.xlu0 %1817
      %1819 = vrot.lane.b32.xlu0 %v1769, 64
      %v1820 = vpop.permute.xlu0 %1819
      %1821 = vrot.lane.b32.xlu0 %v1770, 64
      %v1822 = vpop.permute.xlu0 %1821
      %1823 = vrot.lane.b32.xlu0 %v1771, 64
      %v1824 = vpop.permute.xlu0 %1823
      %1825 = vrot.lane.b32.xlu0 %v1772, 64
      %v1826 = vpop.permute.xlu0 %1825
      %1827 = vrot.lane.b32.xlu0 %v1773, 64
      %v1828 = vpop.permute.xlu0 %1827
      %1829 = vrot.lane.b32.xlu0 %v1774, 64
      %v1830 = vpop.permute.xlu0 %1829
      %1831 = vrot.lane.b32.xlu0 %v1775, 64
      %v1832 = vpop.permute.xlu0 %1831
      %1833 = vrot.lane.b32.xlu0 %v1776, 64
      %v1834 = vpop.permute.xlu0 %1833
      %1835 = vrot.lane.b32.xlu0 %v1777, 64
      %v1836 = vpop.permute.xlu0 %1835
      %1837 = vrot.lane.b32.xlu0 %v1778, 64
      %v1838 = vpop.permute.xlu0 %1837
      %1839 = vrot.lane.b32.xlu0 %v1779, 64
      %v1840 = vpop.permute.xlu0 %1839
      %1841 = vrot.lane.b32.xlu0 %v1780, 64
      %v1842 = vpop.permute.xlu0 %1841
      %1843 = vrot.lane.b32.xlu0 %v1781, 64
      %v1844 = vpop.permute.xlu0 %1843
      %1845 = vrot.lane.b32.xlu0 %v1782, 64
      %v1846 = vpop.permute.xlu0 %1845
      %1879 = vst.msk [vmem:[%s1366] sm:$0xf] %vm1129, %v1784
      %1880 = vst.msk [vmem:[%s1366 + $0x4] sm:$0xf] %vm1129, %v1786
      %1881 = vst.msk [vmem:[%s1366 + $0x8] sm:$0xf] %vm1129, %v1788
      %1882 = vst.msk [vmem:[%s1366 + $0xc] sm:$0xf] %vm1129, %v1790
      %1883 = vst.msk [vmem:[%s1366 + $0x10] sm:$0xf] %vm1129, %v1792
      %1884 = vst.msk [vmem:[%s1366 + $0x14] sm:$0xf] %vm1129, %v1794
      %1885 = vst.msk [vmem:[%s1366 + $0x18] sm:$0xf] %vm1129, %v1796
      %1886 = vst.msk [vmem:[%s1366 + $0x1c] sm:$0xf] %vm1129, %v1798
      %1887 = vst.msk [vmem:[%s1366 + $0x20] sm:$0xf] %vm1129, %v1800
      %1888 = vst.msk [vmem:[%s1366 + $0x24] sm:$0xf] %vm1129, %v1802
      %1889 = vst.msk [vmem:[%s1366 + $0x28] sm:$0xf] %vm1129, %v1804
      %1890 = vst.msk [vmem:[%s1366 + $0x2c] sm:$0xf] %vm1129, %v1806
      %1891 = vst.msk [vmem:[%s1366 + $0x30] sm:$0xf] %vm1129, %v1808
      %1892 = vst.msk [vmem:[%s1366 + $0x34] sm:$0xf] %vm1129, %v1810
      %1893 = vst.msk [vmem:[%s1366 + $0x38] sm:$0xf] %vm1129, %v1812
      %1894 = vst.msk [vmem:[%s1366 + $0x3c] sm:$0xf] %vm1129, %v1814
      %1895 = vst.msk [vmem:[%s1366 + $0x40] sm:$0xf] %vm1129, %v1816
      %1896 = vst.msk [vmem:[%s1366 + $0x44] sm:$0xf] %vm1129, %v1818
      %1897 = vst.msk [vmem:[%s1366 + $0x48] sm:$0xf] %vm1129, %v1820
      %1898 = vst.msk [vmem:[%s1366 + $0x4c] sm:$0xf] %vm1129, %v1822
      %1899 = vst.msk [vmem:[%s1366 + $0x50] sm:$0xf] %vm1129, %v1824
      %1900 = vst.msk [vmem:[%s1366 + $0x54] sm:$0xf] %vm1129, %v1826
      %1901 = vst.msk [vmem:[%s1366 + $0x58] sm:$0xf] %vm1129, %v1828
      %1902 = vst.msk [vmem:[%s1366 + $0x5c] sm:$0xf] %vm1129, %v1830
      %1903 = vst.msk [vmem:[%s1366 + $0x60] sm:$0xf] %vm1129, %v1832
      %1904 = vst.msk [vmem:[%s1366 + $0x64] sm:$0xf] %vm1129, %v1834
      %1905 = vst.msk [vmem:[%s1366 + $0x68] sm:$0xf] %vm1129, %v1836
      %1906 = vst.msk [vmem:[%s1366 + $0x6c] sm:$0xf] %vm1129, %v1838
      %1907 = vst.msk [vmem:[%s1366 + $0x70] sm:$0xf] %vm1129, %v1840
      %1908 = vst.msk [vmem:[%s1366 + $0x74] sm:$0xf] %vm1129, %v1842
      %1909 = vst.msk [vmem:[%s1366 + $0x78] sm:$0xf] %vm1129, %v1844
      %1910 = vst.msk [vmem:[%s1366 + $0x7c] sm:$0xf] %vm1129, %v1846
      %v1911 = vld [vmem:[%s1366] sm:$0xf]
      %v1912 = vld [vmem:[%s1366 + $0x4] sm:$0xf]
      %v1913 = vld [vmem:[%s1366 + $0x8] sm:$0xf]
      %v1914 = vld [vmem:[%s1366 + $0xc] sm:$0xf]
      %v1915 = vld [vmem:[%s1366 + $0x10] sm:$0xf]
      %v1916 = vld [vmem:[%s1366 + $0x14] sm:$0xf]
      %v1917 = vld [vmem:[%s1366 + $0x18] sm:$0xf]
      %v1918 = vld [vmem:[%s1366 + $0x1c] sm:$0xf]
      %v1919 = vld [vmem:[%s1366 + $0x20] sm:$0xf]
      %v1920 = vld [vmem:[%s1366 + $0x24] sm:$0xf]
      %v1921 = vld [vmem:[%s1366 + $0x28] sm:$0xf]
      %v1922 = vld [vmem:[%s1366 + $0x2c] sm:$0xf]
      %v1923 = vld [vmem:[%s1366 + $0x30] sm:$0xf]
      %v1924 = vld [vmem:[%s1366 + $0x34] sm:$0xf]
      %v1925 = vld [vmem:[%s1366 + $0x38] sm:$0xf]
      %v1926 = vld [vmem:[%s1366 + $0x3c] sm:$0xf]
      %v1927 = vld [vmem:[%s1366 + $0x40] sm:$0xf]
      %v1928 = vld [vmem:[%s1366 + $0x44] sm:$0xf]
      %v1929 = vld [vmem:[%s1366 + $0x48] sm:$0xf]
      %v1930 = vld [vmem:[%s1366 + $0x4c] sm:$0xf]
      %v1931 = vld [vmem:[%s1366 + $0x50] sm:$0xf]
      %v1932 = vld [vmem:[%s1366 + $0x54] sm:$0xf]
      %v1933 = vld [vmem:[%s1366 + $0x58] sm:$0xf]
      %v1934 = vld [vmem:[%s1366 + $0x5c] sm:$0xf]
      %v1935 = vld [vmem:[%s1366 + $0x60] sm:$0xf]
      %v1936 = vld [vmem:[%s1366 + $0x64] sm:$0xf]
      %v1937 = vld [vmem:[%s1366 + $0x68] sm:$0xf]
      %v1938 = vld [vmem:[%s1366 + $0x6c] sm:$0xf]
      %v1939 = vld [vmem:[%s1366 + $0x70] sm:$0xf]
      %v1940 = vld [vmem:[%s1366 + $0x74] sm:$0xf]
      %v1941 = vld [vmem:[%s1366 + $0x78] sm:$0xf]
      %v1942 = vld [vmem:[%s1366 + $0x7c] sm:$0xf]
      %v1943 = vld [vmem:[%s3 + $0x30] sm:$0xf]
      %v1944 = vld [vmem:[%s3 + $0x34] sm:$0xf]
      %v1945 = vld [vmem:[%s3 + $0x38] sm:$0xf]
      %v1946 = vld [vmem:[%s3 + $0x3c] sm:$0xf]
      %v1947 = vld [vmem:[%s3 + $0x40] sm:$0xf]
      %v1948 = vld [vmem:[%s3 + $0x44] sm:$0xf]
      %v1949 = vld [vmem:[%s3 + $0x48] sm:$0xf]
      %v1950 = vld [vmem:[%s3 + $0x4c] sm:$0xf]
      %v1951 = vld [vmem:[%s3 + $0x50] sm:$0xf]
      %v1952 = vld [vmem:[%s3 + $0x54] sm:$0xf]
      %v1953 = vld [vmem:[%s3 + $0x58] sm:$0xf]
      %v1954 = vld [vmem:[%s3 + $0x5c] sm:$0xf]
      %v1987 = vunpack.c.l.b16 %v1911
      %v1988 = vunpack.c.l.b16 %v1912
      %v1989 = vunpack.c.l.b16 %v1913
      %v1990 = vunpack.c.l.b16 %v1914
      %v1991 = vunpack.c.l.b16 %v1915
      %v1992 = vunpack.c.l.b16 %v1916
      %v1993 = vunpack.c.l.b16 %v1917
      %v1994 = vunpack.c.l.b16 %v1918
      %v1995 = vunpack.c.l.b16 %v1919
      %v1996 = vunpack.c.l.b16 %v1920
      %v1997 = vunpack.c.l.b16 %v1921
      %v1998 = vunpack.c.l.b16 %v1922
      %v1999 = vunpack.c.l.b16 %v1923
      %v2000 = vunpack.c.l.b16 %v1924
      %v2001 = vunpack.c.l.b16 %v1925
      %v2002 = vunpack.c.l.b16 %v1926
      %v2003 = vunpack.c.l.b16 %v1927
      %v2004 = vunpack.c.l.b16 %v1928
      %v2005 = vunpack.c.l.b16 %v1929
      %v2006 = vunpack.c.l.b16 %v1930
      %v2007 = vunpack.c.l.b16 %v1931
      %v2008 = vunpack.c.l.b16 %v1932
      %v2009 = vunpack.c.l.b16 %v1933
      %v2010 = vunpack.c.l.b16 %v1934
      %v2011 = vunpack.c.l.b16 %v1935
      %v2012 = vunpack.c.l.b16 %v1936
      %v2013 = vunpack.c.l.b16 %v1937
      %v2014 = vunpack.c.l.b16 %v1938
      %v2015 = vunpack.c.l.b16 %v1939
      %v2016 = vunpack.c.l.b16 %v1940
      %v2017 = vunpack.c.l.b16 %v1941
      %v2018 = vunpack.c.l.b16 %v1942
      %v2019 = vpack.c.b16 %v1988, %v1987
      %v2020 = vpack.c.b16 %v1990, %v1989
      %v2021 = vpack.c.b16 %v1992, %v1991
      %v2022 = vpack.c.b16 %v1994, %v1993
      %v2023 = vpack.c.b16 %v1996, %v1995
      %v2024 = vpack.c.b16 %v1998, %v1997
      %v2025 = vpack.c.b16 %v2000, %v1999
      %v2026 = vpack.c.b16 %v2002, %v2001
      %v2027 = vpack.c.b16 %v2004, %v2003
      %v2028 = vpack.c.b16 %v2006, %v2005
      %v2029 = vpack.c.b16 %v2008, %v2007
      %v2030 = vpack.c.b16 %v2010, %v2009
      %v2031 = vpack.c.b16 %v2012, %v2011
      %v2032 = vpack.c.b16 %v2014, %v2013
      %v2033 = vpack.c.b16 %v2016, %v2015
      %v2034 = vpack.c.b16 %v2018, %v2017
      %v2047 = vunpack.c.l.b16 %v1943
      %v2048 = vunpack.c.l.b16 %v1944
      %v2049 = vunpack.c.l.b16 %v1945
      %v2050 = vunpack.c.l.b16 %v1946
      %v2051 = vunpack.c.l.b16 %v1947
      %v2052 = vunpack.c.l.b16 %v1948
      %v2053 = vunpack.c.l.b16 %v1949
      %v2054 = vunpack.c.l.b16 %v1950
      %v2055 = vunpack.c.l.b16 %v1951
      %v2056 = vunpack.c.l.b16 %v1952
      %v2057 = vunpack.c.l.b16 %v1953
      %v2058 = vunpack.c.l.b16 %v1954
      %v2059 = vpack.c.b16 %v2048, %v2047
      %v2060 = vpack.c.b16 %v2050, %v2049
      %v2061 = vpack.c.b16 %v2052, %v2051
      %v2062 = vpack.c.b16 %v2054, %v2053
      %v2063 = vpack.c.b16 %v2056, %v2055
      %v2064 = vpack.c.b16 %v2058, %v2057
      %vm2071 = vcmask 785408
      %v2073 = vsel %vm2071, %v2019, 0
      %v2076 = vsel %vm2071, %v2020, 0
      %v2079 = vsel %vm2071, %v2021, 0
      %v2082 = vsel %vm2071, %v2022, 0
      %v2085 = vsel %vm2071, %v2023, 0
      %v2088 = vsel %vm2071, %v2024, 0
      %v2091 = vsel %vm2071, %v2025, 0
      %v2094 = vsel %vm2071, %v2026, 0
      %v2097 = vsel %vm2071, %v2027, 0
      %v2100 = vsel %vm2071, %v2028, 0
      %v2103 = vsel %vm2071, %v2029, 0
      %v2106 = vsel %vm2071, %v2030, 0
      %v2109 = vsel %vm2071, %v2031, 0
      %v2112 = vsel %vm2071, %v2032, 0
      %v2115 = vsel %vm2071, %v2033, 0
      %v2118 = vsel %vm2071, %v2034, 0
      %2120 = vmatprep.subr.bf16.mxu0 0
      %2121 = vmatpush1.bf16.msra.mxu0 0
      %2122 = vmatprep.subr.bf16.mxu0 0
      %2123 = vmatpush1.bf16.msra.mxu0 0
      %2124 = vmatprep.subr.bf16.mxu0 0
      %2125 = vmatpush1.bf16.msra.mxu0 %v2064
      %2126 = vmatprep.subr.bf16.mxu0 0
      %2127 = vmatpush1.bf16.msra.mxu0 %v2063
      %2128 = vmatprep.subr.bf16.mxu0 0
      %2129 = vmatpush1.bf16.msra.mxu0 %v2062
      %2130 = vmatprep.subr.bf16.mxu0 0
      %2131 = vmatpush1.bf16.msra.mxu0 %v2061
      %2132 = vmatprep.subr.bf16.mxu0 0
      %2133 = vmatpush1.bf16.msra.mxu0 %v2060
      %2134 = vmatprep.subr.bf16.mxu0 0
      %2135 = vmatpush1.bf16.msra.mxu0 %v2059
      %2136 = vmatprep.subr.bf16.mxu0 0
      %2137 = vmatpush2.bf16.msra.mxu0 0
      %2138 = vmatprep.subr.bf16.mxu0 0
      %2139 = vmatpush2.bf16.msra.mxu0 0
      %2140 = vmatprep.subr.bf16.mxu0 0
      %2141 = vmatpush2.bf16.msra.mxu0 0
      %2142 = vmatprep.subr.bf16.mxu0 0
      %2143 = vmatpush2.bf16.msra.mxu0 0
      %2144 = vmatprep.subr.bf16.mxu0 0
      %2145 = vmatpush2.bf16.msra.mxu0 0
      %2146 = vmatprep.subr.bf16.mxu0 0
      %2147 = vmatpush2.bf16.msra.mxu0 0
      %2148 = vmatprep.subr.bf16.mxu0 0
      %2149 = vmatpush2.bf16.msra.mxu0 0
      %2150 = vmatprep.subr.bf16.mxu0 0
      %2151 = vmatpush2.bf16.msra.mxu0 0
      %2152 = vmatprep.mubr.bf16.mxu0 0
      %2153 = vmatmul.mubr.bf16.gmra.mxu0 %v2073
      %v2154 = vpop.f32.mrf.mxu0
      %v2155 = vadd.f32 0.0, %v2154
      %v2156 = vpop.f32.mrf.mxu0
      %v2157 = vpop.f32.mrf.mxu0
      %v2158 = vadd.f32 0.0, %v2157
      %v2159 = vpop.f32.mrf.mxu0
      %2160 = vmatprep.mubr.bf16.mxu0 0
      %2161 = vmatmul.mubr.bf16.gmra.mxu0 %v2076
      %v2162 = vpop.f32.mrf.mxu0
      %v2163 = vadd.f32 0.0, %v2162
      %v2164 = vpop.f32.mrf.mxu0
      %v2165 = vpop.f32.mrf.mxu0
      %v2166 = vadd.f32 0.0, %v2165
      %v2167 = vpop.f32.mrf.mxu0
      %2168 = vmatprep.mubr.bf16.mxu0 0
      %2169 = vmatmul.mubr.bf16.gmra.mxu0 %v2079
      %v2170 = vpop.f32.mrf.mxu0
      %v2171 = vadd.f32 0.0, %v2170
      %v2172 = vpop.f32.mrf.mxu0
      %v2173 = vpop.f32.mrf.mxu0
      %v2174 = vadd.f32 0.0, %v2173
      %v2175 = vpop.f32.mrf.mxu0
      %2176 = vmatprep.mubr.bf16.mxu0 0
      %2177 = vmatmul.mubr.bf16.gmra.mxu0 %v2082
      %v2178 = vpop.f32.mrf.mxu0
      %v2179 = vadd.f32 0.0, %v2178
      %v2180 = vpop.f32.mrf.mxu0
      %v2181 = vpop.f32.mrf.mxu0
      %v2182 = vadd.f32 0.0, %v2181
      %v2183 = vpop.f32.mrf.mxu0
      %2184 = vmatprep.mubr.bf16.mxu0 0
      %2185 = vmatmul.mubr.bf16.gmra.mxu0 %v2085
      %v2186 = vpop.f32.mrf.mxu0
      %v2187 = vadd.f32 0.0, %v2186
      %v2188 = vpop.f32.mrf.mxu0
      %v2189 = vpop.f32.mrf.mxu0
      %v2190 = vadd.f32 0.0, %v2189
      %v2191 = vpop.f32.mrf.mxu0
      %2192 = vmatprep.mubr.bf16.mxu0 0
      %2193 = vmatmul.mubr.bf16.gmra.mxu0 %v2088
      %v2194 = vpop.f32.mrf.mxu0
      %v2195 = vadd.f32 0.0, %v2194
      %v2196 = vpop.f32.mrf.mxu0
      %v2197 = vpop.f32.mrf.mxu0
      %v2198 = vadd.f32 0.0, %v2197
      %v2199 = vpop.f32.mrf.mxu0
      %2200 = vmatprep.mubr.bf16.mxu0 0
      %2201 = vmatmul.mubr.bf16.gmra.mxu0 %v2091
      %v2202 = vpop.f32.mrf.mxu0
      %v2203 = vadd.f32 0.0, %v2202
      %v2204 = vpop.f32.mrf.mxu0
      %v2205 = vpop.f32.mrf.mxu0
      %v2206 = vadd.f32 0.0, %v2205
      %v2207 = vpop.f32.mrf.mxu0
      %2208 = vmatprep.mubr.bf16.mxu0 0
      %2209 = vmatmul.mubr.bf16.gmra.mxu0 %v2094
      %v2210 = vpop.f32.mrf.mxu0
      %v2211 = vadd.f32 0.0, %v2210
      %v2212 = vpop.f32.mrf.mxu0
      %v2213 = vpop.f32.mrf.mxu0
      %v2214 = vadd.f32 0.0, %v2213
      %v2215 = vpop.f32.mrf.mxu0
      %2216 = vmatprep.mubr.bf16.mxu0 0
      %2217 = vmatmul.mubr.bf16.gmra.mxu0 %v2097
      %v2218 = vpop.f32.mrf.mxu0
      %v2219 = vadd.f32 0.0, %v2218
      %v2220 = vpop.f32.mrf.mxu0
      %v2221 = vpop.f32.mrf.mxu0
      %v2222 = vadd.f32 0.0, %v2221
      %v2223 = vpop.f32.mrf.mxu0
      %2224 = vmatprep.mubr.bf16.mxu0 0
      %2225 = vmatmul.mubr.bf16.gmra.mxu0 %v2100
      %v2226 = vpop.f32.mrf.mxu0
      %v2227 = vadd.f32 0.0, %v2226
      %v2228 = vpop.f32.mrf.mxu0
      %v2229 = vpop.f32.mrf.mxu0
      %v2230 = vadd.f32 0.0, %v2229
      %v2231 = vpop.f32.mrf.mxu0
      %2232 = vmatprep.mubr.bf16.mxu0 0
      %2233 = vmatmul.mubr.bf16.gmra.mxu0 %v2103
      %v2234 = vpop.f32.mrf.mxu0
      %v2235 = vadd.f32 0.0, %v2234
      %v2236 = vpop.f32.mrf.mxu0
      %v2237 = vpop.f32.mrf.mxu0
      %v2238 = vadd.f32 0.0, %v2237
      %v2239 = vpop.f32.mrf.mxu0
      %2240 = vmatprep.mubr.bf16.mxu0 0
      %2241 = vmatmul.mubr.bf16.gmra.mxu0 %v2106
      %v2242 = vpop.f32.mrf.mxu0
      %v2243 = vadd.f32 0.0, %v2242
      %v2244 = vpop.f32.mrf.mxu0
      %v2245 = vpop.f32.mrf.mxu0
      %v2246 = vadd.f32 0.0, %v2245
      %v2247 = vpop.f32.mrf.mxu0
      %2248 = vmatprep.mubr.bf16.mxu0 0
      %2249 = vmatmul.mubr.bf16.gmra.mxu0 %v2109
      %v2250 = vpop.f32.mrf.mxu0
      %v2251 = vadd.f32 0.0, %v2250
      %v2252 = vpop.f32.mrf.mxu0
      %v2253 = vpop.f32.mrf.mxu0
      %v2254 = vadd.f32 0.0, %v2253
      %v2255 = vpop.f32.mrf.mxu0
      %2256 = vmatprep.mubr.bf16.mxu0 0
      %2257 = vmatmul.mubr.bf16.gmra.mxu0 %v2112
      %v2258 = vpop.f32.mrf.mxu0
      %v2259 = vadd.f32 0.0, %v2258
      %v2260 = vpop.f32.mrf.mxu0
      %v2261 = vpop.f32.mrf.mxu0
      %v2262 = vadd.f32 0.0, %v2261
      %v2263 = vpop.f32.mrf.mxu0
      %2264 = vmatprep.mubr.bf16.mxu0 0
      %2265 = vmatmul.mubr.bf16.gmra.mxu0 %v2115
      %v2266 = vpop.f32.mrf.mxu0
      %v2267 = vadd.f32 0.0, %v2266
      %v2268 = vpop.f32.mrf.mxu0
      %v2269 = vpop.f32.mrf.mxu0
      %v2270 = vadd.f32 0.0, %v2269
      %v2271 = vpop.f32.mrf.mxu0
      %2272 = vmatprep.mubr.bf16.mxu0 0
      %2273 = vmatmul.mubr.bf16.gmra.mxu0 %v2118
      %v2274 = vpop.f32.mrf.mxu0
      %v2275 = vadd.f32 0.0, %v2274
      %v2276 = vpop.f32.mrf.mxu0
      %v2277 = vpop.f32.mrf.mxu0
      %v2278 = vadd.f32 0.0, %v2277
      %v2279 = vpop.f32.mrf.mxu0
      %2280 = vdwg.mxu0
      %v2313 = vunpack.c.l.b16 %v1162
      %v2314 = vunpack.c.l.b16 %v1163
      %v2315 = vunpack.c.l.b16 %v1164
      %v2316 = vunpack.c.l.b16 %v1165
      %v2317 = vunpack.c.l.b16 %v1166
      %v2318 = vunpack.c.l.b16 %v1167
      %v2319 = vunpack.c.l.b16 %v1168
      %v2320 = vunpack.c.l.b16 %v1169
      %v2321 = vunpack.c.l.b16 %v1170
      %v2322 = vunpack.c.l.b16 %v1171
      %v2323 = vunpack.c.l.b16 %v1172
      %v2324 = vunpack.c.l.b16 %v1173
      %v2325 = vunpack.c.l.b16 %v1174
      %v2326 = vunpack.c.l.b16 %v1175
      %v2327 = vunpack.c.l.b16 %v1176
      %v2328 = vunpack.c.l.b16 %v1177
      %v2329 = vunpack.c.l.b16 %v1178
      %v2330 = vunpack.c.l.b16 %v1179
      %v2331 = vunpack.c.l.b16 %v1180
      %v2332 = vunpack.c.l.b16 %v1181
      %v2333 = vunpack.c.l.b16 %v1182
      %v2334 = vunpack.c.l.b16 %v1183
      %v2335 = vunpack.c.l.b16 %v1184
      %v2336 = vunpack.c.l.b16 %v1185
      %v2337 = vunpack.c.l.b16 %v1186
      %v2338 = vunpack.c.l.b16 %v1187
      %v2339 = vunpack.c.l.b16 %v1188
      %v2340 = vunpack.c.l.b16 %v1189
      %v2341 = vunpack.c.l.b16 %v1190
      %v2342 = vunpack.c.l.b16 %v1191
      %v2343 = vunpack.c.l.b16 %v1192
      %v2344 = vunpack.c.l.b16 %v1193
      %v2345 = vpack.c.b16 %v2314, %v2313
      %v2346 = vpack.c.b16 %v2316, %v2315
      %v2347 = vpack.c.b16 %v2318, %v2317
      %v2348 = vpack.c.b16 %v2320, %v2319
      %v2349 = vpack.c.b16 %v2322, %v2321
      %v2350 = vpack.c.b16 %v2324, %v2323
      %v2351 = vpack.c.b16 %v2326, %v2325
      %v2352 = vpack.c.b16 %v2328, %v2327
      %v2353 = vpack.c.b16 %v2330, %v2329
      %v2354 = vpack.c.b16 %v2332, %v2331
      %v2355 = vpack.c.b16 %v2334, %v2333
      %v2356 = vpack.c.b16 %v2336, %v2335
      %v2357 = vpack.c.b16 %v2338, %v2337
      %v2358 = vpack.c.b16 %v2340, %v2339
      %v2359 = vpack.c.b16 %v2342, %v2341
      %v2360 = vpack.c.b16 %v2344, %v2343
      %v2373 = vunpack.c.l.b16 %v1194
      %v2374 = vunpack.c.l.b16 %v1195
      %v2375 = vunpack.c.l.b16 %v1196
      %v2376 = vunpack.c.l.b16 %v1197
      %v2377 = vunpack.c.l.b16 %v1198
      %v2378 = vunpack.c.l.b16 %v1199
      %v2379 = vunpack.c.l.b16 %v1200
      %v2380 = vunpack.c.l.b16 %v1201
      %v2381 = vunpack.c.l.b16 %v1202
      %v2382 = vunpack.c.l.b16 %v1203
      %v2383 = vunpack.c.l.b16 %v1204
      %v2384 = vunpack.c.l.b16 %v1205
      %v2385 = vpack.c.b16 %v2374, %v2373
      %v2386 = vpack.c.b16 %v2376, %v2375
      %v2387 = vpack.c.b16 %v2378, %v2377
      %v2388 = vpack.c.b16 %v2380, %v2379
      %v2389 = vpack.c.b16 %v2382, %v2381
      %v2390 = vpack.c.b16 %v2384, %v2383
      %v2398 = vsel %vm2071, %v2345, 0
      %v2401 = vsel %vm2071, %v2346, 0
      %v2404 = vsel %vm2071, %v2347, 0
      %v2407 = vsel %vm2071, %v2348, 0
      %v2410 = vsel %vm2071, %v2349, 0
      %v2413 = vsel %vm2071, %v2350, 0
      %v2416 = vsel %vm2071, %v2351, 0
      %v2419 = vsel %vm2071, %v2352, 0
      %v2422 = vsel %vm2071, %v2353, 0
      %v2425 = vsel %vm2071, %v2354, 0
      %v2428 = vsel %vm2071, %v2355, 0
      %v2431 = vsel %vm2071, %v2356, 0
      %v2434 = vsel %vm2071, %v2357, 0
      %v2437 = vsel %vm2071, %v2358, 0
      %v2440 = vsel %vm2071, %v2359, 0
      %v2443 = vsel %vm2071, %v2360, 0
      %2445 = vmatprep.subr.bf16.mxu0 0
      %2446 = vmatpush1.bf16.msra.mxu0 0
      %2447 = vmatprep.subr.bf16.mxu0 0
      %2448 = vmatpush1.bf16.msra.mxu0 0
      %2449 = vmatprep.subr.bf16.mxu0 0
      %2450 = vmatpush1.bf16.msra.mxu0 %v2390
      %2451 = vmatprep.subr.bf16.mxu0 0
      %2452 = vmatpush1.bf16.msra.mxu0 %v2389
      %2453 = vmatprep.subr.bf16.mxu0 0
      %2454 = vmatpush1.bf16.msra.mxu0 %v2388
      %2455 = vmatprep.subr.bf16.mxu0 0
      %2456 = vmatpush1.bf16.msra.mxu0 %v2387
      %2457 = vmatprep.subr.bf16.mxu0 0
      %2458 = vmatpush1.bf16.msra.mxu0 %v2386
      %2459 = vmatprep.subr.bf16.mxu0 0
      %2460 = vmatpush1.bf16.msra.mxu0 %v2385
      %2461 = vmatprep.subr.bf16.mxu0 0
      %2462 = vmatpush2.bf16.msra.mxu0 0
      %2463 = vmatprep.subr.bf16.mxu0 0
      %2464 = vmatpush2.bf16.msra.mxu0 0
      %2465 = vmatprep.subr.bf16.mxu0 0
      %2466 = vmatpush2.bf16.msra.mxu0 0
      %2467 = vmatprep.subr.bf16.mxu0 0
      %2468 = vmatpush2.bf16.msra.mxu0 0
      %2469 = vmatprep.subr.bf16.mxu0 0
      %2470 = vmatpush2.bf16.msra.mxu0 0
      %2471 = vmatprep.subr.bf16.mxu0 0
      %2472 = vmatpush2.bf16.msra.mxu0 0
      %2473 = vmatprep.subr.bf16.mxu0 0
      %2474 = vmatpush2.bf16.msra.mxu0 0
      %2475 = vmatprep.subr.bf16.mxu0 0
      %2476 = vmatpush2.bf16.msra.mxu0 0
      %2477 = vmatprep.mubr.bf16.mxu0 0
      %2478 = vmatmul.mubr.bf16.gmra.mxu0 %v2398
      %v2479 = vpop.f32.mrf.mxu0
      %v2480 = vadd.f32 %v2155, %v2479
      %v2481 = vpop.f32.mrf.mxu0
      %v2482 = vpop.f32.mrf.mxu0
      %v2483 = vadd.f32 %v2158, %v2482
      %v2484 = vpop.f32.mrf.mxu0
      %2485 = vmatprep.mubr.bf16.mxu0 0
      %2486 = vmatmul.mubr.bf16.gmra.mxu0 %v2401
      %v2487 = vpop.f32.mrf.mxu0
      %v2488 = vadd.f32 %v2163, %v2487
      %v2489 = vpop.f32.mrf.mxu0
      %v2490 = vpop.f32.mrf.mxu0
      %v2491 = vadd.f32 %v2166, %v2490
      %v2492 = vpop.f32.mrf.mxu0
      %2493 = vmatprep.mubr.bf16.mxu0 0
      %2494 = vmatmul.mubr.bf16.gmra.mxu0 %v2404
      %v2495 = vpop.f32.mrf.mxu0
      %v2496 = vadd.f32 %v2171, %v2495
      %v2497 = vpop.f32.mrf.mxu0
      %v2498 = vpop.f32.mrf.mxu0
      %v2499 = vadd.f32 %v2174, %v2498
      %v2500 = vpop.f32.mrf.mxu0
      %2501 = vmatprep.mubr.bf16.mxu0 0
      %2502 = vmatmul.mubr.bf16.gmra.mxu0 %v2407
      %v2503 = vpop.f32.mrf.mxu0
      %v2504 = vadd.f32 %v2179, %v2503
      %v2505 = vpop.f32.mrf.mxu0
      %v2506 = vpop.f32.mrf.mxu0
      %v2507 = vadd.f32 %v2182, %v2506
      %v2508 = vpop.f32.mrf.mxu0
      %2509 = vmatprep.mubr.bf16.mxu0 0
      %2510 = vmatmul.mubr.bf16.gmra.mxu0 %v2410
      %v2511 = vpop.f32.mrf.mxu0
      %v2512 = vadd.f32 %v2187, %v2511
      %v2513 = vpop.f32.mrf.mxu0
      %v2514 = vpop.f32.mrf.mxu0
      %v2515 = vadd.f32 %v2190, %v2514
      %v2516 = vpop.f32.mrf.mxu0
      %2517 = vmatprep.mubr.bf16.mxu0 0
      %2518 = vmatmul.mubr.bf16.gmra.mxu0 %v2413
      %v2519 = vpop.f32.mrf.mxu0
      %v2520 = vadd.f32 %v2195, %v2519
      %v2521 = vpop.f32.mrf.mxu0
      %v2522 = vpop.f32.mrf.mxu0
      %v2523 = vadd.f32 %v2198, %v2522
      %v2524 = vpop.f32.mrf.mxu0
      %2525 = vmatprep.mubr.bf16.mxu0 0
      %2526 = vmatmul.mubr.bf16.gmra.mxu0 %v2416
      %v2527 = vpop.f32.mrf.mxu0
      %v2528 = vadd.f32 %v2203, %v2527
      %v2529 = vpop.f32.mrf.mxu0
      %v2530 = vpop.f32.mrf.mxu0
      %v2531 = vadd.f32 %v2206, %v2530
      %v2532 = vpop.f32.mrf.mxu0
      %2533 = vmatprep.mubr.bf16.mxu0 0
      %2534 = vmatmul.mubr.bf16.gmra.mxu0 %v2419
      %v2535 = vpop.f32.mrf.mxu0
      %v2536 = vadd.f32 %v2211, %v2535
      %v2537 = vpop.f32.mrf.mxu0
      %v2538 = vpop.f32.mrf.mxu0
      %v2539 = vadd.f32 %v2214, %v2538
      %v2540 = vpop.f32.mrf.mxu0
      %2541 = vmatprep.mubr.bf16.mxu0 0
      %2542 = vmatmul.mubr.bf16.gmra.mxu0 %v2422
      %v2543 = vpop.f32.mrf.mxu0
      %v2544 = vadd.f32 %v2219, %v2543
      %v2545 = vpop.f32.mrf.mxu0
      %v2546 = vpop.f32.mrf.mxu0
      %v2547 = vadd.f32 %v2222, %v2546
      %v2548 = vpop.f32.mrf.mxu0
      %2549 = vmatprep.mubr.bf16.mxu0 0
      %2550 = vmatmul.mubr.bf16.gmra.mxu0 %v2425
      %v2551 = vpop.f32.mrf.mxu0
      %v2552 = vadd.f32 %v2227, %v2551
      %v2553 = vpop.f32.mrf.mxu0
      %v2554 = vpop.f32.mrf.mxu0
      %v2555 = vadd.f32 %v2230, %v2554
      %v2556 = vpop.f32.mrf.mxu0
      %2557 = vmatprep.mubr.bf16.mxu0 0
      %2558 = vmatmul.mubr.bf16.gmra.mxu0 %v2428
      %v2559 = vpop.f32.mrf.mxu0
      %v2560 = vadd.f32 %v2235, %v2559
      %v2561 = vpop.f32.mrf.mxu0
      %v2562 = vpop.f32.mrf.mxu0
      %v2563 = vadd.f32 %v2238, %v2562
      %v2564 = vpop.f32.mrf.mxu0
      %2565 = vmatprep.mubr.bf16.mxu0 0
      %2566 = vmatmul.mubr.bf16.gmra.mxu0 %v2431
      %v2567 = vpop.f32.mrf.mxu0
      %v2568 = vadd.f32 %v2243, %v2567
      %v2569 = vpop.f32.mrf.mxu0
      %v2570 = vpop.f32.mrf.mxu0
      %v2571 = vadd.f32 %v2246, %v2570
      %v2572 = vpop.f32.mrf.mxu0
      %2573 = vmatprep.mubr.bf16.mxu0 0
      %2574 = vmatmul.mubr.bf16.gmra.mxu0 %v2434
      %v2575 = vpop.f32.mrf.mxu0
      %v2576 = vadd.f32 %v2251, %v2575
      %v2577 = vpop.f32.mrf.mxu0
      %v2578 = vpop.f32.mrf.mxu0
      %v2579 = vadd.f32 %v2254, %v2578
      %v2580 = vpop.f32.mrf.mxu0
      %2581 = vmatprep.mubr.bf16.mxu0 0
      %2582 = vmatmul.mubr.bf16.gmra.mxu0 %v2437
      %v2583 = vpop.f32.mrf.mxu0
      %v2584 = vadd.f32 %v2259, %v2583
      %v2585 = vpop.f32.mrf.mxu0
      %v2586 = vpop.f32.mrf.mxu0
      %v2587 = vadd.f32 %v2262, %v2586
      %v2588 = vpop.f32.mrf.mxu0
      %2589 = vmatprep.mubr.bf16.mxu0 0
      %2590 = vmatmul.mubr.bf16.gmra.mxu0 %v2440
      %v2591 = vpop.f32.mrf.mxu0
      %v2592 = vadd.f32 %v2267, %v2591
      %v2593 = vpop.f32.mrf.mxu0
      %v2594 = vpop.f32.mrf.mxu0
      %v2595 = vadd.f32 %v2270, %v2594
      %v2596 = vpop.f32.mrf.mxu0
      %2597 = vmatprep.mubr.bf16.mxu0 0
      %2598 = vmatmul.mubr.bf16.gmra.mxu0 %v2443
      %v2599 = vpop.f32.mrf.mxu0
      %v2600 = vadd.f32 %v2275, %v2599
      %v2601 = vpop.f32.mrf.mxu0
      %v2602 = vpop.f32.mrf.mxu0
      %v2603 = vadd.f32 %v2278, %v2602
      %v2604 = vpop.f32.mrf.mxu0
      %2605 = vdwg.mxu0
      %s2606 = scalar_lea.vmem [#allocation2], 48
      %v2607 = vld [vmem:[%s2606] sm:$0xff]
      %v2608 = vld [vmem:[%s2606 + $0x8] sm:$0xff]
      %v2609 = vld [vmem:[%s2606 + $0x18] sm:$0xff]
      %v2610 = vld [vmem:[%s2606 + $0x20] sm:$0xff]
      %v2611 = vld [vmem:[%s2606 + $0x30] sm:$0xff]
      %v2612 = vld [vmem:[%s2606 + $0x38] sm:$0xff]
      %v2613 = vld [vmem:[%s2606 + $0x48] sm:$0xff]
      %v2614 = vld [vmem:[%s2606 + $0x50] sm:$0xff]
      %v2615 = vld [vmem:[%s2606 + $0x60] sm:$0xff]
      %v2616 = vld [vmem:[%s2606 + $0x68] sm:$0xff]
      %v2617 = vld [vmem:[%s2606 + $0x78] sm:$0xff]
      %v2618 = vld [vmem:[%s2606 + $0x80] sm:$0xff]
      %v2619 = vld [vmem:[%s2606 + $0x90] sm:$0xff]
      %v2620 = vld [vmem:[%s2606 + $0x98] sm:$0xff]
      %v2621 = vld [vmem:[%s2606 + $0xa8] sm:$0xff]
      %v2622 = vld [vmem:[%s2606 + $0xb0] sm:$0xff]
      %v2623 = vld [vmem:[%s2606 + $0xc0] sm:$0xff]
      %v2624 = vld [vmem:[%s2606 + $0xc8] sm:$0xff]
      %v2625 = vld [vmem:[%s2606 + $0xd8] sm:$0xff]
      %v2626 = vld [vmem:[%s2606 + $0xe0] sm:$0xff]
      %v2627 = vld [vmem:[%s2606 + $0xf0] sm:$0xff]
      %v2628 = vld [vmem:[%s2606 + $0xf8] sm:$0xff]
      %v2629 = vld [vmem:[%s2606 + $0x108] sm:$0xff]
      %v2630 = vld [vmem:[%s2606 + $0x110] sm:$0xff]
      %v2631 = vld [vmem:[%s2606 + $0x120] sm:$0xff]
      %v2632 = vld [vmem:[%s2606 + $0x128] sm:$0xff]
      %v2633 = vld [vmem:[%s2606 + $0x138] sm:$0xff]
      %v2634 = vld [vmem:[%s2606 + $0x140] sm:$0xff]
      %v2635 = vld [vmem:[%s2606 + $0x150] sm:$0xff]
      %v2636 = vld [vmem:[%s2606 + $0x158] sm:$0xff]
      %v2637 = vld [vmem:[%s2606 + $0x168] sm:$0xff]
      %v2638 = vld [vmem:[%s2606 + $0x170] sm:$0xff]
      %v2639 = vpack.c.bf16 %v2608, %v2607
      %v2640 = vpack.c.bf16 %v2610, %v2609
      %v2641 = vpack.c.bf16 %v2612, %v2611
      %v2642 = vpack.c.bf16 %v2614, %v2613
      %v2643 = vpack.c.bf16 %v2616, %v2615
      %v2644 = vpack.c.bf16 %v2618, %v2617
      %v2645 = vpack.c.bf16 %v2620, %v2619
      %v2646 = vpack.c.bf16 %v2622, %v2621
      %v2647 = vpack.c.bf16 %v2624, %v2623
      %v2648 = vpack.c.bf16 %v2626, %v2625
      %v2649 = vpack.c.bf16 %v2628, %v2627
      %v2650 = vpack.c.bf16 %v2630, %v2629
      %v2651 = vpack.c.bf16 %v2632, %v2631
      %v2652 = vpack.c.bf16 %v2634, %v2633
      %v2653 = vpack.c.bf16 %v2636, %v2635
      %v2654 = vpack.c.bf16 %v2638, %v2637
      %v2671 = vunpack.c.l.b16 %v2639
      %v2672 = vunpack.c.h.b16 %v2639
      %v2673 = vunpack.c.l.b16 %v2640
      %v2674 = vunpack.c.h.b16 %v2640
      %v2675 = vunpack.c.l.b16 %v2641
      %v2676 = vunpack.c.h.b16 %v2641
      %v2677 = vunpack.c.l.b16 %v2642
      %v2678 = vunpack.c.h.b16 %v2642
      %v2679 = vunpack.c.l.b16 %v2643
      %v2680 = vunpack.c.h.b16 %v2643
      %v2681 = vunpack.c.l.b16 %v2644
      %v2682 = vunpack.c.h.b16 %v2644
      %v2683 = vunpack.c.l.b16 %v2645
      %v2684 = vunpack.c.h.b16 %v2645
      %v2685 = vunpack.c.l.b16 %v2646
      %v2686 = vunpack.c.h.b16 %v2646
      %v2687 = vunpack.c.l.b16 %v2647
      %v2688 = vunpack.c.h.b16 %v2647
      %v2689 = vunpack.c.l.b16 %v2648
      %v2690 = vunpack.c.h.b16 %v2648
      %v2691 = vunpack.c.l.b16 %v2649
      %v2692 = vunpack.c.h.b16 %v2649
      %v2693 = vunpack.c.l.b16 %v2650
      %v2694 = vunpack.c.h.b16 %v2650
      %v2695 = vunpack.c.l.b16 %v2651
      %v2696 = vunpack.c.h.b16 %v2651
      %v2697 = vunpack.c.l.b16 %v2652
      %v2698 = vunpack.c.h.b16 %v2652
      %v2699 = vunpack.c.l.b16 %v2653
      %v2700 = vunpack.c.h.b16 %v2653
      %v2701 = vunpack.c.l.b16 %v2654
      %v2702 = vunpack.c.h.b16 %v2654
      %v2703 = vpack.c.b16 %v2671, %v2671
      %v2704 = vpack.c.b16 %v2672, %v2672
      %v2705 = vpack.c.b16 %v2673, %v2673
      %v2706 = vpack.c.b16 %v2674, %v2674
      %v2707 = vpack.c.b16 %v2675, %v2675
      %v2708 = vpack.c.b16 %v2676, %v2676
      %v2709 = vpack.c.b16 %v2677, %v2677
      %v2710 = vpack.c.b16 %v2678, %v2678
      %v2711 = vpack.c.b16 %v2679, %v2679
      %v2712 = vpack.c.b16 %v2680, %v2680
      %v2713 = vpack.c.b16 %v2681, %v2681
      %v2714 = vpack.c.b16 %v2682, %v2682
      %v2715 = vpack.c.b16 %v2683, %v2683
      %v2716 = vpack.c.b16 %v2684, %v2684
      %v2717 = vpack.c.b16 %v2685, %v2685
      %v2718 = vpack.c.b16 %v2686, %v2686
      %v2719 = vpack.c.b16 %v2687, %v2687
      %v2720 = vpack.c.b16 %v2688, %v2688
      %v2721 = vpack.c.b16 %v2689, %v2689
      %v2722 = vpack.c.b16 %v2690, %v2690
      %v2723 = vpack.c.b16 %v2691, %v2691
      %v2724 = vpack.c.b16 %v2692, %v2692
      %v2725 = vpack.c.b16 %v2693, %v2693
      %v2726 = vpack.c.b16 %v2694, %v2694
      %v2727 = vpack.c.b16 %v2695, %v2695
      %v2728 = vpack.c.b16 %v2696, %v2696
      %v2729 = vpack.c.b16 %v2697, %v2697
      %v2730 = vpack.c.b16 %v2698, %v2698
      %v2731 = vpack.c.b16 %v2699, %v2699
      %v2732 = vpack.c.b16 %v2700, %v2700
      %v2733 = vpack.c.b16 %v2701, %v2701
      %v2734 = vpack.c.b16 %v2702, %v2702
      %2767 = vst.msk [vmem:[#allocation3] sm:$0xf] %vm615, %v2703
      %2768 = vst.msk [vmem:[#allocation3 + $0x4] sm:$0xf] %vm615, %v2704
      %2769 = vst.msk [vmem:[#allocation3 + $0x8] sm:$0xf] %vm615, %v2705
      %2770 = vst.msk [vmem:[#allocation3 + $0xc] sm:$0xf] %vm615, %v2706
      %2771 = vst.msk [vmem:[#allocation3 + $0x10] sm:$0xf] %vm615, %v2707
      %2772 = vst.msk [vmem:[#allocation3 + $0x14] sm:$0xf] %vm615, %v2708
      %2773 = vst.msk [vmem:[#allocation3 + $0x18] sm:$0xf] %vm615, %v2709
      %2774 = vst.msk [vmem:[#allocation3 + $0x1c] sm:$0xf] %vm615, %v2710
      %2775 = vst.msk [vmem:[#allocation3 + $0x20] sm:$0xf] %vm615, %v2711
      %2776 = vst.msk [vmem:[#allocation3 + $0x24] sm:$0xf] %vm615, %v2712
      %2777 = vst.msk [vmem:[#allocation3 + $0x28] sm:$0xf] %vm615, %v2713
      %2778 = vst.msk [vmem:[#allocation3 + $0x2c] sm:$0xf] %vm615, %v2714
      %2779 = vst.msk [vmem:[#allocation3 + $0x30] sm:$0xf] %vm615, %v2715
      %2780 = vst.msk [vmem:[#allocation3 + $0x34] sm:$0xf] %vm615, %v2716
      %2781 = vst.msk [vmem:[#allocation3 + $0x38] sm:$0xf] %vm615, %v2717
      %2782 = vst.msk [vmem:[#allocation3 + $0x3c] sm:$0xf] %vm615, %v2718
      %2783 = vst.msk [vmem:[#allocation3 + $0x40] sm:$0xf] %vm615, %v2719
      %2784 = vst.msk [vmem:[#allocation3 + $0x44] sm:$0xf] %vm615, %v2720
      %2785 = vst.msk [vmem:[#allocation3 + $0x48] sm:$0xf] %vm615, %v2721
      %2786 = vst.msk [vmem:[#allocation3 + $0x4c] sm:$0xf] %vm615, %v2722
      %2787 = vst.msk [vmem:[#allocation3 + $0x50] sm:$0xf] %vm615, %v2723
      %2788 = vst.msk [vmem:[#allocation3 + $0x54] sm:$0xf] %vm615, %v2724
      %2789 = vst.msk [vmem:[#allocation3 + $0x58] sm:$0xf] %vm615, %v2725
      %2790 = vst.msk [vmem:[#allocation3 + $0x5c] sm:$0xf] %vm615, %v2726
      %2791 = vst.msk [vmem:[#allocation3 + $0x60] sm:$0xf] %vm615, %v2727
      %2792 = vst.msk [vmem:[#allocation3 + $0x64] sm:$0xf] %vm615, %v2728
      %2793 = vst.msk [vmem:[#allocation3 + $0x68] sm:$0xf] %vm615, %v2729
      %2794 = vst.msk [vmem:[#allocation3 + $0x6c] sm:$0xf] %vm615, %v2730
      %2795 = vst.msk [vmem:[#allocation3 + $0x70] sm:$0xf] %vm615, %v2731
      %2796 = vst.msk [vmem:[#allocation3 + $0x74] sm:$0xf] %vm615, %v2732
      %2797 = vst.msk [vmem:[#allocation3 + $0x78] sm:$0xf] %vm615, %v2733
      %2798 = vst.msk [vmem:[#allocation3 + $0x7c] sm:$0xf] %vm615, %v2734
      %v2799 = vld [vmem:[%s2606 + $0x1] sm:$0xff]
      %v2800 = vld [vmem:[%s2606 + $0x9] sm:$0xff]
      %v2801 = vld [vmem:[%s2606 + $0x19] sm:$0xff]
      %v2802 = vld [vmem:[%s2606 + $0x21] sm:$0xff]
      %v2803 = vld [vmem:[%s2606 + $0x31] sm:$0xff]
      %v2804 = vld [vmem:[%s2606 + $0x39] sm:$0xff]
      %v2805 = vld [vmem:[%s2606 + $0x49] sm:$0xff]
      %v2806 = vld [vmem:[%s2606 + $0x51] sm:$0xff]
      %v2807 = vld [vmem:[%s2606 + $0x61] sm:$0xff]
      %v2808 = vld [vmem:[%s2606 + $0x69] sm:$0xff]
      %v2809 = vld [vmem:[%s2606 + $0x79] sm:$0xff]
      %v2810 = vld [vmem:[%s2606 + $0x81] sm:$0xff]
      %v2811 = vld [vmem:[%s2606 + $0x91] sm:$0xff]
      %v2812 = vld [vmem:[%s2606 + $0x99] sm:$0xff]
      %v2813 = vld [vmem:[%s2606 + $0xa9] sm:$0xff]
      %v2814 = vld [vmem:[%s2606 + $0xb1] sm:$0xff]
      %v2815 = vld [vmem:[%s2606 + $0xc1] sm:$0xff]
      %v2816 = vld [vmem:[%s2606 + $0xc9] sm:$0xff]
      %v2817 = vld [vmem:[%s2606 + $0xd9] sm:$0xff]
      %v2818 = vld [vmem:[%s2606 + $0xe1] sm:$0xff]
      %v2819 = vld [vmem:[%s2606 + $0xf1] sm:$0xff]
      %v2820 = vld [vmem:[%s2606 + $0xf9] sm:$0xff]
      %v2821 = vld [vmem:[%s2606 + $0x109] sm:$0xff]
      %v2822 = vld [vmem:[%s2606 + $0x111] sm:$0xff]
      %v2823 = vld [vmem:[%s2606 + $0x121] sm:$0xff]
      %v2824 = vld [vmem:[%s2606 + $0x129] sm:$0xff]
      %v2825 = vld [vmem:[%s2606 + $0x139] sm:$0xff]
      %v2826 = vld [vmem:[%s2606 + $0x141] sm:$0xff]
      %v2827 = vld [vmem:[%s2606 + $0x151] sm:$0xff]
      %v2828 = vld [vmem:[%s2606 + $0x159] sm:$0xff]
      %v2829 = vld [vmem:[%s2606 + $0x169] sm:$0xff]
      %v2830 = vld [vmem:[%s2606 + $0x171] sm:$0xff]
      %v2831 = vpack.c.bf16 %v2800, %v2799
      %v2832 = vpack.c.bf16 %v2802, %v2801
      %v2833 = vpack.c.bf16 %v2804, %v2803
      %v2834 = vpack.c.bf16 %v2806, %v2805
      %v2835 = vpack.c.bf16 %v2808, %v2807
      %v2836 = vpack.c.bf16 %v2810, %v2809
      %v2837 = vpack.c.bf16 %v2812, %v2811
      %v2838 = vpack.c.bf16 %v2814, %v2813
      %v2839 = vpack.c.bf16 %v2816, %v2815
      %v2840 = vpack.c.bf16 %v2818, %v2817
      %v2841 = vpack.c.bf16 %v2820, %v2819
      %v2842 = vpack.c.bf16 %v2822, %v2821
      %v2843 = vpack.c.bf16 %v2824, %v2823
      %v2844 = vpack.c.bf16 %v2826, %v2825
      %v2845 = vpack.c.bf16 %v2828, %v2827
      %v2846 = vpack.c.bf16 %v2830, %v2829
      %v2863 = vunpack.c.l.b16 %v2831
      %v2864 = vunpack.c.h.b16 %v2831
      %v2865 = vunpack.c.l.b16 %v2832
      %v2866 = vunpack.c.h.b16 %v2832
      %v2867 = vunpack.c.l.b16 %v2833
      %v2868 = vunpack.c.h.b16 %v2833
      %v2869 = vunpack.c.l.b16 %v2834
      %v2870 = vunpack.c.h.b16 %v2834
      %v2871 = vunpack.c.l.b16 %v2835
      %v2872 = vunpack.c.h.b16 %v2835
      %v2873 = vunpack.c.l.b16 %v2836
      %v2874 = vunpack.c.h.b16 %v2836
      %v2875 = vunpack.c.l.b16 %v2837
      %v2876 = vunpack.c.h.b16 %v2837
      %v2877 = vunpack.c.l.b16 %v2838
      %v2878 = vunpack.c.h.b16 %v2838
      %v2879 = vunpack.c.l.b16 %v2839
      %v2880 = vunpack.c.h.b16 %v2839
      %v2881 = vunpack.c.l.b16 %v2840
      %v2882 = vunpack.c.h.b16 %v2840
      %v2883 = vunpack.c.l.b16 %v2841
      %v2884 = vunpack.c.h.b16 %v2841
      %v2885 = vunpack.c.l.b16 %v2842
      %v2886 = vunpack.c.h.b16 %v2842
      %v2887 = vunpack.c.l.b16 %v2843
      %v2888 = vunpack.c.h.b16 %v2843
      %v2889 = vunpack.c.l.b16 %v2844
      %v2890 = vunpack.c.h.b16 %v2844
      %v2891 = vunpack.c.l.b16 %v2845
      %v2892 = vunpack.c.h.b16 %v2845
      %v2893 = vunpack.c.l.b16 %v2846
      %v2894 = vunpack.c.h.b16 %v2846
      %v2895 = vpack.c.b16 %v2863, %v2863
      %v2896 = vpack.c.b16 %v2864, %v2864
      %v2897 = vpack.c.b16 %v2865, %v2865
      %v2898 = vpack.c.b16 %v2866, %v2866
      %v2899 = vpack.c.b16 %v2867, %v2867
      %v2900 = vpack.c.b16 %v2868, %v2868
      %v2901 = vpack.c.b16 %v2869, %v2869
      %v2902 = vpack.c.b16 %v2870, %v2870
      %v2903 = vpack.c.b16 %v2871, %v2871
      %v2904 = vpack.c.b16 %v2872, %v2872
      %v2905 = vpack.c.b16 %v2873, %v2873
      %v2906 = vpack.c.b16 %v2874, %v2874
      %v2907 = vpack.c.b16 %v2875, %v2875
      %v2908 = vpack.c.b16 %v2876, %v2876
      %v2909 = vpack.c.b16 %v2877, %v2877
      %v2910 = vpack.c.b16 %v2878, %v2878
      %v2911 = vpack.c.b16 %v2879, %v2879
      %v2912 = vpack.c.b16 %v2880, %v2880
      %v2913 = vpack.c.b16 %v2881, %v2881
      %v2914 = vpack.c.b16 %v2882, %v2882
      %v2915 = vpack.c.b16 %v2883, %v2883
      %v2916 = vpack.c.b16 %v2884, %v2884
      %v2917 = vpack.c.b16 %v2885, %v2885
      %v2918 = vpack.c.b16 %v2886, %v2886
      %v2919 = vpack.c.b16 %v2887, %v2887
      %v2920 = vpack.c.b16 %v2888, %v2888
      %v2921 = vpack.c.b16 %v2889, %v2889
      %v2922 = vpack.c.b16 %v2890, %v2890
      %v2923 = vpack.c.b16 %v2891, %v2891
      %v2924 = vpack.c.b16 %v2892, %v2892
      %v2925 = vpack.c.b16 %v2893, %v2893
      %v2926 = vpack.c.b16 %v2894, %v2894
      %2927 = vrot.lane.b32.xlu0 %v2895, 32
      %v2928 = vpop.permute.xlu0 %2927
      %2929 = vrot.lane.b32.xlu0 %v2896, 32
      %v2930 = vpop.permute.xlu0 %2929
      %2931 = vrot.lane.b32.xlu0 %v2897, 32
      %v2932 = vpop.permute.xlu0 %2931
      %2933 = vrot.lane.b32.xlu0 %v2898, 32
      %v2934 = vpop.permute.xlu0 %2933
      %2935 = vrot.lane.b32.xlu0 %v2899, 32
      %v2936 = vpop.permute.xlu0 %2935
      %2937 = vrot.lane.b32.xlu0 %v2900, 32
      %v2938 = vpop.permute.xlu0 %2937
      %2939 = vrot.lane.b32.xlu0 %v2901, 32
      %v2940 = vpop.permute.xlu0 %2939
      %2941 = vrot.lane.b32.xlu0 %v2902, 32
      %v2942 = vpop.permute.xlu0 %2941
      %2943 = vrot.lane.b32.xlu0 %v2903, 32
      %v2944 = vpop.permute.xlu0 %2943
      %2945 = vrot.lane.b32.xlu0 %v2904, 32
      %v2946 = vpop.permute.xlu0 %2945
      %2947 = vrot.lane.b32.xlu0 %v2905, 32
      %v2948 = vpop.permute.xlu0 %2947
      %2949 = vrot.lane.b32.xlu0 %v2906, 32
      %v2950 = vpop.permute.xlu0 %2949
      %2951 = vrot.lane.b32.xlu0 %v2907, 32
      %v2952 = vpop.permute.xlu0 %2951
      %2953 = vrot.lane.b32.xlu0 %v2908, 32
      %v2954 = vpop.permute.xlu0 %2953
      %2955 = vrot.lane.b32.xlu0 %v2909, 32
      %v2956 = vpop.permute.xlu0 %2955
      %2957 = vrot.lane.b32.xlu0 %v2910, 32
      %v2958 = vpop.permute.xlu0 %2957
      %2959 = vrot.lane.b32.xlu0 %v2911, 32
      %v2960 = vpop.permute.xlu0 %2959
      %2961 = vrot.lane.b32.xlu0 %v2912, 32
      %v2962 = vpop.permute.xlu0 %2961
      %2963 = vrot.lane.b32.xlu0 %v2913, 32
      %v2964 = vpop.permute.xlu0 %2963
      %2965 = vrot.lane.b32.xlu0 %v2914, 32
      %v2966 = vpop.permute.xlu0 %2965
      %2967 = vrot.lane.b32.xlu0 %v2915, 32
      %v2968 = vpop.permute.xlu0 %2967
      %2969 = vrot.lane.b32.xlu0 %v2916, 32
      %v2970 = vpop.permute.xlu0 %2969
      %2971 = vrot.lane.b32.xlu0 %v2917, 32
      %v2972 = vpop.permute.xlu0 %2971
      %2973 = vrot.lane.b32.xlu0 %v2918, 32
      %v2974 = vpop.permute.xlu0 %2973
      %2975 = vrot.lane.b32.xlu0 %v2919, 32
      %v2976 = vpop.permute.xlu0 %2975
      %2977 = vrot.lane.b32.xlu0 %v2920, 32
      %v2978 = vpop.permute.xlu0 %2977
      %2979 = vrot.lane.b32.xlu0 %v2921, 32
      %v2980 = vpop.permute.xlu0 %2979
      %2981 = vrot.lane.b32.xlu0 %v2922, 32
      %v2982 = vpop.permute.xlu0 %2981
      %2983 = vrot.lane.b32.xlu0 %v2923, 32
      %v2984 = vpop.permute.xlu0 %2983
      %2985 = vrot.lane.b32.xlu0 %v2924, 32
      %v2986 = vpop.permute.xlu0 %2985
      %2987 = vrot.lane.b32.xlu0 %v2925, 32
      %v2988 = vpop.permute.xlu0 %2987
      %2989 = vrot.lane.b32.xlu0 %v2926, 32
      %v2990 = vpop.permute.xlu0 %2989
      %3023 = vst.msk [vmem:[#allocation3] sm:$0xf] %vm872, %v2928
      %3024 = vst.msk [vmem:[#allocation3 + $0x4] sm:$0xf] %vm872, %v2930
      %3025 = vst.msk [vmem:[#allocation3 + $0x8] sm:$0xf] %vm872, %v2932
      %3026 = vst.msk [vmem:[#allocation3 + $0xc] sm:$0xf] %vm872, %v2934
      %3027 = vst.msk [vmem:[#allocation3 + $0x10] sm:$0xf] %vm872, %v2936
      %3028 = vst.msk [vmem:[#allocation3 + $0x14] sm:$0xf] %vm872, %v2938
      %3029 = vst.msk [vmem:[#allocation3 + $0x18] sm:$0xf] %vm872, %v2940
      %3030 = vst.msk [vmem:[#allocation3 + $0x1c] sm:$0xf] %vm872, %v2942
      %3031 = vst.msk [vmem:[#allocation3 + $0x20] sm:$0xf] %vm872, %v2944
      %3032 = vst.msk [vmem:[#allocation3 + $0x24] sm:$0xf] %vm872, %v2946
      %3033 = vst.msk [vmem:[#allocation3 + $0x28] sm:$0xf] %vm872, %v2948
      %3034 = vst.msk [vmem:[#allocation3 + $0x2c] sm:$0xf] %vm872, %v2950
      %3035 = vst.msk [vmem:[#allocation3 + $0x30] sm:$0xf] %vm872, %v2952
      %3036 = vst.msk [vmem:[#allocation3 + $0x34] sm:$0xf] %vm872, %v2954
      %3037 = vst.msk [vmem:[#allocation3 + $0x38] sm:$0xf] %vm872, %v2956
      %3038 = vst.msk [vmem:[#allocation3 + $0x3c] sm:$0xf] %vm872, %v2958
      %3039 = vst.msk [vmem:[#allocation3 + $0x40] sm:$0xf] %vm872, %v2960
      %3040 = vst.msk [vmem:[#allocation3 + $0x44] sm:$0xf] %vm872, %v2962
      %3041 = vst.msk [vmem:[#allocation3 + $0x48] sm:$0xf] %vm872, %v2964
      %3042 = vst.msk [vmem:[#allocation3 + $0x4c] sm:$0xf] %vm872, %v2966
      %3043 = vst.msk [vmem:[#allocation3 + $0x50] sm:$0xf] %vm872, %v2968
      %3044 = vst.msk [vmem:[#allocation3 + $0x54] sm:$0xf] %vm872, %v2970
      %3045 = vst.msk [vmem:[#allocation3 + $0x58] sm:$0xf] %vm872, %v2972
      %3046 = vst.msk [vmem:[#allocation3 + $0x5c] sm:$0xf] %vm872, %v2974
      %3047 = vst.msk [vmem:[#allocation3 + $0x60] sm:$0xf] %vm872, %v2976
      %3048 = vst.msk [vmem:[#allocation3 + $0x64] sm:$0xf] %vm872, %v2978
      %3049 = vst.msk [vmem:[#allocation3 + $0x68] sm:$0xf] %vm872, %v2980
      %3050 = vst.msk [vmem:[#allocation3 + $0x6c] sm:$0xf] %vm872, %v2982
      %3051 = vst.msk [vmem:[#allocation3 + $0x70] sm:$0xf] %vm872, %v2984
      %3052 = vst.msk [vmem:[#allocation3 + $0x74] sm:$0xf] %vm872, %v2986
      %3053 = vst.msk [vmem:[#allocation3 + $0x78] sm:$0xf] %vm872, %v2988
      %3054 = vst.msk [vmem:[#allocation3 + $0x7c] sm:$0xf] %vm872, %v2990
      %v3055 = vld [vmem:[%s2606 + $0x2] sm:$0xff]
      %v3056 = vld [vmem:[%s2606 + $0xa] sm:$0xff]
      %v3057 = vld [vmem:[%s2606 + $0x1a] sm:$0xff]
      %v3058 = vld [vmem:[%s2606 + $0x22] sm:$0xff]
      %v3059 = vld [vmem:[%s2606 + $0x32] sm:$0xff]
      %v3060 = vld [vmem:[%s2606 + $0x3a] sm:$0xff]
      %v3061 = vld [vmem:[%s2606 + $0x4a] sm:$0xff]
      %v3062 = vld [vmem:[%s2606 + $0x52] sm:$0xff]
      %v3063 = vld [vmem:[%s2606 + $0x62] sm:$0xff]
      %v3064 = vld [vmem:[%s2606 + $0x6a] sm:$0xff]
      %v3065 = vld [vmem:[%s2606 + $0x7a] sm:$0xff]
      %v3066 = vld [vmem:[%s2606 + $0x82] sm:$0xff]
      %v3067 = vld [vmem:[%s2606 + $0x92] sm:$0xff]
      %v3068 = vld [vmem:[%s2606 + $0x9a] sm:$0xff]
      %v3069 = vld [vmem:[%s2606 + $0xaa] sm:$0xff]
      %v3070 = vld [vmem:[%s2606 + $0xb2] sm:$0xff]
      %v3071 = vld [vmem:[%s2606 + $0xc2] sm:$0xff]
      %v3072 = vld [vmem:[%s2606 + $0xca] sm:$0xff]
      %v3073 = vld [vmem:[%s2606 + $0xda] sm:$0xff]
      %v3074 = vld [vmem:[%s2606 + $0xe2] sm:$0xff]
      %v3075 = vld [vmem:[%s2606 + $0xf2] sm:$0xff]
      %v3076 = vld [vmem:[%s2606 + $0xfa] sm:$0xff]
      %v3077 = vld [vmem:[%s2606 + $0x10a] sm:$0xff]
      %v3078 = vld [vmem:[%s2606 + $0x112] sm:$0xff]
      %v3079 = vld [vmem:[%s2606 + $0x122] sm:$0xff]
      %v3080 = vld [vmem:[%s2606 + $0x12a] sm:$0xff]
      %v3081 = vld [vmem:[%s2606 + $0x13a] sm:$0xff]
      %v3082 = vld [vmem:[%s2606 + $0x142] sm:$0xff]
      %v3083 = vld [vmem:[%s2606 + $0x152] sm:$0xff]
      %v3084 = vld [vmem:[%s2606 + $0x15a] sm:$0xff]
      %v3085 = vld [vmem:[%s2606 + $0x16a] sm:$0xff]
      %v3086 = vld [vmem:[%s2606 + $0x172] sm:$0xff]
      %v3087 = vpack.c.bf16 %v3056, %v3055
      %v3088 = vpack.c.bf16 %v3058, %v3057
      %v3089 = vpack.c.bf16 %v3060, %v3059
      %v3090 = vpack.c.bf16 %v3062, %v3061
      %v3091 = vpack.c.bf16 %v3064, %v3063
      %v3092 = vpack.c.bf16 %v3066, %v3065
      %v3093 = vpack.c.bf16 %v3068, %v3067
      %v3094 = vpack.c.bf16 %v3070, %v3069
      %v3095 = vpack.c.bf16 %v3072, %v3071
      %v3096 = vpack.c.bf16 %v3074, %v3073
      %v3097 = vpack.c.bf16 %v3076, %v3075
      %v3098 = vpack.c.bf16 %v3078, %v3077
      %v3099 = vpack.c.bf16 %v3080, %v3079
      %v3100 = vpack.c.bf16 %v3082, %v3081
      %v3101 = vpack.c.bf16 %v3084, %v3083
      %v3102 = vpack.c.bf16 %v3086, %v3085
      %v3119 = vunpack.c.l.b16 %v3087
      %v3120 = vunpack.c.h.b16 %v3087
      %v3121 = vunpack.c.l.b16 %v3088
      %v3122 = vunpack.c.h.b16 %v3088
      %v3123 = vunpack.c.l.b16 %v3089
      %v3124 = vunpack.c.h.b16 %v3089
      %v3125 = vunpack.c.l.b16 %v3090
      %v3126 = vunpack.c.h.b16 %v3090
      %v3127 = vunpack.c.l.b16 %v3091
      %v3128 = vunpack.c.h.b16 %v3091
      %v3129 = vunpack.c.l.b16 %v3092
      %v3130 = vunpack.c.h.b16 %v3092
      %v3131 = vunpack.c.l.b16 %v3093
      %v3132 = vunpack.c.h.b16 %v3093
      %v3133 = vunpack.c.l.b16 %v3094
      %v3134 = vunpack.c.h.b16 %v3094
      %v3135 = vunpack.c.l.b16 %v3095
      %v3136 = vunpack.c.h.b16 %v3095
      %v3137 = vunpack.c.l.b16 %v3096
      %v3138 = vunpack.c.h.b16 %v3096
      %v3139 = vunpack.c.l.b16 %v3097
      %v3140 = vunpack.c.h.b16 %v3097
      %v3141 = vunpack.c.l.b16 %v3098
      %v3142 = vunpack.c.h.b16 %v3098
      %v3143 = vunpack.c.l.b16 %v3099
      %v3144 = vunpack.c.h.b16 %v3099
      %v3145 = vunpack.c.l.b16 %v3100
      %v3146 = vunpack.c.h.b16 %v3100
      %v3147 = vunpack.c.l.b16 %v3101
      %v3148 = vunpack.c.h.b16 %v3101
      %v3149 = vunpack.c.l.b16 %v3102
      %v3150 = vunpack.c.h.b16 %v3102
      %v3151 = vpack.c.b16 %v3119, %v3119
      %v3152 = vpack.c.b16 %v3120, %v3120
      %v3153 = vpack.c.b16 %v3121, %v3121
      %v3154 = vpack.c.b16 %v3122, %v3122
      %v3155 = vpack.c.b16 %v3123, %v3123
      %v3156 = vpack.c.b16 %v3124, %v3124
      %v3157 = vpack.c.b16 %v3125, %v3125
      %v3158 = vpack.c.b16 %v3126, %v3126
      %v3159 = vpack.c.b16 %v3127, %v3127
      %v3160 = vpack.c.b16 %v3128, %v3128
      %v3161 = vpack.c.b16 %v3129, %v3129
      %v3162 = vpack.c.b16 %v3130, %v3130
      %v3163 = vpack.c.b16 %v3131, %v3131
      %v3164 = vpack.c.b16 %v3132, %v3132
      %v3165 = vpack.c.b16 %v3133, %v3133
      %v3166 = vpack.c.b16 %v3134, %v3134
      %v3167 = vpack.c.b16 %v3135, %v3135
      %v3168 = vpack.c.b16 %v3136, %v3136
      %v3169 = vpack.c.b16 %v3137, %v3137
      %v3170 = vpack.c.b16 %v3138, %v3138
      %v3171 = vpack.c.b16 %v3139, %v3139
      %v3172 = vpack.c.b16 %v3140, %v3140
      %v3173 = vpack.c.b16 %v3141, %v3141
      %v3174 = vpack.c.b16 %v3142, %v3142
      %v3175 = vpack.c.b16 %v3143, %v3143
      %v3176 = vpack.c.b16 %v3144, %v3144
      %v3177 = vpack.c.b16 %v3145, %v3145
      %v3178 = vpack.c.b16 %v3146, %v3146
      %v3179 = vpack.c.b16 %v3147, %v3147
      %v3180 = vpack.c.b16 %v3148, %v3148
      %v3181 = vpack.c.b16 %v3149, %v3149
      %v3182 = vpack.c.b16 %v3150, %v3150
      %3183 = vrot.lane.b32.xlu0 %v3151, 64
      %v3184 = vpop.permute.xlu0 %3183
      %3185 = vrot.lane.b32.xlu0 %v3152, 64
      %v3186 = vpop.permute.xlu0 %3185
      %3187 = vrot.lane.b32.xlu0 %v3153, 64
      %v3188 = vpop.permute.xlu0 %3187
      %3189 = vrot.lane.b32.xlu0 %v3154, 64
      %v3190 = vpop.permute.xlu0 %3189
      %3191 = vrot.lane.b32.xlu0 %v3155, 64
      %v3192 = vpop.permute.xlu0 %3191
      %3193 = vrot.lane.b32.xlu0 %v3156, 64
      %v3194 = vpop.permute.xlu0 %3193
      %3195 = vrot.lane.b32.xlu0 %v3157, 64
      %v3196 = vpop.permute.xlu0 %3195
      %3197 = vrot.lane.b32.xlu0 %v3158, 64
      %v3198 = vpop.permute.xlu0 %3197
      %3199 = vrot.lane.b32.xlu0 %v3159, 64
      %v3200 = vpop.permute.xlu0 %3199
      %3201 = vrot.lane.b32.xlu0 %v3160, 64
      %v3202 = vpop.permute.xlu0 %3201
      %3203 = vrot.lane.b32.xlu0 %v3161, 64
      %v3204 = vpop.permute.xlu0 %3203
      %3205 = vrot.lane.b32.xlu0 %v3162, 64
      %v3206 = vpop.permute.xlu0 %3205
      %3207 = vrot.lane.b32.xlu0 %v3163, 64
      %v3208 = vpop.permute.xlu0 %3207
      %3209 = vrot.lane.b32.xlu0 %v3164, 64
      %v3210 = vpop.permute.xlu0 %3209
      %3211 = vrot.lane.b32.xlu0 %v3165, 64
      %v3212 = vpop.permute.xlu0 %3211
      %3213 = vrot.lane.b32.xlu0 %v3166, 64
      %v3214 = vpop.permute.xlu0 %3213
      %3215 = vrot.lane.b32.xlu0 %v3167, 64
      %v3216 = vpop.permute.xlu0 %3215
      %3217 = vrot.lane.b32.xlu0 %v3168, 64
      %v3218 = vpop.permute.xlu0 %3217
      %3219 = vrot.lane.b32.xlu0 %v3169, 64
      %v3220 = vpop.permute.xlu0 %3219
      %3221 = vrot.lane.b32.xlu0 %v3170, 64
      %v3222 = vpop.permute.xlu0 %3221
      %3223 = vrot.lane.b32.xlu0 %v3171, 64
      %v3224 = vpop.permute.xlu0 %3223
      %3225 = vrot.lane.b32.xlu0 %v3172, 64
      %v3226 = vpop.permute.xlu0 %3225
      %3227 = vrot.lane.b32.xlu0 %v3173, 64
      %v3228 = vpop.permute.xlu0 %3227
      %3229 = vrot.lane.b32.xlu0 %v3174, 64
      %v3230 = vpop.permute.xlu0 %3229
      %3231 = vrot.lane.b32.xlu0 %v3175, 64
      %v3232 = vpop.permute.xlu0 %3231
      %3233 = vrot.lane.b32.xlu0 %v3176, 64
      %v3234 = vpop.permute.xlu0 %3233
      %3235 = vrot.lane.b32.xlu0 %v3177, 64
      %v3236 = vpop.permute.xlu0 %3235
      %3237 = vrot.lane.b32.xlu0 %v3178, 64
      %v3238 = vpop.permute.xlu0 %3237
      %3239 = vrot.lane.b32.xlu0 %v3179, 64
      %v3240 = vpop.permute.xlu0 %3239
      %3241 = vrot.lane.b32.xlu0 %v3180, 64
      %v3242 = vpop.permute.xlu0 %3241
      %3243 = vrot.lane.b32.xlu0 %v3181, 64
      %v3244 = vpop.permute.xlu0 %3243
      %3245 = vrot.lane.b32.xlu0 %v3182, 64
      %v3246 = vpop.permute.xlu0 %3245
      %3279 = vst.msk [vmem:[#allocation3] sm:$0xf] %vm1129, %v3184
      %3280 = vst.msk [vmem:[#allocation3 + $0x4] sm:$0xf] %vm1129, %v3186
      %3281 = vst.msk [vmem:[#allocation3 + $0x8] sm:$0xf] %vm1129, %v3188
      %3282 = vst.msk [vmem:[#allocation3 + $0xc] sm:$0xf] %vm1129, %v3190
      %3283 = vst.msk [vmem:[#allocation3 + $0x10] sm:$0xf] %vm1129, %v3192
      %3284 = vst.msk [vmem:[#allocation3 + $0x14] sm:$0xf] %vm1129, %v3194
      %3285 = vst.msk [vmem:[#allocation3 + $0x18] sm:$0xf] %vm1129, %v3196
      %3286 = vst.msk [vmem:[#allocation3 + $0x1c] sm:$0xf] %vm1129, %v3198
      %3287 = vst.msk [vmem:[#allocation3 + $0x20] sm:$0xf] %vm1129, %v3200
      %3288 = vst.msk [vmem:[#allocation3 + $0x24] sm:$0xf] %vm1129, %v3202
      %3289 = vst.msk [vmem:[#allocation3 + $0x28] sm:$0xf] %vm1129, %v3204
      %3290 = vst.msk [vmem:[#allocation3 + $0x2c] sm:$0xf] %vm1129, %v3206
      %3291 = vst.msk [vmem:[#allocation3 + $0x30] sm:$0xf] %vm1129, %v3208
      %3292 = vst.msk [vmem:[#allocation3 + $0x34] sm:$0xf] %vm1129, %v3210
      %3293 = vst.msk [vmem:[#allocation3 + $0x38] sm:$0xf] %vm1129, %v3212
      %3294 = vst.msk [vmem:[#allocation3 + $0x3c] sm:$0xf] %vm1129, %v3214
      %3295 = vst.msk [vmem:[#allocation3 + $0x40] sm:$0xf] %vm1129, %v3216
      %3296 = vst.msk [vmem:[#allocation3 + $0x44] sm:$0xf] %vm1129, %v3218
      %3297 = vst.msk [vmem:[#allocation3 + $0x48] sm:$0xf] %vm1129, %v3220
      %3298 = vst.msk [vmem:[#allocation3 + $0x4c] sm:$0xf] %vm1129, %v3222
      %3299 = vst.msk [vmem:[#allocation3 + $0x50] sm:$0xf] %vm1129, %v3224
      %3300 = vst.msk [vmem:[#allocation3 + $0x54] sm:$0xf] %vm1129, %v3226
      %3301 = vst.msk [vmem:[#allocation3 + $0x58] sm:$0xf] %vm1129, %v3228
      %3302 = vst.msk [vmem:[#allocation3 + $0x5c] sm:$0xf] %vm1129, %v3230
      %3303 = vst.msk [vmem:[#allocation3 + $0x60] sm:$0xf] %vm1129, %v3232
      %3304 = vst.msk [vmem:[#allocation3 + $0x64] sm:$0xf] %vm1129, %v3234
      %3305 = vst.msk [vmem:[#allocation3 + $0x68] sm:$0xf] %vm1129, %v3236
      %3306 = vst.msk [vmem:[#allocation3 + $0x6c] sm:$0xf] %vm1129, %v3238
      %3307 = vst.msk [vmem:[#allocation3 + $0x70] sm:$0xf] %vm1129, %v3240
      %3308 = vst.msk [vmem:[#allocation3 + $0x74] sm:$0xf] %vm1129, %v3242
      %3309 = vst.msk [vmem:[#allocation3 + $0x78] sm:$0xf] %vm1129, %v3244
      %3310 = vst.msk [vmem:[#allocation3 + $0x7c] sm:$0xf] %vm1129, %v3246
      %v3311 = vld [vmem:[#allocation3] sm:$0xf]
      %v3312 = vld [vmem:[#allocation3 + $0x4] sm:$0xf]
      %v3313 = vld [vmem:[#allocation3 + $0x8] sm:$0xf]
      %v3314 = vld [vmem:[#allocation3 + $0xc] sm:$0xf]
      %v3315 = vld [vmem:[#allocation3 + $0x10] sm:$0xf]
      %v3316 = vld [vmem:[#allocation3 + $0x14] sm:$0xf]
      %v3317 = vld [vmem:[#allocation3 + $0x18] sm:$0xf]
      %v3318 = vld [vmem:[#allocation3 + $0x1c] sm:$0xf]
      %v3319 = vld [vmem:[#allocation3 + $0x20] sm:$0xf]
      %v3320 = vld [vmem:[#allocation3 + $0x24] sm:$0xf]
      %v3321 = vld [vmem:[#allocation3 + $0x28] sm:$0xf]
      %v3322 = vld [vmem:[#allocation3 + $0x2c] sm:$0xf]
      %v3323 = vld [vmem:[#allocation3 + $0x30] sm:$0xf]
      %v3324 = vld [vmem:[#allocation3 + $0x34] sm:$0xf]
      %v3325 = vld [vmem:[#allocation3 + $0x38] sm:$0xf]
      %v3326 = vld [vmem:[#allocation3 + $0x3c] sm:$0xf]
      %v3327 = vld [vmem:[#allocation3 + $0x40] sm:$0xf]
      %v3328 = vld [vmem:[#allocation3 + $0x44] sm:$0xf]
      %v3329 = vld [vmem:[#allocation3 + $0x48] sm:$0xf]
      %v3330 = vld [vmem:[#allocation3 + $0x4c] sm:$0xf]
      %v3331 = vld [vmem:[#allocation3 + $0x50] sm:$0xf]
      %v3332 = vld [vmem:[#allocation3 + $0x54] sm:$0xf]
      %v3333 = vld [vmem:[#allocation3 + $0x58] sm:$0xf]
      %v3334 = vld [vmem:[#allocation3 + $0x5c] sm:$0xf]
      %v3335 = vld [vmem:[#allocation3 + $0x60] sm:$0xf]
      %v3336 = vld [vmem:[#allocation3 + $0x64] sm:$0xf]
      %v3337 = vld [vmem:[#allocation3 + $0x68] sm:$0xf]
      %v3338 = vld [vmem:[#allocation3 + $0x6c] sm:$0xf]
      %v3339 = vld [vmem:[#allocation3 + $0x70] sm:$0xf]
      %v3340 = vld [vmem:[#allocation3 + $0x74] sm:$0xf]
      %v3341 = vld [vmem:[#allocation3 + $0x78] sm:$0xf]
      %v3342 = vld [vmem:[#allocation3 + $0x7c] sm:$0xf]
      %v3343 = vld [vmem:[%s3 + $0x60] sm:$0xf]
      %v3344 = vld [vmem:[%s3 + $0x64] sm:$0xf]
      %v3345 = vld [vmem:[%s3 + $0x68] sm:$0xf]
      %v3346 = vld [vmem:[%s3 + $0x6c] sm:$0xf]
      %v3347 = vld [vmem:[%s3 + $0x70] sm:$0xf]
      %v3348 = vld [vmem:[%s3 + $0x74] sm:$0xf]
      %v3349 = vld [vmem:[%s3 + $0x78] sm:$0xf]
      %v3350 = vld [vmem:[%s3 + $0x7c] sm:$0xf]
      %v3351 = vld [vmem:[%s3 + $0x80] sm:$0xf]
      %v3352 = vld [vmem:[%s3 + $0x84] sm:$0xf]
      %v3353 = vld [vmem:[%s3 + $0x88] sm:$0xf]
      %v3354 = vld [vmem:[%s3 + $0x8c] sm:$0xf]
      %v3387 = vunpack.c.l.b16 %v3311
      %v3388 = vunpack.c.l.b16 %v3312
      %v3389 = vunpack.c.l.b16 %v3313
      %v3390 = vunpack.c.l.b16 %v3314
      %v3391 = vunpack.c.l.b16 %v3315
      %v3392 = vunpack.c.l.b16 %v3316
      %v3393 = vunpack.c.l.b16 %v3317
      %v3394 = vunpack.c.l.b16 %v3318
      %v3395 = vunpack.c.l.b16 %v3319
      %v3396 = vunpack.c.l.b16 %v3320
      %v3397 = vunpack.c.l.b16 %v3321
      %v3398 = vunpack.c.l.b16 %v3322
      %v3399 = vunpack.c.l.b16 %v3323
      %v3400 = vunpack.c.l.b16 %v3324
      %v3401 = vunpack.c.l.b16 %v3325
      %v3402 = vunpack.c.l.b16 %v3326
      %v3403 = vunpack.c.l.b16 %v3327
      %v3404 = vunpack.c.l.b16 %v3328
      %v3405 = vunpack.c.l.b16 %v3329
      %v3406 = vunpack.c.l.b16 %v3330
      %v3407 = vunpack.c.l.b16 %v3331
      %v3408 = vunpack.c.l.b16 %v3332
      %v3409 = vunpack.c.l.b16 %v3333
      %v3410 = vunpack.c.l.b16 %v3334
      %v3411 = vunpack.c.l.b16 %v3335
      %v3412 = vunpack.c.l.b16 %v3336
      %v3413 = vunpack.c.l.b16 %v3337
      %v3414 = vunpack.c.l.b16 %v3338
      %v3415 = vunpack.c.l.b16 %v3339
      %v3416 = vunpack.c.l.b16 %v3340
      %v3417 = vunpack.c.l.b16 %v3341
      %v3418 = vunpack.c.l.b16 %v3342
      %v3419 = vpack.c.b16 %v3388, %v3387
      %v3420 = vpack.c.b16 %v3390, %v3389
      %v3421 = vpack.c.b16 %v3392, %v3391
      %v3422 = vpack.c.b16 %v3394, %v3393
      %v3423 = vpack.c.b16 %v3396, %v3395
      %v3424 = vpack.c.b16 %v3398, %v3397
      %v3425 = vpack.c.b16 %v3400, %v3399
      %v3426 = vpack.c.b16 %v3402, %v3401
      %v3427 = vpack.c.b16 %v3404, %v3403
      %v3428 = vpack.c.b16 %v3406, %v3405
      %v3429 = vpack.c.b16 %v3408, %v3407
      %v3430 = vpack.c.b16 %v3410, %v3409
      %v3431 = vpack.c.b16 %v3412, %v3411
      %v3432 = vpack.c.b16 %v3414, %v3413
      %v3433 = vpack.c.b16 %v3416, %v3415
      %v3434 = vpack.c.b16 %v3418, %v3417
      %v3447 = vunpack.c.l.b16 %v3343
      %v3448 = vunpack.c.l.b16 %v3344
      %v3449 = vunpack.c.l.b16 %v3345
      %v3450 = vunpack.c.l.b16 %v3346
      %v3451 = vunpack.c.l.b16 %v3347
      %v3452 = vunpack.c.l.b16 %v3348
      %v3453 = vunpack.c.l.b16 %v3349
      %v3454 = vunpack.c.l.b16 %v3350
      %v3455 = vunpack.c.l.b16 %v3351
      %v3456 = vunpack.c.l.b16 %v3352
      %v3457 = vunpack.c.l.b16 %v3353
      %v3458 = vunpack.c.l.b16 %v3354
      %v3459 = vpack.c.b16 %v3448, %v3447
      %v3460 = vpack.c.b16 %v3450, %v3449
      %v3461 = vpack.c.b16 %v3452, %v3451
      %v3462 = vpack.c.b16 %v3454, %v3453
      %v3463 = vpack.c.b16 %v3456, %v3455
      %v3464 = vpack.c.b16 %v3458, %v3457
      %v3472 = vsel %vm2071, %v3419, 0
      %v3475 = vsel %vm2071, %v3420, 0
      %v3478 = vsel %vm2071, %v3421, 0
      %v3481 = vsel %vm2071, %v3422, 0
      %v3484 = vsel %vm2071, %v3423, 0
      %v3487 = vsel %vm2071, %v3424, 0
      %v3490 = vsel %vm2071, %v3425, 0
      %v3493 = vsel %vm2071, %v3426, 0
      %v3496 = vsel %vm2071, %v3427, 0
      %v3499 = vsel %vm2071, %v3428, 0
      %v3502 = vsel %vm2071, %v3429, 0
      %v3505 = vsel %vm2071, %v3430, 0
      %v3508 = vsel %vm2071, %v3431, 0
      %v3511 = vsel %vm2071, %v3432, 0
      %v3514 = vsel %vm2071, %v3433, 0
      %v3517 = vsel %vm2071, %v3434, 0
      %3519 = vmatprep.subr.bf16.mxu0 0
      %3520 = vmatpush1.bf16.msra.mxu0 0
      %3521 = vmatprep.subr.bf16.mxu0 0
      %3522 = vmatpush1.bf16.msra.mxu0 0
      %3523 = vmatprep.subr.bf16.mxu0 0
      %3524 = vmatpush1.bf16.msra.mxu0 %v3464
      %3525 = vmatprep.subr.bf16.mxu0 0
      %3526 = vmatpush1.bf16.msra.mxu0 %v3463
      %3527 = vmatprep.subr.bf16.mxu0 0
      %3528 = vmatpush1.bf16.msra.mxu0 %v3462
      %3529 = vmatprep.subr.bf16.mxu0 0
      %3530 = vmatpush1.bf16.msra.mxu0 %v3461
      %3531 = vmatprep.subr.bf16.mxu0 0
      %3532 = vmatpush1.bf16.msra.mxu0 %v3460
      %3533 = vmatprep.subr.bf16.mxu0 0
      %3534 = vmatpush1.bf16.msra.mxu0 %v3459
      %3535 = vmatprep.subr.bf16.mxu0 0
      %3536 = vmatpush2.bf16.msra.mxu0 0
      %3537 = vmatprep.subr.bf16.mxu0 0
      %3538 = vmatpush2.bf16.msra.mxu0 0
      %3539 = vmatprep.subr.bf16.mxu0 0
      %3540 = vmatpush2.bf16.msra.mxu0 0
      %3541 = vmatprep.subr.bf16.mxu0 0
      %3542 = vmatpush2.bf16.msra.mxu0 0
      %3543 = vmatprep.subr.bf16.mxu0 0
      %3544 = vmatpush2.bf16.msra.mxu0 0
      %3545 = vmatprep.subr.bf16.mxu0 0
      %3546 = vmatpush2.bf16.msra.mxu0 0
      %3547 = vmatprep.subr.bf16.mxu0 0
      %3548 = vmatpush2.bf16.msra.mxu0 0
      %3549 = vmatprep.subr.bf16.mxu0 0
      %3550 = vmatpush2.bf16.msra.mxu0 0
      %3551 = vmatprep.mubr.bf16.mxu0 0
      %3552 = vmatmul.mubr.bf16.gmra.mxu0 %v3472
      %v3553 = vpop.f32.mrf.mxu0
      %v3554 = vadd.f32 0.0, %v3553
      %v3555 = vpop.f32.mrf.mxu0
      %v3556 = vpop.f32.mrf.mxu0
      %v3557 = vadd.f32 0.0, %v3556
      %v3558 = vpop.f32.mrf.mxu0
      %3559 = vmatprep.mubr.bf16.mxu0 0
      %3560 = vmatmul.mubr.bf16.gmra.mxu0 %v3475
      %v3561 = vpop.f32.mrf.mxu0
      %v3562 = vadd.f32 0.0, %v3561
      %v3563 = vpop.f32.mrf.mxu0
      %v3564 = vpop.f32.mrf.mxu0
      %v3565 = vadd.f32 0.0, %v3564
      %v3566 = vpop.f32.mrf.mxu0
      %3567 = vmatprep.mubr.bf16.mxu0 0
      %3568 = vmatmul.mubr.bf16.gmra.mxu0 %v3478
      %v3569 = vpop.f32.mrf.mxu0
      %v3570 = vadd.f32 0.0, %v3569
      %v3571 = vpop.f32.mrf.mxu0
      %v3572 = vpop.f32.mrf.mxu0
      %v3573 = vadd.f32 0.0, %v3572
      %v3574 = vpop.f32.mrf.mxu0
      %3575 = vmatprep.mubr.bf16.mxu0 0
      %3576 = vmatmul.mubr.bf16.gmra.mxu0 %v3481
      %v3577 = vpop.f32.mrf.mxu0
      %v3578 = vadd.f32 0.0, %v3577
      %v3579 = vpop.f32.mrf.mxu0
      %v3580 = vpop.f32.mrf.mxu0
      %v3581 = vadd.f32 0.0, %v3580
      %v3582 = vpop.f32.mrf.mxu0
      %3583 = vmatprep.mubr.bf16.mxu0 0
      %3584 = vmatmul.mubr.bf16.gmra.mxu0 %v3484
      %v3585 = vpop.f32.mrf.mxu0
      %v3586 = vadd.f32 0.0, %v3585
      %v3587 = vpop.f32.mrf.mxu0
      %v3588 = vpop.f32.mrf.mxu0
      %v3589 = vadd.f32 0.0, %v3588
      %v3590 = vpop.f32.mrf.mxu0
      %3591 = vmatprep.mubr.bf16.mxu0 0
      %3592 = vmatmul.mubr.bf16.gmra.mxu0 %v3487
      %v3593 = vpop.f32.mrf.mxu0
      %v3594 = vadd.f32 0.0, %v3593
      %v3595 = vpop.f32.mrf.mxu0
      %v3596 = vpop.f32.mrf.mxu0
      %v3597 = vadd.f32 0.0, %v3596
      %v3598 = vpop.f32.mrf.mxu0
      %3599 = vmatprep.mubr.bf16.mxu0 0
      %3600 = vmatmul.mubr.bf16.gmra.mxu0 %v3490
      %v3601 = vpop.f32.mrf.mxu0
      %v3602 = vadd.f32 0.0, %v3601
      %v3603 = vpop.f32.mrf.mxu0
      %v3604 = vpop.f32.mrf.mxu0
      %v3605 = vadd.f32 0.0, %v3604
      %v3606 = vpop.f32.mrf.mxu0
      %3607 = vmatprep.mubr.bf16.mxu0 0
      %3608 = vmatmul.mubr.bf16.gmra.mxu0 %v3493
      %v3609 = vpop.f32.mrf.mxu0
      %v3610 = vadd.f32 0.0, %v3609
      %v3611 = vpop.f32.mrf.mxu0
      %v3612 = vpop.f32.mrf.mxu0
      %v3613 = vadd.f32 0.0, %v3612
      %v3614 = vpop.f32.mrf.mxu0
      %3615 = vmatprep.mubr.bf16.mxu0 0
      %3616 = vmatmul.mubr.bf16.gmra.mxu0 %v3496
      %v3617 = vpop.f32.mrf.mxu0
      %v3618 = vadd.f32 0.0, %v3617
      %v3619 = vpop.f32.mrf.mxu0
      %v3620 = vpop.f32.mrf.mxu0
      %v3621 = vadd.f32 0.0, %v3620
      %v3622 = vpop.f32.mrf.mxu0
      %3623 = vmatprep.mubr.bf16.mxu0 0
      %3624 = vmatmul.mubr.bf16.gmra.mxu0 %v3499
      %v3625 = vpop.f32.mrf.mxu0
      %v3626 = vadd.f32 0.0, %v3625
      %v3627 = vpop.f32.mrf.mxu0
      %v3628 = vpop.f32.mrf.mxu0
      %v3629 = vadd.f32 0.0, %v3628
      %v3630 = vpop.f32.mrf.mxu0
      %3631 = vmatprep.mubr.bf16.mxu0 0
      %3632 = vmatmul.mubr.bf16.gmra.mxu0 %v3502
      %v3633 = vpop.f32.mrf.mxu0
      %v3634 = vadd.f32 0.0, %v3633
      %v3635 = vpop.f32.mrf.mxu0
      %v3636 = vpop.f32.mrf.mxu0
      %v3637 = vadd.f32 0.0, %v3636
      %v3638 = vpop.f32.mrf.mxu0
      %3639 = vmatprep.mubr.bf16.mxu0 0
      %3640 = vmatmul.mubr.bf16.gmra.mxu0 %v3505
      %v3641 = vpop.f32.mrf.mxu0
      %v3642 = vadd.f32 0.0, %v3641
      %v3643 = vpop.f32.mrf.mxu0
      %v3644 = vpop.f32.mrf.mxu0
      %v3645 = vadd.f32 0.0, %v3644
      %v3646 = vpop.f32.mrf.mxu0
      %3647 = vmatprep.mubr.bf16.mxu0 0
      %3648 = vmatmul.mubr.bf16.gmra.mxu0 %v3508
      %v3649 = vpop.f32.mrf.mxu0
      %v3650 = vadd.f32 0.0, %v3649
      %v3651 = vpop.f32.mrf.mxu0
      %v3652 = vpop.f32.mrf.mxu0
      %v3653 = vadd.f32 0.0, %v3652
      %v3654 = vpop.f32.mrf.mxu0
      %3655 = vmatprep.mubr.bf16.mxu0 0
      %3656 = vmatmul.mubr.bf16.gmra.mxu0 %v3511
      %v3657 = vpop.f32.mrf.mxu0
      %v3658 = vadd.f32 0.0, %v3657
      %v3659 = vpop.f32.mrf.mxu0
      %v3660 = vpop.f32.mrf.mxu0
      %v3661 = vadd.f32 0.0, %v3660
      %v3662 = vpop.f32.mrf.mxu0
      %3663 = vmatprep.mubr.bf16.mxu0 0
      %3664 = vmatmul.mubr.bf16.gmra.mxu0 %v3514
      %v3665 = vpop.f32.mrf.mxu0
      %v3666 = vadd.f32 0.0, %v3665
      %v3667 = vpop.f32.mrf.mxu0
      %v3668 = vpop.f32.mrf.mxu0
      %v3669 = vadd.f32 0.0, %v3668
      %v3670 = vpop.f32.mrf.mxu0
      %3671 = vmatprep.mubr.bf16.mxu0 0
      %3672 = vmatmul.mubr.bf16.gmra.mxu0 %v3517
      %v3673 = vpop.f32.mrf.mxu0
      %v3674 = vadd.f32 0.0, %v3673
      %v3675 = vpop.f32.mrf.mxu0
      %v3676 = vpop.f32.mrf.mxu0
      %v3677 = vadd.f32 0.0, %v3676
      %v3678 = vpop.f32.mrf.mxu0
      %3679 = vdwg.mxu0
      %v3680 = vadd.f32 %v2480, %v3554
      %v3681 = vadd.f32 %v2483, %v3557
      %v3682 = vadd.f32 %v2488, %v3562
      %v3683 = vadd.f32 %v2491, %v3565
      %v3684 = vadd.f32 %v2496, %v3570
      %v3685 = vadd.f32 %v2499, %v3573
      %v3686 = vadd.f32 %v2504, %v3578
      %v3687 = vadd.f32 %v2507, %v3581
      %v3688 = vadd.f32 %v2512, %v3586
      %v3689 = vadd.f32 %v2515, %v3589
      %v3690 = vadd.f32 %v2520, %v3594
      %v3691 = vadd.f32 %v2523, %v3597
      %v3692 = vadd.f32 %v2528, %v3602
      %v3693 = vadd.f32 %v2531, %v3605
      %v3694 = vadd.f32 %v2536, %v3610
      %v3695 = vadd.f32 %v2539, %v3613
      %v3696 = vadd.f32 %v2544, %v3618
      %v3697 = vadd.f32 %v2547, %v3621
      %v3698 = vadd.f32 %v2552, %v3626
      %v3699 = vadd.f32 %v2555, %v3629
      %v3700 = vadd.f32 %v2560, %v3634
      %v3701 = vadd.f32 %v2563, %v3637
      %v3702 = vadd.f32 %v2568, %v3642
      %v3703 = vadd.f32 %v2571, %v3645
      %v3704 = vadd.f32 %v2576, %v3650
      %v3705 = vadd.f32 %v2579, %v3653
      %v3706 = vadd.f32 %v2584, %v3658
      %v3707 = vadd.f32 %v2587, %v3661
      %v3708 = vadd.f32 %v2592, %v3666
      %v3709 = vadd.f32 %v2595, %v3669
      %v3710 = vadd.f32 %v2600, %v3674
      %v3711 = vadd.f32 %v2603, %v3677
      %vm3712 = vcmask 64512
      %3713 = vst.msk [vmem:[%s199] sm:$0xff] %vm3712, %v3680
      %3714 = vst.msk [vmem:[%s199 + $0x8] sm:$0xff] %vm3712, %v3681
      %3715 = vst.msk [vmem:[%s199 + $0x10] sm:$0xff] %vm3712, %v3682
      %3716 = vst.msk [vmem:[%s199 + $0x18] sm:$0xff] %vm3712, %v3683
      %3717 = vst.msk [vmem:[%s199 + $0x20] sm:$0xff] %vm3712, %v3684
      %3718 = vst.msk [vmem:[%s199 + $0x28] sm:$0xff] %vm3712, %v3685
      %3719 = vst.msk [vmem:[%s199 + $0x30] sm:$0xff] %vm3712, %v3686
      %3720 = vst.msk [vmem:[%s199 + $0x38] sm:$0xff] %vm3712, %v3687
      %3721 = vst.msk [vmem:[%s199 + $0x40] sm:$0xff] %vm3712, %v3688
      %3722 = vst.msk [vmem:[%s199 + $0x48] sm:$0xff] %vm3712, %v3689
      %3723 = vst.msk [vmem:[%s199 + $0x50] sm:$0xff] %vm3712, %v3690
      %3724 = vst.msk [vmem:[%s199 + $0x58] sm:$0xff] %vm3712, %v3691
      %3725 = vst.msk [vmem:[%s199 + $0x60] sm:$0xff] %vm3712, %v3692
      %3726 = vst.msk [vmem:[%s199 + $0x68] sm:$0xff] %vm3712, %v3693
      %3727 = vst.msk [vmem:[%s199 + $0x70] sm:$0xff] %vm3712, %v3694
      %3728 = vst.msk [vmem:[%s199 + $0x78] sm:$0xff] %vm3712, %v3695
      %3729 = vst.msk [vmem:[%s199 + $0x80] sm:$0xff] %vm3712, %v3696
      %3730 = vst.msk [vmem:[%s199 + $0x88] sm:$0xff] %vm3712, %v3697
      %3731 = vst.msk [vmem:[%s199 + $0x90] sm:$0xff] %vm3712, %v3698
      %3732 = vst.msk [vmem:[%s199 + $0x98] sm:$0xff] %vm3712, %v3699
      %3733 = vst.msk [vmem:[%s199 + $0xa0] sm:$0xff] %vm3712, %v3700
      %3734 = vst.msk [vmem:[%s199 + $0xa8] sm:$0xff] %vm3712, %v3701
      %3735 = vst.msk [vmem:[%s199 + $0xb0] sm:$0xff] %vm3712, %v3702
      %3736 = vst.msk [vmem:[%s199 + $0xb8] sm:$0xff] %vm3712, %v3703
      %3737 = vst.msk [vmem:[%s199 + $0xc0] sm:$0xff] %vm3712, %v3704
      %3738 = vst.msk [vmem:[%s199 + $0xc8] sm:$0xff] %vm3712, %v3705
      %3739 = vst.msk [vmem:[%s199 + $0xd0] sm:$0xff] %vm3712, %v3706
      %3740 = vst.msk [vmem:[%s199 + $0xd8] sm:$0xff] %vm3712, %v3707
      %3741 = vst.msk [vmem:[%s199 + $0xe0] sm:$0xff] %vm3712, %v3708
      %3742 = vst.msk [vmem:[%s199 + $0xe8] sm:$0xff] %vm3712, %v3709
      %3743 = vst.msk [vmem:[%s199 + $0xf0] sm:$0xff] %vm3712, %v3710
      %3744 = vst.msk [vmem:[%s199 + $0xf8] sm:$0xff] %vm3712, %v3711
      %s3745 = smul.u32 32, %s15
      %p3746 = scmp.lt.s32.totalorder %s3745, 63
      %s3747 = scalar_select %p3746, %s3745, 63
      %s3748 = smul.addr %s3747, 8
      %s3749 = scalar_lea.vmem %s4, %s3748
      // Predicated region
      $region37: #{dense_layer_forward.5} parent=35 // pred_check
        %p3750 = pneg %p122
      $region38: #{dense_layer_forward.5} parent=35 // pred_check_branch
        %3752 = sbr.rel (%p3750) target = $region40
      $region39: #{dense_layer_forward.5} parent=35 // pred_region
        %s3753 = smul.u32 32, %s15
      $region40: #{dense_layer_forward.5} parent=35 // pred_fallthru
        _
    $region36: #{dense_layer_forward.5} parent=5 // pred_fallthru
      _
    %p3754 = scmp.le.s32.totalorder 2, %s10
    // Predicated region
    $region41: #{dense_layer_forward.5} parent=5 // pred_check
      %p3755 = pneg %p3754
    $region42: #{dense_layer_forward.5} parent=5 // pred_check_branch
      %3757 = sbr.rel (%p3755) target = $region44
    $region43: #{dense_layer_forward.5} parent=5 // pred_region
      %s3758 = ssub.s32 %s10, 2
      // Predicated region
      $region45: #{dense_layer_forward.5} parent=43 // pred_check
        %p3759 = pneg %p128
      $region46: #{dense_layer_forward.5} parent=43 // pred_check_branch
        %3761 = sbr.rel (%p3759) target = $region48
      $region47: #{dense_layer_forward.5} parent=43 // pred_region
        %s3762 = smul.u32 32, %s16
        %p3763 = scmp.lt.s32.totalorder %s3762, 63
        %s3764 = scalar_select %p3763, %s3762, 63
        %s3765 = smul.addr %s3764, 8
        %s3766 = scalar_lea.vmem %s4, %s3765
      $region48: #{dense_layer_forward.5} parent=43 // pred_fallthru
        _
    $region44: #{dense_layer_forward.5} parent=5 // pred_fallthru
      _
  $region6: #{dense_layer_forward.5} parent=0 // loop_footer
    %s14 = sadd.s32 1, %s10
  $region7: #{dense_layer_forward.5} parent=0 // loop_footer_branch
    %9 = sbr.rel target = $region3
  $region8: #{dense_layer_forward.5} parent=0 // loop_exit
    _

</llo_original>
